<compile_context>
chip_gen: v5e
topology: v5e:2x2
jax: 0.10.0
libtpu: 0.0.40
codegen_flags: <defaults>
</compile_context>

<pallas_src>
import functools

import numpy as np
import jax
import jax.numpy as jnp
from jax.experimental import pallas as pl
from jax.experimental.pallas import tpu as pltpu


# ------------------------------- small helpers -------------------------------

def _bn_fold(gamma, beta, mean, var, eps=1e-5):
    scale = gamma / jnp.sqrt(var + eps)
    return scale, beta - mean * scale


def _valid_mask(k, pad, h, w, batch):
    """(k*k, batch*h*w) 0/1 mask: tap (kh,kw) valid where the shifted pixel stays in-image.

    Covers BOTH row and column overflow, so rolled (wrapped) reads across image /
    batch-segment boundaries are zeroed and no zero-padded scratch is needed."""
    hh, ww = np.meshgrid(np.arange(h), np.arange(w), indexing="ij")
    hh, ww = hh.reshape(-1), ww.reshape(-1)
    rows = []
    for kh in range(k):
        for kw in range(k):
            r = hh + kh - pad
            c = ww + kw - pad
            rows.append(((r >= 0) & (r < h) & (c >= 0) & (c < w)).astype(np.float32))
    m = np.stack(rows, axis=0)
    return jnp.asarray(np.tile(m, (1, batch)))


def _taps(k, pad, wdim):
    for kh in range(k):
        for kw in range(k):
            yield kh * k + kw, (kh - pad) * wdim + (kw - pad)


# ------------------------------- fused kernel --------------------------------

def _bottleneck_od_kernel(x_ref, seg_ref, mask3_ref, mask5_ref,
                          w1_ref, b1_ref, dww_ref, b2_ref,
                          fcw_ref, fcb_ref, headw_ref, headb_ref, bank_ref,
                          out_ref,
                          *, batch, hw, wdim, k1, kdw, kn, c_hid, c2, add):
    bhw = batch * hw
    n_sp = k1 * k1
    ch = b1_ref.shape[0]

    xb = x_ref[...]                                    # (c1, B*HW) f32

    def shift(v, off):
        # rolled[p] = v[p + off];   masks zero every position where p+off left the image
        return v if off == 0 else pltpu.roll(v, (-off) % bhw, axis=1)

    # ---- GhostConv.cv1: 3x3 conv as 9 per-tap accumulating bf16 MXU matmuls ----
    acc1 = jnp.zeros((ch, bhw), jnp.float32)
    for t, off in _taps(k1, k1 // 2, wdim):
        slab = shift(xb, off)
        if off != 0:
            slab = slab * mask3_ref[t:t + 1, :]
        acc1 = acc1 + jnp.dot(w1_ref[t], slab.astype(jnp.bfloat16),
                              preferred_element_type=jnp.float32)
    y1 = acc1 + b1_ref[...]                            # folded BN bias
    y1 = y1 * jax.nn.sigmoid(y1)                       # SiLU

    # ---- GhostConv.cv2: 5x5 depthwise conv (XLU rolls + VPU fma) + BN + SiLU ----
    dww = dww_ref[...]                                 # (ch, 25), BN scale folded
    acc2 = jnp.zeros_like(y1)
    for t, off in _taps(kdw, kdw // 2, wdim):
        s = shift(y1, off)
        w_col = dww[:, t:t + 1]
        if off != 0:
            w_col = w_col * mask5_ref[t:t + 1, :]
        acc2 = acc2 + s * w_col
    y2 = acc2 + b2_ref[...]
    y2 = y2 * jax.nn.sigmoid(y2)

    g = jnp.concatenate([y1, y2], axis=0)              # (c_, B*HW)

    # ---- ODConv attention, evaluated per batch segment ----
    att = []
    for b in range(batch):
        segf = seg_ref[b:b + 1, :]                     # (1, B*HW) 0/1 segment mask
        pooled = jnp.sum(g * segf, axis=1, keepdims=True) * (1.0 / hw)
        a = jnp.dot(fcw_ref[...], pooled, preferred_element_type=jnp.float32) + fcb_ref[...]
        a = jnp.maximum(a, 0.0)                        # ReLU (fc + folded BN)
        heads = jnp.dot(headw_ref[...], a, preferred_element_type=jnp.float32) + headb_ref[...]
        ca = jax.nn.sigmoid(heads[0:c_hid])                               # channel (c_,1)
        fa = jax.nn.sigmoid(heads[c_hid:c_hid + c2])                      # filter  (c2,1)
        sa = jax.nn.sigmoid(heads[c_hid + c2:c_hid + c2 + n_sp])          # spatial (kk,1)
        kl = heads[c_hid + c2 + n_sp:c_hid + c2 + n_sp + kn]              # kernel logits
        kl = kl - jnp.max(kl, axis=0, keepdims=True)                      # softmax, T=1.0
        ke = jnp.exp(kl)
        ka = ke / jnp.sum(ke, axis=0, keepdims=True)
        att.append((ca, fa, sa, ka, segf))

    # channel attention folded into the ODConv input (per-segment broadcast, one pass)
    ca_exp = att[0][0] * att[0][4]
    for b in range(1, batch):
        ca_exp = ca_exp + att[b][0] * att[b][4]
    gm = g * ca_exp                                    # (c_, B*HW)

    # kernel-attention aggregated weight per batch element (tiny VPU fma chain)
    waggs = []
    for b in range(batch):
        ka = att[b][3]
        w = bank_ref[0] * ka[0:1, 0:1]
        for k in range(1, kn):
            w = w + bank_ref[k] * ka[k:k + 1, 0:1]
        waggs.append(w)                                # (c2, kk*c_) f32

    # ---- ODConv dynamic conv: per-tap matmuls, spatial att folded into the weight ----
    accs = [jnp.zeros((c2, hw), jnp.float32) for _ in range(batch)]
    for t, off in _taps(k1, k1 // 2, wdim):
        slab = shift(gm, off)
        if off != 0:
            slab = slab * mask3_ref[t:t + 1, :]
        slab = slab.astype(jnp.bfloat16)               # (c_, B*HW)
        for b in range(batch):
            sa = att[b][2]
            w_bt = (waggs[b][:, t * c_hid:(t + 1) * c_hid]
                    * sa[t:t + 1, 0:1]).astype(jnp.bfloat16)              # (c2, c_)
            accs[b] = accs[b] + jnp.dot(w_bt, slab[:, b * hw:(b + 1) * hw],
                                        preferred_element_type=jnp.float32)

    # ---- filter attention, optional residual, lane-aligned per-segment stores ----
    for b in range(batch):
        o = accs[b] * att[b][1]
        if add:                                        # trace-time residual switch
            o = o + xb[:, b * hw:(b + 1) * hw]
        out_ref[:, b * hw:(b + 1) * hw] = o.astype(out_ref.dtype)


# ----------------------------- Bottleneck_OD forward --------------------------

def bottleneck_od_forward(x, P, shortcut=True):
    b, c1, h, w = x.shape
    hw = h * w
    bhw = b * hw
    ch = P["cv1_w"].shape[0]
    k1 = P["cv1_w"].shape[2]
    kdw = P["dw_w"].shape[2]
    kn, c2, c_hid, k2, _ = P["od_w"].shape
    A = P["fc_w"].shape[0]
    assert k2 == k1, "kernel reuses the cv1 tap masks for the ODConv"

    # ---- parameter packing / BN folding (plain-JAX weight glue, inference mode) ----
    sc1, bi1 = _bn_fold(P["cv1_bn_g"], P["cv1_bn_b"], P["cv1_bn_m"], P["cv1_bn_v"])
    w1 = (jnp.transpose(P["cv1_w"], (2, 3, 0, 1)).reshape(k1 * k1, ch, c1)
          * sc1[None, :, None]).astype(jnp.bfloat16)          # per-tap (ch, c1) bf16
    b1 = bi1[:, None]

    sc2, bi2 = _bn_fold(P["dw_bn_g"], P["dw_bn_b"], P["dw_bn_m"], P["dw_bn_v"])
    dww = P["dw_w"][:, 0].reshape(ch, kdw * kdw) * sc2[:, None]
    b2 = bi2[:, None]

    asc, abi = _bn_fold(P["att_bn_g"], P["att_bn_b"], P["att_bn_m"], P["att_bn_v"])
    fcw = P["fc_w"] * asc[:, None]
    fcb = abi[:, None]
    headw = jnp.concatenate([P["ch_w"], P["f_w"], P["s_w"], P["k_w"]], axis=0)
    headb = jnp.concatenate([P["ch_b"], P["f_b"], P["s_b"], P["k_b"]])[:, None]
    nh = headw.shape[0]

    bank = (jnp.transpose(P["od_w"], (0, 1, 3, 4, 2))
            .reshape(kn, c2, k2 * k2 * c_hid).astype(jnp.bfloat16))

    mask3 = _valid_mask(k1, k1 // 2, h, w, b)          # (k1*k1, B*HW)
    mask5 = _valid_mask(kdw, kdw // 2, h, w, b)        # (kdw*kdw, B*HW)
    seg = jnp.asarray(np.kron(np.eye(b, dtype=np.float32),
                              np.ones((1, hw), np.float32)))   # (B, B*HW) segment masks

    # batch folded onto the lane axis: column = batch*H*W + h*W + w
    x_flat = jnp.transpose(x, (1, 0, 2, 3)).reshape(c1, bhw)
    add = bool(shortcut and c1 == c2)

    kernel = functools.partial(_bottleneck_od_kernel, batch=b, hw=hw, wdim=w,
                               k1=k1, kdw=kdw, kn=kn, c_hid=c_hid, c2=c2, add=add)
    full2 = lambda i: (0, 0)

    out = pl.pallas_call(
        kernel,
        out_shape=jax.ShapeDtypeStruct((c2, bhw), jnp.float32),
        grid=(1,),
        in_specs=[
            pl.BlockSpec((c1, bhw), full2),                              # x (conv input + residual)
            pl.BlockSpec((b, bhw), full2),                               # batch segment masks
            pl.BlockSpec((k1 * k1, bhw), full2),                         # 3x3 validity masks
            pl.BlockSpec((kdw * kdw, bhw), full2),                       # 5x5 validity masks
            pl.BlockSpec((k1 * k1, ch, c1), lambda i: (0, 0, 0)),        # cv1 weight, per-tap, bf16
            pl.BlockSpec((ch, 1), full2),                                # cv1 folded-BN bias
            pl.BlockSpec((ch, kdw * kdw), full2),                        # dw weight (BN folded)
            pl.BlockSpec((ch, 1), full2),                                # dw folded-BN bias
            pl.BlockSpec((A, c_hid), full2),                             # attention fc (BN folded)
            pl.BlockSpec((A, 1), full2),                                 # attention fc bias
            pl.BlockSpec((nh, A), full2),                                # fused 4-head weight
            pl.BlockSpec((nh, 1), full2),                                # fused 4-head bias
            pl.BlockSpec((kn, c2, k2 * k2 * c_hid), lambda i: (0, 0, 0)),  # ODConv weight bank bf16
        ],
        out_specs=pl.BlockSpec((c2, bhw), full2),
        compiler_params=pltpu.CompilerParams(
            dimension_semantics=("arbitrary",)),
    )(x_flat, seg, mask3, mask5, w1, b1, dww, b2, fcw, fcb, headw, headb, bank)
    return jnp.transpose(out.reshape(c2, b, h, w), (1, 0, 2, 3))


# ----------------------------- pure-JAX reference ----------------------------

def reference_forward(x, P, shortcut=True):
    def conv2d(xx, ww, pad, groups=1):
        return jax.lax.conv_general_dilated(
            xx, ww, window_strides=(1, 1), padding=[(pad, pad), (pad, pad)],
            feature_group_count=groups, dimension_numbers=("NCHW", "OIHW", "NCHW"))

    def silu(v):
        return v * jax.nn.sigmoid(v)

    b, c1, h, w = x.shape
    ch = P["cv1_w"].shape[0]
    kn, c2, c_hid, k2, _ = P["od_w"].shape

    sc1, bi1 = _bn_fold(P["cv1_bn_g"], P["cv1_bn_b"], P["cv1_bn_m"], P["cv1_bn_v"])
    y1 = silu(conv2d(x, P["cv1_w"], 1) * sc1[None, :, None, None] + bi1[None, :, None, None])
    sc2, bi2 = _bn_fold(P["dw_bn_g"], P["dw_bn_b"], P["dw_bn_m"], P["dw_bn_v"])
    y2 = silu(conv2d(y1, P["dw_w"], 2, groups=ch) * sc2[None, :, None, None]
              + bi2[None, :, None, None])
    g = jnp.concatenate([y1, y2], axis=1)

    pooled = jnp.mean(g, axis=(2, 3))
    bn_sc, bn_bi = _bn_fold(P["att_bn_g"], P["att_bn_b"], P["att_bn_m"], P["att_bn_v"])
    a = jnp.maximum(pooled @ P["fc_w"].T * bn_sc[None, :] + bn_bi[None, :], 0.0)
    ca = jax.nn.sigmoid(a @ P["ch_w"].T + P["ch_b"][None, :])
    fa = jax.nn.sigmoid(a @ P["f_w"].T + P["f_b"][None, :])
    sa = jax.nn.sigmoid(a @ P["s_w"].T + P["s_b"][None, :])
    ka = jax.nn.softmax(a @ P["k_w"].T + P["k_b"][None, :], axis=1)

    xm = g * ca[:, :, None, None]
    agg = jnp.einsum("bk,bpq,koipq->boipq", ka, sa.reshape(b, k2, k2), P["od_w"])
    outs = [conv2d(xm[i:i + 1], agg[i], 1) for i in range(b)]
    out = jnp.concatenate(outs, axis=0) * fa[:, :, None, None]
    if shortcut and c1 == c2:
        out = out + x
    return out


# ------------------------------------ main -----------------------------------

if __name__ == "__main__":
    # Bottleneck_OD(c1=16, c2=16, shortcut=True, g=1, e=0.5)
    B, C1, C2, H, W = 2, 16, 16, 16, 16
    c_ = int(C2 * 0.5)              # 8  (GhostConv out channels / ODConv in_planes)
    ch = c_ // 2                    # 4  (GhostConv hidden channels)
    A = max(int(c_ * 0.0625), 16)   # 16 (attention channels)
    KN = 4                          # kernel_num

    root = jax.random.PRNGKey(0)
    keys = iter(jax.random.split(root, 40))

    def nrm(shape, std=0.2):
        return (std * jax.random.normal(next(keys), shape)).astype(jnp.float32)

    x = jax.random.normal(next(keys), (B, C1, H, W), dtype=jnp.float32)

    P = {
        # GhostConv.cv1 (Conv 3x3, bias=False) + BN
        "cv1_w": nrm((ch, C1, 3, 3)),
        "cv1_bn_g": 1.0 + nrm((ch,), 0.1), "cv1_bn_b": nrm((ch,), 0.1),
        "cv1_bn_m": nrm((ch,), 0.1), "cv1_bn_v": 0.6 + jnp.abs(nrm((ch,), 0.2)),
        # GhostConv.cv2 (depthwise 5x5, bias=False) + BN
        "dw_w": nrm((ch, 1, 5, 5)),
        "dw_bn_g": 1.0 + nrm((ch,), 0.1), "dw_bn_b": nrm((ch,), 0.1),
        "dw_bn_m": nrm((ch,), 0.1), "dw_bn_v": 0.6 + jnp.abs(nrm((ch,), 0.2)),
        # ODConv attention: fc (no bias) + BN + 4 heads (1x1 convs with bias)
        "fc_w": nrm((A, c_)),
        "att_bn_g": 1.0 + nrm((A,), 0.1), "att_bn_b": nrm((A,), 0.1),
        "att_bn_m": nrm((A,), 0.1), "att_bn_v": 0.6 + jnp.abs(nrm((A,), 0.2)),
        "ch_w": nrm((c_, A)), "ch_b": nrm((c_,), 0.1),
        "f_w": nrm((C2, A)), "f_b": nrm((C2,), 0.1),
        "s_w": nrm((3 * 3, A)), "s_b": nrm((3 * 3,), 0.1),
        "k_w": nrm((KN, A)), "k_b": nrm((KN,), 0.1),
        # ODConv dynamic weight bank: (kernel_num, out_planes, in_planes, k, k)
        "od_w": nrm((KN, C2, c_, 3, 3)),
    }

    fwd = jax.jit(lambda xx, pp: bottleneck_od_forward(xx, pp, shortcut=True))
    out = jax.block_until_ready(fwd(x, P))

    ref = reference_forward(x, P, shortcut=True)
    np.testing.assert_allclose(np.asarray(out), np.asarray(ref), rtol=5e-2, atol=5e-2)

    print("KERNEL_OK")
</pallas_src>

<mosaic_0001>
module attributes {stable_mosaic.version = 11 : i64} {
  func.func @_bottleneck_od_kernel(%arg0: i32, %arg1: memref<16x512xf32, #tpu.memory_space<vmem>>, %arg2: memref<2x512xf32, #tpu.memory_space<vmem>>, %arg3: memref<9x512xf32, #tpu.memory_space<vmem>>, %arg4: memref<25x512xf32, #tpu.memory_space<vmem>>, %arg5: memref<9x4x16xbf16, #tpu.memory_space<vmem>>, %arg6: memref<4x1xf32, #tpu.memory_space<vmem>>, %arg7: memref<4x25xf32, #tpu.memory_space<vmem>>, %arg8: memref<4x1xf32, #tpu.memory_space<vmem>>, %arg9: memref<16x8xf32, #tpu.memory_space<vmem>>, %arg10: memref<16x1xf32, #tpu.memory_space<vmem>>, %arg11: memref<37x16xf32, #tpu.memory_space<vmem>>, %arg12: memref<37x1xf32, #tpu.memory_space<vmem>>, %arg13: memref<4x16x72xbf16, #tpu.memory_space<vmem>>, %arg14: memref<16x512xf32, #tpu.memory_space<vmem>>) attributes {dimension_semantics = [#tpu.dimension_semantics<arbitrary>], iteration_bounds = array<i64: 1>, scalar_prefetch = 0 : i64, scratch_operands = 0 : i64, tpu.core_type = #tpu.core_type<tc>, window_params = [{pipeline_mode = #tpu.pipeline_mode<synchronous>, transform_indices = @transform_0, window_bounds = array<i64: 16, 512>}, {pipeline_mode = #tpu.pipeline_mode<synchronous>, transform_indices = @transform_1, window_bounds = array<i64: 2, 512>}, {pipeline_mode = #tpu.pipeline_mode<synchronous>, transform_indices = @transform_2, window_bounds = array<i64: 9, 512>}, {pipeline_mode = #tpu.pipeline_mode<synchronous>, transform_indices = @transform_3, window_bounds = array<i64: 25, 512>}, {pipeline_mode = #tpu.pipeline_mode<synchronous>, transform_indices = @transform_4, window_bounds = array<i64: 9, 4, 16>}, {pipeline_mode = #tpu.pipeline_mode<synchronous>, transform_indices = @transform_5, window_bounds = array<i64: 4, 1>}, {pipeline_mode = #tpu.pipeline_mode<synchronous>, transform_indices = @transform_6, window_bounds = array<i64: 4, 25>}, {pipeline_mode = #tpu.pipeline_mode<synchronous>, transform_indices = @transform_7, window_bounds = array<i64: 4, 1>}, {pipeline_mode = #tpu.pipeline_mode<synchronous>, transform_indices = @transform_8, window_bounds = array<i64: 16, 8>}, {pipeline_mode = #tpu.pipeline_mode<synchronous>, transform_indices = @transform_9, window_bounds = array<i64: 16, 1>}, {pipeline_mode = #tpu.pipeline_mode<synchronous>, transform_indices = @transform_10, window_bounds = array<i64: 37, 16>}, {pipeline_mode = #tpu.pipeline_mode<synchronous>, transform_indices = @transform_11, window_bounds = array<i64: 37, 1>}, {pipeline_mode = #tpu.pipeline_mode<synchronous>, transform_indices = @transform_12, window_bounds = array<i64: 4, 16, 72>}, {pipeline_mode = #tpu.pipeline_mode<synchronous>, transform_indices = @transform_13, window_bounds = array<i64: 16, 512>}]} {
    %c0 = arith.constant 0 : index
    %c0_0 = arith.constant 0 : index
    %0 = vector.load %arg1[%c0, %c0_0] : memref<16x512xf32, #tpu.memory_space<vmem>>, vector<16x512xf32>
    %cst = arith.constant 0.000000e+00 : f32
    %1 = vector.broadcast %cst : f32 to vector<4x512xf32>
    %c17_i32 = arith.constant 17 : i32
    %2 = tpu.dynamic_rotate %0 by %c17_i32 dim 1 : vector<16x512xf32>, i32 -> vector<16x512xf32>
    %c0_1 = arith.constant 0 : index
    %c0_2 = arith.constant 0 : index
    %3 = vector.load %arg3[%c0_1, %c0_2] : memref<9x512xf32, #tpu.memory_space<vmem>>, vector<1x512xf32>
    %4 = vector.broadcast %3 : vector<1x512xf32> to vector<16x512xf32>
    %5 = arith.mulf %2, %4 : vector<16x512xf32>
    %c0_3 = arith.constant 0 : index
    %c0_4 = arith.constant 0 : index
    %c0_5 = arith.constant 0 : index
    %6 = vector.load %arg5[%c0_3, %c0_4, %c0_5] : memref<9x4x16xbf16, #tpu.memory_space<vmem>>, vector<1x4x16xbf16>
    %7 = vector.shape_cast %6 : vector<1x4x16xbf16> to vector<4x16xbf16>
    %8 = arith.truncf %5 : vector<16x512xf32> to vector<16x512xbf16>
    %cst_6 = arith.constant dense<0.000000e+00> : vector<4x512xf32>
    %9 = tpu.matmul %7, %8, %cst_6 {dimension_numbers = #tpu.dot_dimension_numbers<[1], [0], [0], [1], [0, 0, 1, 1], [], []>} : vector<4x16xbf16>, vector<16x512xbf16>, vector<4x512xf32> -> vector<4x512xf32>
    %10 = arith.addf %1, %9 : vector<4x512xf32>
    %c16_i32 = arith.constant 16 : i32
    %11 = tpu.dynamic_rotate %0 by %c16_i32 dim 1 : vector<16x512xf32>, i32 -> vector<16x512xf32>
    %c1 = arith.constant 1 : index
    %c0_7 = arith.constant 0 : index
    %12 = vector.load %arg3[%c1, %c0_7] : memref<9x512xf32, #tpu.memory_space<vmem>>, vector<1x512xf32>
    %13 = vector.broadcast %12 : vector<1x512xf32> to vector<16x512xf32>
    %14 = arith.mulf %11, %13 : vector<16x512xf32>
    %c1_8 = arith.constant 1 : index
    %c0_9 = arith.constant 0 : index
    %c0_10 = arith.constant 0 : index
    %15 = vector.load %arg5[%c1_8, %c0_9, %c0_10] : memref<9x4x16xbf16, #tpu.memory_space<vmem>>, vector<1x4x16xbf16>
    %16 = vector.shape_cast %15 : vector<1x4x16xbf16> to vector<4x16xbf16>
    %17 = arith.truncf %14 : vector<16x512xf32> to vector<16x512xbf16>
    %cst_11 = arith.constant dense<0.000000e+00> : vector<4x512xf32>
    %18 = tpu.matmul %16, %17, %cst_11 {dimension_numbers = #tpu.dot_dimension_numbers<[1], [0], [0], [1], [0, 0, 1, 1], [], []>} : vector<4x16xbf16>, vector<16x512xbf16>, vector<4x512xf32> -> vector<4x512xf32>
    %19 = arith.addf %10, %18 : vector<4x512xf32>
    %c15_i32 = arith.constant 15 : i32
    %20 = tpu.dynamic_rotate %0 by %c15_i32 dim 1 : vector<16x512xf32>, i32 -> vector<16x512xf32>
    %c2 = arith.constant 2 : index
    %c0_12 = arith.constant 0 : index
    %21 = vector.load %arg3[%c2, %c0_12] : memref<9x512xf32, #tpu.memory_space<vmem>>, vector<1x512xf32>
    %22 = vector.broadcast %21 : vector<1x512xf32> to vector<16x512xf32>
    %23 = arith.mulf %20, %22 : vector<16x512xf32>
    %c2_13 = arith.constant 2 : index
    %c0_14 = arith.constant 0 : index
    %c0_15 = arith.constant 0 : index
    %24 = vector.load %arg5[%c2_13, %c0_14, %c0_15] : memref<9x4x16xbf16, #tpu.memory_space<vmem>>, vector<1x4x16xbf16>
    %25 = vector.shape_cast %24 : vector<1x4x16xbf16> to vector<4x16xbf16>
    %26 = arith.truncf %23 : vector<16x512xf32> to vector<16x512xbf16>
    %cst_16 = arith.constant dense<0.000000e+00> : vector<4x512xf32>
    %27 = tpu.matmul %25, %26, %cst_16 {dimension_numbers = #tpu.dot_dimension_numbers<[1], [0], [0], [1], [0, 0, 1, 1], [], []>} : vector<4x16xbf16>, vector<16x512xbf16>, vector<4x512xf32> -> vector<4x512xf32>
    %28 = arith.addf %19, %27 : vector<4x512xf32>
    %c1_i32 = arith.constant 1 : i32
    %29 = tpu.dynamic_rotate %0 by %c1_i32 dim 1 : vector<16x512xf32>, i32 -> vector<16x512xf32>
    %c3 = arith.constant 3 : index
    %c0_17 = arith.constant 0 : index
    %30 = vector.load %arg3[%c3, %c0_17] : memref<9x512xf32, #tpu.memory_space<vmem>>, vector<1x512xf32>
    %31 = vector.broadcast %30 : vector<1x512xf32> to vector<16x512xf32>
    %32 = arith.mulf %29, %31 : vector<16x512xf32>
    %c3_18 = arith.constant 3 : index
    %c0_19 = arith.constant 0 : index
    %c0_20 = arith.constant 0 : index
    %33 = vector.load %arg5[%c3_18, %c0_19, %c0_20] : memref<9x4x16xbf16, #tpu.memory_space<vmem>>, vector<1x4x16xbf16>
    %34 = vector.shape_cast %33 : vector<1x4x16xbf16> to vector<4x16xbf16>
    %35 = arith.truncf %32 : vector<16x512xf32> to vector<16x512xbf16>
    %cst_21 = arith.constant dense<0.000000e+00> : vector<4x512xf32>
    %36 = tpu.matmul %34, %35, %cst_21 {dimension_numbers = #tpu.dot_dimension_numbers<[1], [0], [0], [1], [0, 0, 1, 1], [], []>} : vector<4x16xbf16>, vector<16x512xbf16>, vector<4x512xf32> -> vector<4x512xf32>
    %37 = arith.addf %28, %36 : vector<4x512xf32>
    %c4 = arith.constant 4 : index
    %c0_22 = arith.constant 0 : index
    %c0_23 = arith.constant 0 : index
    %38 = vector.load %arg5[%c4, %c0_22, %c0_23] : memref<9x4x16xbf16, #tpu.memory_space<vmem>>, vector<1x4x16xbf16>
    %39 = vector.shape_cast %38 : vector<1x4x16xbf16> to vector<4x16xbf16>
    %40 = arith.truncf %0 : vector<16x512xf32> to vector<16x512xbf16>
    %cst_24 = arith.constant dense<0.000000e+00> : vector<4x512xf32>
    %41 = tpu.matmul %39, %40, %cst_24 {dimension_numbers = #tpu.dot_dimension_numbers<[1], [0], [0], [1], [0, 0, 1, 1], [], []>} : vector<4x16xbf16>, vector<16x512xbf16>, vector<4x512xf32> -> vector<4x512xf32>
    %42 = arith.addf %37, %41 : vector<4x512xf32>
    %c511_i32 = arith.constant 511 : i32
    %43 = tpu.dynamic_rotate %0 by %c511_i32 dim 1 : vector<16x512xf32>, i32 -> vector<16x512xf32>
    %c5 = arith.constant 5 : index
    %c0_25 = arith.constant 0 : index
    %44 = vector.load %arg3[%c5, %c0_25] : memref<9x512xf32, #tpu.memory_space<vmem>>, vector<1x512xf32>
    %45 = vector.broadcast %44 : vector<1x512xf32> to vector<16x512xf32>
    %46 = arith.mulf %43, %45 : vector<16x512xf32>
    %c5_26 = arith.constant 5 : index
    %c0_27 = arith.constant 0 : index
    %c0_28 = arith.constant 0 : index
    %47 = vector.load %arg5[%c5_26, %c0_27, %c0_28] : memref<9x4x16xbf16, #tpu.memory_space<vmem>>, vector<1x4x16xbf16>
    %48 = vector.shape_cast %47 : vector<1x4x16xbf16> to vector<4x16xbf16>
    %49 = arith.truncf %46 : vector<16x512xf32> to vector<16x512xbf16>
    %cst_29 = arith.constant dense<0.000000e+00> : vector<4x512xf32>
    %50 = tpu.matmul %48, %49, %cst_29 {dimension_numbers = #tpu.dot_dimension_numbers<[1], [0], [0], [1], [0, 0, 1, 1], [], []>} : vector<4x16xbf16>, vector<16x512xbf16>, vector<4x512xf32> -> vector<4x512xf32>
    %51 = arith.addf %42, %50 : vector<4x512xf32>
    %c497_i32 = arith.constant 497 : i32
    %52 = tpu.dynamic_rotate %0 by %c497_i32 dim 1 : vector<16x512xf32>, i32 -> vector<16x512xf32>
    %c6 = arith.constant 6 : index
    %c0_30 = arith.constant 0 : index
    %53 = vector.load %arg3[%c6, %c0_30] : memref<9x512xf32, #tpu.memory_space<vmem>>, vector<1x512xf32>
    %54 = vector.broadcast %53 : vector<1x512xf32> to vector<16x512xf32>
    %55 = arith.mulf %52, %54 : vector<16x512xf32>
    %c6_31 = arith.constant 6 : index
    %c0_32 = arith.constant 0 : index
    %c0_33 = arith.constant 0 : index
    %56 = vector.load %arg5[%c6_31, %c0_32, %c0_33] : memref<9x4x16xbf16, #tpu.memory_space<vmem>>, vector<1x4x16xbf16>
    %57 = vector.shape_cast %56 : vector<1x4x16xbf16> to vector<4x16xbf16>
    %58 = arith.truncf %55 : vector<16x512xf32> to vector<16x512xbf16>
    %cst_34 = arith.constant dense<0.000000e+00> : vector<4x512xf32>
    %59 = tpu.matmul %57, %58, %cst_34 {dimension_numbers = #tpu.dot_dimension_numbers<[1], [0], [0], [1], [0, 0, 1, 1], [], []>} : vector<4x16xbf16>, vector<16x512xbf16>, vector<4x512xf32> -> vector<4x512xf32>
    %60 = arith.addf %51, %59 : vector<4x512xf32>
    %c496_i32 = arith.constant 496 : i32
    %61 = tpu.dynamic_rotate %0 by %c496_i32 dim 1 : vector<16x512xf32>, i32 -> vector<16x512xf32>
    %c7 = arith.constant 7 : index
    %c0_35 = arith.constant 0 : index
    %62 = vector.load %arg3[%c7, %c0_35] : memref<9x512xf32, #tpu.memory_space<vmem>>, vector<1x512xf32>
    %63 = vector.broadcast %62 : vector<1x512xf32> to vector<16x512xf32>
    %64 = arith.mulf %61, %63 : vector<16x512xf32>
    %c7_36 = arith.constant 7 : index
    %c0_37 = arith.constant 0 : index
    %c0_38 = arith.constant 0 : index
    %65 = vector.load %arg5[%c7_36, %c0_37, %c0_38] : memref<9x4x16xbf16, #tpu.memory_space<vmem>>, vector<1x4x16xbf16>
    %66 = vector.shape_cast %65 : vector<1x4x16xbf16> to vector<4x16xbf16>
    %67 = arith.truncf %64 : vector<16x512xf32> to vector<16x512xbf16>
    %cst_39 = arith.constant dense<0.000000e+00> : vector<4x512xf32>
    %68 = tpu.matmul %66, %67, %cst_39 {dimension_numbers = #tpu.dot_dimension_numbers<[1], [0], [0], [1], [0, 0, 1, 1], [], []>} : vector<4x16xbf16>, vector<16x512xbf16>, vector<4x512xf32> -> vector<4x512xf32>
    %69 = arith.addf %60, %68 : vector<4x512xf32>
    %c495_i32 = arith.constant 495 : i32
    %70 = tpu.dynamic_rotate %0 by %c495_i32 dim 1 : vector<16x512xf32>, i32 -> vector<16x512xf32>
    %c8 = arith.constant 8 : index
    %c0_40 = arith.constant 0 : index
    %71 = vector.load %arg3[%c8, %c0_40] : memref<9x512xf32, #tpu.memory_space<vmem>>, vector<1x512xf32>
    %72 = vector.broadcast %71 : vector<1x512xf32> to vector<16x512xf32>
    %73 = arith.mulf %70, %72 : vector<16x512xf32>
    %c8_41 = arith.constant 8 : index
    %c0_42 = arith.constant 0 : index
    %c0_43 = arith.constant 0 : index
    %74 = vector.load %arg5[%c8_41, %c0_42, %c0_43] : memref<9x4x16xbf16, #tpu.memory_space<vmem>>, vector<1x4x16xbf16>
    %75 = vector.shape_cast %74 : vector<1x4x16xbf16> to vector<4x16xbf16>
    %76 = arith.truncf %73 : vector<16x512xf32> to vector<16x512xbf16>
    %cst_44 = arith.constant dense<0.000000e+00> : vector<4x512xf32>
    %77 = tpu.matmul %75, %76, %cst_44 {dimension_numbers = #tpu.dot_dimension_numbers<[1], [0], [0], [1], [0, 0, 1, 1], [], []>} : vector<4x16xbf16>, vector<16x512xbf16>, vector<4x512xf32> -> vector<4x512xf32>
    %78 = arith.addf %69, %77 : vector<4x512xf32>
    %c0_45 = arith.constant 0 : index
    %c0_46 = arith.constant 0 : index
    %79 = vector.load %arg6[%c0_45, %c0_46] : memref<4x1xf32, #tpu.memory_space<vmem>>, vector<4x1xf32>
    %80 = vector.broadcast %79 : vector<4x1xf32> to vector<4x512xf32>
    %81 = arith.addf %78, %80 : vector<4x512xf32>
    %82 = arith.negf %81 : vector<4x512xf32>
    %83 = math.exp %82 : vector<4x512xf32>
    %cst_47 = arith.constant 1.000000e+00 : f32
    %84 = vector.broadcast %cst_47 : f32 to vector<4x512xf32>
    %85 = arith.addf %84, %83 : vector<4x512xf32>
    %86 = arith.divf %84, %85 : vector<4x512xf32>
    %87 = arith.mulf %81, %86 : vector<4x512xf32>
    %c0_48 = arith.constant 0 : index
    %c0_49 = arith.constant 0 : index
    %88 = vector.load %arg7[%c0_48, %c0_49] : memref<4x25xf32, #tpu.memory_space<vmem>>, vector<4x25xf32>
    %cst_50 = arith.constant 0.000000e+00 : f32
    %89 = vector.broadcast %cst_50 : f32 to vector<4x512xf32>
    %c34_i32 = arith.constant 34 : i32
    %90 = tpu.dynamic_rotate %87 by %c34_i32 dim 1 : vector<4x512xf32>, i32 -> vector<4x512xf32>
    %91 = vector.extract_strided_slice %88 {offsets = [0, 0], sizes = [4, 1], strides = [1, 1]} : vector<4x25xf32> to vector<4x1xf32>
    %c0_51 = arith.constant 0 : index
    %c0_52 = arith.constant 0 : index
    %92 = vector.load %arg4[%c0_51, %c0_52] : memref<25x512xf32, #tpu.memory_space<vmem>>, vector<1x512xf32>
    %93 = vector.broadcast %91 : vector<4x1xf32> to vector<4x512xf32>
    %94 = vector.broadcast %92 : vector<1x512xf32> to vector<4x512xf32>
    %95 = arith.mulf %93, %94 : vector<4x512xf32>
    %96 = arith.mulf %90, %95 : vector<4x512xf32>
    %97 = arith.addf %89, %96 : vector<4x512xf32>
    %c33_i32 = arith.constant 33 : i32
    %98 = tpu.dynamic_rotate %87 by %c33_i32 dim 1 : vector<4x512xf32>, i32 -> vector<4x512xf32>
    %99 = vector.extract_strided_slice %88 {offsets = [0, 1], sizes = [4, 1], strides = [1, 1]} : vector<4x25xf32> to vector<4x1xf32>
    %c1_53 = arith.constant 1 : index
    %c0_54 = arith.constant 0 : index
    %100 = vector.load %arg4[%c1_53, %c0_54] : memref<25x512xf32, #tpu.memory_space<vmem>>, vector<1x512xf32>
    %101 = vector.broadcast %99 : vector<4x1xf32> to vector<4x512xf32>
    %102 = vector.broadcast %100 : vector<1x512xf32> to vector<4x512xf32>
    %103 = arith.mulf %101, %102 : vector<4x512xf32>
    %104 = arith.mulf %98, %103 : vector<4x512xf32>
    %105 = arith.addf %97, %104 : vector<4x512xf32>
    %c32_i32 = arith.constant 32 : i32
    %106 = tpu.dynamic_rotate %87 by %c32_i32 dim 1 : vector<4x512xf32>, i32 -> vector<4x512xf32>
    %107 = vector.extract_strided_slice %88 {offsets = [0, 2], sizes = [4, 1], strides = [1, 1]} : vector<4x25xf32> to vector<4x1xf32>
    %c2_55 = arith.constant 2 : index
    %c0_56 = arith.constant 0 : index
    %108 = vector.load %arg4[%c2_55, %c0_56] : memref<25x512xf32, #tpu.memory_space<vmem>>, vector<1x512xf32>
    %109 = vector.broadcast %107 : vector<4x1xf32> to vector<4x512xf32>
    %110 = vector.broadcast %108 : vector<1x512xf32> to vector<4x512xf32>
    %111 = arith.mulf %109, %110 : vector<4x512xf32>
    %112 = arith.mulf %106, %111 : vector<4x512xf32>
    %113 = arith.addf %105, %112 : vector<4x512xf32>
    %c31_i32 = arith.constant 31 : i32
    %114 = tpu.dynamic_rotate %87 by %c31_i32 dim 1 : vector<4x512xf32>, i32 -> vector<4x512xf32>
    %115 = vector.extract_strided_slice %88 {offsets = [0, 3], sizes = [4, 1], strides = [1, 1]} : vector<4x25xf32> to vector<4x1xf32>
    %c3_57 = arith.constant 3 : index
    %c0_58 = arith.constant 0 : index
    %116 = vector.load %arg4[%c3_57, %c0_58] : memref<25x512xf32, #tpu.memory_space<vmem>>, vector<1x512xf32>
    %117 = vector.broadcast %115 : vector<4x1xf32> to vector<4x512xf32>
    %118 = vector.broadcast %116 : vector<1x512xf32> to vector<4x512xf32>
    %119 = arith.mulf %117, %118 : vector<4x512xf32>
    %120 = arith.mulf %114, %119 : vector<4x512xf32>
    %121 = arith.addf %113, %120 : vector<4x512xf32>
    %c30_i32 = arith.constant 30 : i32
    %122 = tpu.dynamic_rotate %87 by %c30_i32 dim 1 : vector<4x512xf32>, i32 -> vector<4x512xf32>
    %123 = vector.extract_strided_slice %88 {offsets = [0, 4], sizes = [4, 1], strides = [1, 1]} : vector<4x25xf32> to vector<4x1xf32>
    %c4_59 = arith.constant 4 : index
    %c0_60 = arith.constant 0 : index
    %124 = vector.load %arg4[%c4_59, %c0_60] : memref<25x512xf32, #tpu.memory_space<vmem>>, vector<1x512xf32>
    %125 = vector.broadcast %123 : vector<4x1xf32> to vector<4x512xf32>
    %126 = vector.broadcast %124 : vector<1x512xf32> to vector<4x512xf32>
    %127 = arith.mulf %125, %126 : vector<4x512xf32>
    %128 = arith.mulf %122, %127 : vector<4x512xf32>
    %129 = arith.addf %121, %128 : vector<4x512xf32>
    %c18_i32 = arith.constant 18 : i32
    %130 = tpu.dynamic_rotate %87 by %c18_i32 dim 1 : vector<4x512xf32>, i32 -> vector<4x512xf32>
    %131 = vector.extract_strided_slice %88 {offsets = [0, 5], sizes = [4, 1], strides = [1, 1]} : vector<4x25xf32> to vector<4x1xf32>
    %c5_61 = arith.constant 5 : index
    %c0_62 = arith.constant 0 : index
    %132 = vector.load %arg4[%c5_61, %c0_62] : memref<25x512xf32, #tpu.memory_space<vmem>>, vector<1x512xf32>
    %133 = vector.broadcast %131 : vector<4x1xf32> to vector<4x512xf32>
    %134 = vector.broadcast %132 : vector<1x512xf32> to vector<4x512xf32>
    %135 = arith.mulf %133, %134 : vector<4x512xf32>
    %136 = arith.mulf %130, %135 : vector<4x512xf32>
    %137 = arith.addf %129, %136 : vector<4x512xf32>
    %c17_i32_63 = arith.constant 17 : i32
    %138 = tpu.dynamic_rotate %87 by %c17_i32_63 dim 1 : vector<4x512xf32>, i32 -> vector<4x512xf32>
    %139 = vector.extract_strided_slice %88 {offsets = [0, 6], sizes = [4, 1], strides = [1, 1]} : vector<4x25xf32> to vector<4x1xf32>
    %c6_64 = arith.constant 6 : index
    %c0_65 = arith.constant 0 : index
    %140 = vector.load %arg4[%c6_64, %c0_65] : memref<25x512xf32, #tpu.memory_space<vmem>>, vector<1x512xf32>
    %141 = vector.broadcast %139 : vector<4x1xf32> to vector<4x512xf32>
    %142 = vector.broadcast %140 : vector<1x512xf32> to vector<4x512xf32>
    %143 = arith.mulf %141, %142 : vector<4x512xf32>
    %144 = arith.mulf %138, %143 : vector<4x512xf32>
    %145 = arith.addf %137, %144 : vector<4x512xf32>
    %c16_i32_66 = arith.constant 16 : i32
    %146 = tpu.dynamic_rotate %87 by %c16_i32_66 dim 1 : vector<4x512xf32>, i32 -> vector<4x512xf32>
    %147 = vector.extract_strided_slice %88 {offsets = [0, 7], sizes = [4, 1], strides = [1, 1]} : vector<4x25xf32> to vector<4x1xf32>
    %c7_67 = arith.constant 7 : index
    %c0_68 = arith.constant 0 : index
    %148 = vector.load %arg4[%c7_67, %c0_68] : memref<25x512xf32, #tpu.memory_space<vmem>>, vector<1x512xf32>
    %149 = vector.broadcast %147 : vector<4x1xf32> to vector<4x512xf32>
    %150 = vector.broadcast %148 : vector<1x512xf32> to vector<4x512xf32>
    %151 = arith.mulf %149, %150 : vector<4x512xf32>
    %152 = arith.mulf %146, %151 : vector<4x512xf32>
    %153 = arith.addf %145, %152 : vector<4x512xf32>
    %c15_i32_69 = arith.constant 15 : i32
    %154 = tpu.dynamic_rotate %87 by %c15_i32_69 dim 1 : vector<4x512xf32>, i32 -> vector<4x512xf32>
    %155 = vector.extract_strided_slice %88 {offsets = [0, 8], sizes = [4, 1], strides = [1, 1]} : vector<4x25xf32> to vector<4x1xf32>
    %c8_70 = arith.constant 8 : index
    %c0_71 = arith.constant 0 : index
    %156 = vector.load %arg4[%c8_70, %c0_71] : memref<25x512xf32, #tpu.memory_space<vmem>>, vector<1x512xf32>
    %157 = vector.broadcast %155 : vector<4x1xf32> to vector<4x512xf32>
    %158 = vector.broadcast %156 : vector<1x512xf32> to vector<4x512xf32>
    %159 = arith.mulf %157, %158 : vector<4x512xf32>
    %160 = arith.mulf %154, %159 : vector<4x512xf32>
    %161 = arith.addf %153, %160 : vector<4x512xf32>
    %c14_i32 = arith.constant 14 : i32
    %162 = tpu.dynamic_rotate %87 by %c14_i32 dim 1 : vector<4x512xf32>, i32 -> vector<4x512xf32>
    %163 = vector.extract_strided_slice %88 {offsets = [0, 9], sizes = [4, 1], strides = [1, 1]} : vector<4x25xf32> to vector<4x1xf32>
    %c9 = arith.constant 9 : index
    %c0_72 = arith.constant 0 : index
    %164 = vector.load %arg4[%c9, %c0_72] : memref<25x512xf32, #tpu.memory_space<vmem>>, vector<1x512xf32>
    %165 = vector.broadcast %163 : vector<4x1xf32> to vector<4x512xf32>
    %166 = vector.broadcast %164 : vector<1x512xf32> to vector<4x512xf32>
    %167 = arith.mulf %165, %166 : vector<4x512xf32>
    %168 = arith.mulf %162, %167 : vector<4x512xf32>
    %169 = arith.addf %161, %168 : vector<4x512xf32>
    %c2_i32 = arith.constant 2 : i32
    %170 = tpu.dynamic_rotate %87 by %c2_i32 dim 1 : vector<4x512xf32>, i32 -> vector<4x512xf32>
    %171 = vector.extract_strided_slice %88 {offsets = [0, 10], sizes = [4, 1], strides = [1, 1]} : vector<4x25xf32> to vector<4x1xf32>
    %c10 = arith.constant 10 : index
    %c0_73 = arith.constant 0 : index
    %172 = vector.load %arg4[%c10, %c0_73] : memref<25x512xf32, #tpu.memory_space<vmem>>, vector<1x512xf32>
    %173 = vector.broadcast %171 : vector<4x1xf32> to vector<4x512xf32>
    %174 = vector.broadcast %172 : vector<1x512xf32> to vector<4x512xf32>
    %175 = arith.mulf %173, %174 : vector<4x512xf32>
    %176 = arith.mulf %170, %175 : vector<4x512xf32>
    %177 = arith.addf %169, %176 : vector<4x512xf32>
    %c1_i32_74 = arith.constant 1 : i32
    %178 = tpu.dynamic_rotate %87 by %c1_i32_74 dim 1 : vector<4x512xf32>, i32 -> vector<4x512xf32>
    %179 = vector.extract_strided_slice %88 {offsets = [0, 11], sizes = [4, 1], strides = [1, 1]} : vector<4x25xf32> to vector<4x1xf32>
    %c11 = arith.constant 11 : index
    %c0_75 = arith.constant 0 : index
    %180 = vector.load %arg4[%c11, %c0_75] : memref<25x512xf32, #tpu.memory_space<vmem>>, vector<1x512xf32>
    %181 = vector.broadcast %179 : vector<4x1xf32> to vector<4x512xf32>
    %182 = vector.broadcast %180 : vector<1x512xf32> to vector<4x512xf32>
    %183 = arith.mulf %181, %182 : vector<4x512xf32>
    %184 = arith.mulf %178, %183 : vector<4x512xf32>
    %185 = arith.addf %177, %184 : vector<4x512xf32>
    %186 = vector.extract_strided_slice %88 {offsets = [0, 12], sizes = [4, 1], strides = [1, 1]} : vector<4x25xf32> to vector<4x1xf32>
    %187 = vector.broadcast %186 : vector<4x1xf32> to vector<4x512xf32>
    %188 = arith.mulf %87, %187 : vector<4x512xf32>
    %189 = arith.addf %185, %188 : vector<4x512xf32>
    %c511_i32_76 = arith.constant 511 : i32
    %190 = tpu.dynamic_rotate %87 by %c511_i32_76 dim 1 : vector<4x512xf32>, i32 -> vector<4x512xf32>
    %191 = vector.extract_strided_slice %88 {offsets = [0, 13], sizes = [4, 1], strides = [1, 1]} : vector<4x25xf32> to vector<4x1xf32>
    %c13 = arith.constant 13 : index
    %c0_77 = arith.constant 0 : index
    %192 = vector.load %arg4[%c13, %c0_77] : memref<25x512xf32, #tpu.memory_space<vmem>>, vector<1x512xf32>
    %193 = vector.broadcast %191 : vector<4x1xf32> to vector<4x512xf32>
    %194 = vector.broadcast %192 : vector<1x512xf32> to vector<4x512xf32>
    %195 = arith.mulf %193, %194 : vector<4x512xf32>
    %196 = arith.mulf %190, %195 : vector<4x512xf32>
    %197 = arith.addf %189, %196 : vector<4x512xf32>
    %c510_i32 = arith.constant 510 : i32
    %198 = tpu.dynamic_rotate %87 by %c510_i32 dim 1 : vector<4x512xf32>, i32 -> vector<4x512xf32>
    %199 = vector.extract_strided_slice %88 {offsets = [0, 14], sizes = [4, 1], strides = [1, 1]} : vector<4x25xf32> to vector<4x1xf32>
    %c14 = arith.constant 14 : index
    %c0_78 = arith.constant 0 : index
    %200 = vector.load %arg4[%c14, %c0_78] : memref<25x512xf32, #tpu.memory_space<vmem>>, vector<1x512xf32>
    %201 = vector.broadcast %199 : vector<4x1xf32> to vector<4x512xf32>
    %202 = vector.broadcast %200 : vector<1x512xf32> to vector<4x512xf32>
    %203 = arith.mulf %201, %202 : vector<4x512xf32>
    %204 = arith.mulf %198, %203 : vector<4x512xf32>
    %205 = arith.addf %197, %204 : vector<4x512xf32>
    %c498_i32 = arith.constant 498 : i32
    %206 = tpu.dynamic_rotate %87 by %c498_i32 dim 1 : vector<4x512xf32>, i32 -> vector<4x512xf32>
    %207 = vector.extract_strided_slice %88 {offsets = [0, 15], sizes = [4, 1], strides = [1, 1]} : vector<4x25xf32> to vector<4x1xf32>
    %c15 = arith.constant 15 : index
    %c0_79 = arith.constant 0 : index
    %208 = vector.load %arg4[%c15, %c0_79] : memref<25x512xf32, #tpu.memory_space<vmem>>, vector<1x512xf32>
    %209 = vector.broadcast %207 : vector<4x1xf32> to vector<4x512xf32>
    %210 = vector.broadcast %208 : vector<1x512xf32> to vector<4x512xf32>
    %211 = arith.mulf %209, %210 : vector<4x512xf32>
    %212 = arith.mulf %206, %211 : vector<4x512xf32>
    %213 = arith.addf %205, %212 : vector<4x512xf32>
    %c497_i32_80 = arith.constant 497 : i32
    %214 = tpu.dynamic_rotate %87 by %c497_i32_80 dim 1 : vector<4x512xf32>, i32 -> vector<4x512xf32>
    %215 = vector.extract_strided_slice %88 {offsets = [0, 16], sizes = [4, 1], strides = [1, 1]} : vector<4x25xf32> to vector<4x1xf32>
    %c16 = arith.constant 16 : index
    %c0_81 = arith.constant 0 : index
    %216 = vector.load %arg4[%c16, %c0_81] : memref<25x512xf32, #tpu.memory_space<vmem>>, vector<1x512xf32>
    %217 = vector.broadcast %215 : vector<4x1xf32> to vector<4x512xf32>
    %218 = vector.broadcast %216 : vector<1x512xf32> to vector<4x512xf32>
    %219 = arith.mulf %217, %218 : vector<4x512xf32>
    %220 = arith.mulf %214, %219 : vector<4x512xf32>
    %221 = arith.addf %213, %220 : vector<4x512xf32>
    %c496_i32_82 = arith.constant 496 : i32
    %222 = tpu.dynamic_rotate %87 by %c496_i32_82 dim 1 : vector<4x512xf32>, i32 -> vector<4x512xf32>
    %223 = vector.extract_strided_slice %88 {offsets = [0, 17], sizes = [4, 1], strides = [1, 1]} : vector<4x25xf32> to vector<4x1xf32>
    %c17 = arith.constant 17 : index
    %c0_83 = arith.constant 0 : index
    %224 = vector.load %arg4[%c17, %c0_83] : memref<25x512xf32, #tpu.memory_space<vmem>>, vector<1x512xf32>
    %225 = vector.broadcast %223 : vector<4x1xf32> to vector<4x512xf32>
    %226 = vector.broadcast %224 : vector<1x512xf32> to vector<4x512xf32>
    %227 = arith.mulf %225, %226 : vector<4x512xf32>
    %228 = arith.mulf %222, %227 : vector<4x512xf32>
    %229 = arith.addf %221, %228 : vector<4x512xf32>
    %c495_i32_84 = arith.constant 495 : i32
    %230 = tpu.dynamic_rotate %87 by %c495_i32_84 dim 1 : vector<4x512xf32>, i32 -> vector<4x512xf32>
    %231 = vector.extract_strided_slice %88 {offsets = [0, 18], sizes = [4, 1], strides = [1, 1]} : vector<4x25xf32> to vector<4x1xf32>
    %c18 = arith.constant 18 : index
    %c0_85 = arith.constant 0 : index
    %232 = vector.load %arg4[%c18, %c0_85] : memref<25x512xf32, #tpu.memory_space<vmem>>, vector<1x512xf32>
    %233 = vector.broadcast %231 : vector<4x1xf32> to vector<4x512xf32>
    %234 = vector.broadcast %232 : vector<1x512xf32> to vector<4x512xf32>
    %235 = arith.mulf %233, %234 : vector<4x512xf32>
    %236 = arith.mulf %230, %235 : vector<4x512xf32>
    %237 = arith.addf %229, %236 : vector<4x512xf32>
    %c494_i32 = arith.constant 494 : i32
    %238 = tpu.dynamic_rotate %87 by %c494_i32 dim 1 : vector<4x512xf32>, i32 -> vector<4x512xf32>
    %239 = vector.extract_strided_slice %88 {offsets = [0, 19], sizes = [4, 1], strides = [1, 1]} : vector<4x25xf32> to vector<4x1xf32>
    %c19 = arith.constant 19 : index
    %c0_86 = arith.constant 0 : index
    %240 = vector.load %arg4[%c19, %c0_86] : memref<25x512xf32, #tpu.memory_space<vmem>>, vector<1x512xf32>
    %241 = vector.broadcast %239 : vector<4x1xf32> to vector<4x512xf32>
    %242 = vector.broadcast %240 : vector<1x512xf32> to vector<4x512xf32>
    %243 = arith.mulf %241, %242 : vector<4x512xf32>
    %244 = arith.mulf %238, %243 : vector<4x512xf32>
    %245 = arith.addf %237, %244 : vector<4x512xf32>
    %c482_i32 = arith.constant 482 : i32
    %246 = tpu.dynamic_rotate %87 by %c482_i32 dim 1 : vector<4x512xf32>, i32 -> vector<4x512xf32>
    %247 = vector.extract_strided_slice %88 {offsets = [0, 20], sizes = [4, 1], strides = [1, 1]} : vector<4x25xf32> to vector<4x1xf32>
    %c20 = arith.constant 20 : index
    %c0_87 = arith.constant 0 : index
    %248 = vector.load %arg4[%c20, %c0_87] : memref<25x512xf32, #tpu.memory_space<vmem>>, vector<1x512xf32>
    %249 = vector.broadcast %247 : vector<4x1xf32> to vector<4x512xf32>
    %250 = vector.broadcast %248 : vector<1x512xf32> to vector<4x512xf32>
    %251 = arith.mulf %249, %250 : vector<4x512xf32>
    %252 = arith.mulf %246, %251 : vector<4x512xf32>
    %253 = arith.addf %245, %252 : vector<4x512xf32>
    %c481_i32 = arith.constant 481 : i32
    %254 = tpu.dynamic_rotate %87 by %c481_i32 dim 1 : vector<4x512xf32>, i32 -> vector<4x512xf32>
    %255 = vector.extract_strided_slice %88 {offsets = [0, 21], sizes = [4, 1], strides = [1, 1]} : vector<4x25xf32> to vector<4x1xf32>
    %c21 = arith.constant 21 : index
    %c0_88 = arith.constant 0 : index
    %256 = vector.load %arg4[%c21, %c0_88] : memref<25x512xf32, #tpu.memory_space<vmem>>, vector<1x512xf32>
    %257 = vector.broadcast %255 : vector<4x1xf32> to vector<4x512xf32>
    %258 = vector.broadcast %256 : vector<1x512xf32> to vector<4x512xf32>
    %259 = arith.mulf %257, %258 : vector<4x512xf32>
    %260 = arith.mulf %254, %259 : vector<4x512xf32>
    %261 = arith.addf %253, %260 : vector<4x512xf32>
    %c480_i32 = arith.constant 480 : i32
    %262 = tpu.dynamic_rotate %87 by %c480_i32 dim 1 : vector<4x512xf32>, i32 -> vector<4x512xf32>
    %263 = vector.extract_strided_slice %88 {offsets = [0, 22], sizes = [4, 1], strides = [1, 1]} : vector<4x25xf32> to vector<4x1xf32>
    %c22 = arith.constant 22 : index
    %c0_89 = arith.constant 0 : index
    %264 = vector.load %arg4[%c22, %c0_89] : memref<25x512xf32, #tpu.memory_space<vmem>>, vector<1x512xf32>
    %265 = vector.broadcast %263 : vector<4x1xf32> to vector<4x512xf32>
    %266 = vector.broadcast %264 : vector<1x512xf32> to vector<4x512xf32>
    %267 = arith.mulf %265, %266 : vector<4x512xf32>
    %268 = arith.mulf %262, %267 : vector<4x512xf32>
    %269 = arith.addf %261, %268 : vector<4x512xf32>
    %c479_i32 = arith.constant 479 : i32
    %270 = tpu.dynamic_rotate %87 by %c479_i32 dim 1 : vector<4x512xf32>, i32 -> vector<4x512xf32>
    %271 = vector.extract_strided_slice %88 {offsets = [0, 23], sizes = [4, 1], strides = [1, 1]} : vector<4x25xf32> to vector<4x1xf32>
    %c23 = arith.constant 23 : index
    %c0_90 = arith.constant 0 : index
    %272 = vector.load %arg4[%c23, %c0_90] : memref<25x512xf32, #tpu.memory_space<vmem>>, vector<1x512xf32>
    %273 = vector.broadcast %271 : vector<4x1xf32> to vector<4x512xf32>
    %274 = vector.broadcast %272 : vector<1x512xf32> to vector<4x512xf32>
    %275 = arith.mulf %273, %274 : vector<4x512xf32>
    %276 = arith.mulf %270, %275 : vector<4x512xf32>
    %277 = arith.addf %269, %276 : vector<4x512xf32>
    %c478_i32 = arith.constant 478 : i32
    %278 = tpu.dynamic_rotate %87 by %c478_i32 dim 1 : vector<4x512xf32>, i32 -> vector<4x512xf32>
    %279 = vector.extract_strided_slice %88 {offsets = [0, 24], sizes = [4, 1], strides = [1, 1]} : vector<4x25xf32> to vector<4x1xf32>
    %c24 = arith.constant 24 : index
    %c0_91 = arith.constant 0 : index
    %280 = vector.load %arg4[%c24, %c0_91] : memref<25x512xf32, #tpu.memory_space<vmem>>, vector<1x512xf32>
    %281 = vector.broadcast %279 : vector<4x1xf32> to vector<4x512xf32>
    %282 = vector.broadcast %280 : vector<1x512xf32> to vector<4x512xf32>
    %283 = arith.mulf %281, %282 : vector<4x512xf32>
    %284 = arith.mulf %278, %283 : vector<4x512xf32>
    %285 = arith.addf %277, %284 : vector<4x512xf32>
    %c0_92 = arith.constant 0 : index
    %c0_93 = arith.constant 0 : index
    %286 = vector.load %arg8[%c0_92, %c0_93] : memref<4x1xf32, #tpu.memory_space<vmem>>, vector<4x1xf32>
    %287 = vector.broadcast %286 : vector<4x1xf32> to vector<4x512xf32>
    %288 = arith.addf %285, %287 : vector<4x512xf32>
    %289 = arith.negf %288 : vector<4x512xf32>
    %290 = math.exp %289 : vector<4x512xf32>
    %cst_94 = arith.constant 1.000000e+00 : f32
    %291 = vector.broadcast %cst_94 : f32 to vector<4x512xf32>
    %292 = arith.addf %291, %290 : vector<4x512xf32>
    %293 = arith.divf %291, %292 : vector<4x512xf32>
    %294 = arith.mulf %288, %293 : vector<4x512xf32>
    %295 = tpu.concatenate %87, %294 in 0 : vector<4x512xf32>, vector<4x512xf32> -> vector<8x512xf32>
    %c0_95 = arith.constant 0 : index
    %c0_96 = arith.constant 0 : index
    %296 = vector.load %arg2[%c0_95, %c0_96] : memref<2x512xf32, #tpu.memory_space<vmem>>, vector<1x512xf32>
    %297 = vector.broadcast %296 : vector<1x512xf32> to vector<8x512xf32>
    %298 = arith.mulf %295, %297 : vector<8x512xf32>
    %cst_97 = arith.constant dense<0.000000e+00> : vector<8xf32>
    %299 = vector.multi_reduction <add>, %298, %cst_97 [1] : vector<8x512xf32> to vector<8xf32>
    %300 = vector.shape_cast %299 : vector<8xf32> to vector<8x1xf32>
    %cst_98 = arith.constant 3.906250e-03 : f32
    %301 = vector.broadcast %cst_98 : f32 to vector<8x1xf32>
    %302 = arith.mulf %300, %301 : vector<8x1xf32>
    %c0_99 = arith.constant 0 : index
    %c0_100 = arith.constant 0 : index
    %303 = vector.load %arg9[%c0_99, %c0_100] : memref<16x8xf32, #tpu.memory_space<vmem>>, vector<16x8xf32>
    %cst_101 = arith.constant dense<0.000000e+00> : vector<16x1xf32>
    %304 = tpu.matmul %303, %302, %cst_101 {dimension_numbers = #tpu.dot_dimension_numbers<[1], [0], [0], [1], [0, 0, 1, 1], [], []>} : vector<16x8xf32>, vector<8x1xf32>, vector<16x1xf32> -> vector<16x1xf32>
    %c0_102 = arith.constant 0 : index
    %c0_103 = arith.constant 0 : index
    %305 = vector.load %arg10[%c0_102, %c0_103] : memref<16x1xf32, #tpu.memory_space<vmem>>, vector<16x1xf32>
    %306 = arith.addf %304, %305 : vector<16x1xf32>
    %cst_104 = arith.constant 0.000000e+00 : f32
    %307 = vector.broadcast %cst_104 : f32 to vector<16x1xf32>
    %308 = arith.maximumf %306, %307 : vector<16x1xf32>
    %c0_105 = arith.constant 0 : index
    %c0_106 = arith.constant 0 : index
    %309 = vector.load %arg11[%c0_105, %c0_106] : memref<37x16xf32, #tpu.memory_space<vmem>>, vector<37x16xf32>
    %cst_107 = arith.constant dense<0.000000e+00> : vector<37x1xf32>
    %310 = tpu.matmul %309, %308, %cst_107 {dimension_numbers = #tpu.dot_dimension_numbers<[1], [0], [0], [1], [0, 0, 1, 1], [], []>} : vector<37x16xf32>, vector<16x1xf32>, vector<37x1xf32> -> vector<37x1xf32>
    %c0_108 = arith.constant 0 : index
    %c0_109 = arith.constant 0 : index
    %311 = vector.load %arg12[%c0_108, %c0_109] : memref<37x1xf32, #tpu.memory_space<vmem>>, vector<37x1xf32>
    %312 = arith.addf %310, %311 : vector<37x1xf32>
    %313 = vector.extract_strided_slice %312 {offsets = [0, 0], sizes = [8, 1], strides = [1, 1]} : vector<37x1xf32> to vector<8x1xf32>
    %314 = arith.negf %313 : vector<8x1xf32>
    %315 = math.exp %314 : vector<8x1xf32>
    %cst_110 = arith.constant 1.000000e+00 : f32
    %316 = vector.broadcast %cst_110 : f32 to vector<8x1xf32>
    %317 = arith.addf %316, %315 : vector<8x1xf32>
    %318 = arith.divf %316, %317 : vector<8x1xf32>
    %319 = vector.extract_strided_slice %312 {offsets = [8, 0], sizes = [16, 1], strides = [1, 1]} : vector<37x1xf32> to vector<16x1xf32>
    %320 = arith.negf %319 : vector<16x1xf32>
    %321 = math.exp %320 : vector<16x1xf32>
    %cst_111 = arith.constant 1.000000e+00 : f32
    %322 = vector.broadcast %cst_111 : f32 to vector<16x1xf32>
    %323 = arith.addf %322, %321 : vector<16x1xf32>
    %324 = arith.divf %322, %323 : vector<16x1xf32>
    %325 = vector.extract_strided_slice %312 {offsets = [24, 0], sizes = [9, 1], strides = [1, 1]} : vector<37x1xf32> to vector<9x1xf32>
    %326 = arith.negf %325 : vector<9x1xf32>
    %327 = math.exp %326 : vector<9x1xf32>
    %cst_112 = arith.constant 1.000000e+00 : f32
    %328 = vector.broadcast %cst_112 : f32 to vector<9x1xf32>
    %329 = arith.addf %328, %327 : vector<9x1xf32>
    %330 = arith.divf %328, %329 : vector<9x1xf32>
    %331 = vector.extract_strided_slice %312 {offsets = [33, 0], sizes = [4, 1], strides = [1, 1]} : vector<37x1xf32> to vector<4x1xf32>
    %cst_113 = arith.constant dense<0xFF800000> : vector<1xf32>
    %332 = vector.multi_reduction <maximumf>, %331, %cst_113 [0] : vector<4x1xf32> to vector<1xf32>
    %333 = vector.shape_cast %332 : vector<1xf32> to vector<1x1xf32>
    %334 = vector.broadcast %333 : vector<1x1xf32> to vector<4x1xf32>
    %335 = arith.subf %331, %334 : vector<4x1xf32>
    %336 = math.exp %335 : vector<4x1xf32>
    %cst_114 = arith.constant dense<0.000000e+00> : vector<1xf32>
    %337 = vector.multi_reduction <add>, %336, %cst_114 [0] : vector<4x1xf32> to vector<1xf32>
    %338 = vector.shape_cast %337 : vector<1xf32> to vector<1x1xf32>
    %339 = vector.broadcast %338 : vector<1x1xf32> to vector<4x1xf32>
    %340 = arith.divf %336, %339 : vector<4x1xf32>
    %c1_115 = arith.constant 1 : index
    %c0_116 = arith.constant 0 : index
    %341 = vector.load %arg2[%c1_115, %c0_116] : memref<2x512xf32, #tpu.memory_space<vmem>>, vector<1x512xf32>
    %342 = vector.broadcast %341 : vector<1x512xf32> to vector<8x512xf32>
    %343 = arith.mulf %295, %342 : vector<8x512xf32>
    %cst_117 = arith.constant dense<0.000000e+00> : vector<8xf32>
    %344 = vector.multi_reduction <add>, %343, %cst_117 [1] : vector<8x512xf32> to vector<8xf32>
    %345 = vector.shape_cast %344 : vector<8xf32> to vector<8x1xf32>
    %cst_118 = arith.constant 3.906250e-03 : f32
    %346 = vector.broadcast %cst_118 : f32 to vector<8x1xf32>
    %347 = arith.mulf %345, %346 : vector<8x1xf32>
    %c0_119 = arith.constant 0 : index
    %c0_120 = arith.constant 0 : index
    %348 = vector.load %arg9[%c0_119, %c0_120] : memref<16x8xf32, #tpu.memory_space<vmem>>, vector<16x8xf32>
    %cst_121 = arith.constant dense<0.000000e+00> : vector<16x1xf32>
    %349 = tpu.matmul %348, %347, %cst_121 {dimension_numbers = #tpu.dot_dimension_numbers<[1], [0], [0], [1], [0, 0, 1, 1], [], []>} : vector<16x8xf32>, vector<8x1xf32>, vector<16x1xf32> -> vector<16x1xf32>
    %c0_122 = arith.constant 0 : index
    %c0_123 = arith.constant 0 : index
    %350 = vector.load %arg10[%c0_122, %c0_123] : memref<16x1xf32, #tpu.memory_space<vmem>>, vector<16x1xf32>
    %351 = arith.addf %349, %350 : vector<16x1xf32>
    %cst_124 = arith.constant 0.000000e+00 : f32
    %352 = vector.broadcast %cst_124 : f32 to vector<16x1xf32>
    %353 = arith.maximumf %351, %352 : vector<16x1xf32>
    %c0_125 = arith.constant 0 : index
    %c0_126 = arith.constant 0 : index
    %354 = vector.load %arg11[%c0_125, %c0_126] : memref<37x16xf32, #tpu.memory_space<vmem>>, vector<37x16xf32>
    %cst_127 = arith.constant dense<0.000000e+00> : vector<37x1xf32>
    %355 = tpu.matmul %354, %353, %cst_127 {dimension_numbers = #tpu.dot_dimension_numbers<[1], [0], [0], [1], [0, 0, 1, 1], [], []>} : vector<37x16xf32>, vector<16x1xf32>, vector<37x1xf32> -> vector<37x1xf32>
    %c0_128 = arith.constant 0 : index
    %c0_129 = arith.constant 0 : index
    %356 = vector.load %arg12[%c0_128, %c0_129] : memref<37x1xf32, #tpu.memory_space<vmem>>, vector<37x1xf32>
    %357 = arith.addf %355, %356 : vector<37x1xf32>
    %358 = vector.extract_strided_slice %357 {offsets = [0, 0], sizes = [8, 1], strides = [1, 1]} : vector<37x1xf32> to vector<8x1xf32>
    %359 = arith.negf %358 : vector<8x1xf32>
    %360 = math.exp %359 : vector<8x1xf32>
    %cst_130 = arith.constant 1.000000e+00 : f32
    %361 = vector.broadcast %cst_130 : f32 to vector<8x1xf32>
    %362 = arith.addf %361, %360 : vector<8x1xf32>
    %363 = arith.divf %361, %362 : vector<8x1xf32>
    %364 = vector.extract_strided_slice %357 {offsets = [8, 0], sizes = [16, 1], strides = [1, 1]} : vector<37x1xf32> to vector<16x1xf32>
    %365 = arith.negf %364 : vector<16x1xf32>
    %366 = math.exp %365 : vector<16x1xf32>
    %cst_131 = arith.constant 1.000000e+00 : f32
    %367 = vector.broadcast %cst_131 : f32 to vector<16x1xf32>
    %368 = arith.addf %367, %366 : vector<16x1xf32>
    %369 = arith.divf %367, %368 : vector<16x1xf32>
    %370 = vector.extract_strided_slice %357 {offsets = [24, 0], sizes = [9, 1], strides = [1, 1]} : vector<37x1xf32> to vector<9x1xf32>
    %371 = arith.negf %370 : vector<9x1xf32>
    %372 = math.exp %371 : vector<9x1xf32>
    %cst_132 = arith.constant 1.000000e+00 : f32
    %373 = vector.broadcast %cst_132 : f32 to vector<9x1xf32>
    %374 = arith.addf %373, %372 : vector<9x1xf32>
    %375 = arith.divf %373, %374 : vector<9x1xf32>
    %376 = vector.extract_strided_slice %357 {offsets = [33, 0], sizes = [4, 1], strides = [1, 1]} : vector<37x1xf32> to vector<4x1xf32>
    %cst_133 = arith.constant dense<0xFF800000> : vector<1xf32>
    %377 = vector.multi_reduction <maximumf>, %376, %cst_133 [0] : vector<4x1xf32> to vector<1xf32>
    %378 = vector.shape_cast %377 : vector<1xf32> to vector<1x1xf32>
    %379 = vector.broadcast %378 : vector<1x1xf32> to vector<4x1xf32>
    %380 = arith.subf %376, %379 : vector<4x1xf32>
    %381 = math.exp %380 : vector<4x1xf32>
    %cst_134 = arith.constant dense<0.000000e+00> : vector<1xf32>
    %382 = vector.multi_reduction <add>, %381, %cst_134 [0] : vector<4x1xf32> to vector<1xf32>
    %383 = vector.shape_cast %382 : vector<1xf32> to vector<1x1xf32>
    %384 = vector.broadcast %383 : vector<1x1xf32> to vector<4x1xf32>
    %385 = arith.divf %381, %384 : vector<4x1xf32>
    %386 = vector.broadcast %318 : vector<8x1xf32> to vector<8x512xf32>
    %387 = vector.broadcast %296 : vector<1x512xf32> to vector<8x512xf32>
    %388 = arith.mulf %386, %387 : vector<8x512xf32>
    %389 = vector.broadcast %363 : vector<8x1xf32> to vector<8x512xf32>
    %390 = vector.broadcast %341 : vector<1x512xf32> to vector<8x512xf32>
    %391 = arith.mulf %389, %390 : vector<8x512xf32>
    %392 = arith.addf %388, %391 : vector<8x512xf32>
    %393 = arith.mulf %295, %392 : vector<8x512xf32>
    %c0_135 = arith.constant 0 : index
    %c0_136 = arith.constant 0 : index
    %c0_137 = arith.constant 0 : index
    %394 = vector.load %arg13[%c0_135, %c0_136, %c0_137] : memref<4x16x72xbf16, #tpu.memory_space<vmem>>, vector<1x16x72xbf16>
    %395 = vector.shape_cast %394 : vector<1x16x72xbf16> to vector<16x72xbf16>
    %396 = vector.extract_strided_slice %340 {offsets = [0, 0], sizes = [1, 1], strides = [1, 1]} : vector<4x1xf32> to vector<1x1xf32>
    %397 = arith.extf %395 : vector<16x72xbf16> to vector<16x72xf32>
    %398 = vector.broadcast %396 : vector<1x1xf32> to vector<16x72xf32>
    %399 = arith.mulf %397, %398 : vector<16x72xf32>
    %c1_138 = arith.constant 1 : index
    %c0_139 = arith.constant 0 : index
    %c0_140 = arith.constant 0 : index
    %400 = vector.load %arg13[%c1_138, %c0_139, %c0_140] : memref<4x16x72xbf16, #tpu.memory_space<vmem>>, vector<1x16x72xbf16>
    %401 = vector.shape_cast %400 : vector<1x16x72xbf16> to vector<16x72xbf16>
    %402 = vector.extract_strided_slice %340 {offsets = [1, 0], sizes = [1, 1], strides = [1, 1]} : vector<4x1xf32> to vector<1x1xf32>
    %403 = arith.extf %401 : vector<16x72xbf16> to vector<16x72xf32>
    %404 = vector.broadcast %402 : vector<1x1xf32> to vector<16x72xf32>
    %405 = arith.mulf %403, %404 : vector<16x72xf32>
    %406 = arith.addf %399, %405 : vector<16x72xf32>
    %c2_141 = arith.constant 2 : index
    %c0_142 = arith.constant 0 : index
    %c0_143 = arith.constant 0 : index
    %407 = vector.load %arg13[%c2_141, %c0_142, %c0_143] : memref<4x16x72xbf16, #tpu.memory_space<vmem>>, vector<1x16x72xbf16>
    %408 = vector.shape_cast %407 : vector<1x16x72xbf16> to vector<16x72xbf16>
    %409 = vector.extract_strided_slice %340 {offsets = [2, 0], sizes = [1, 1], strides = [1, 1]} : vector<4x1xf32> to vector<1x1xf32>
    %410 = arith.extf %408 : vector<16x72xbf16> to vector<16x72xf32>
    %411 = vector.broadcast %409 : vector<1x1xf32> to vector<16x72xf32>
    %412 = arith.mulf %410, %411 : vector<16x72xf32>
    %413 = arith.addf %406, %412 : vector<16x72xf32>
    %c3_144 = arith.constant 3 : index
    %c0_145 = arith.constant 0 : index
    %c0_146 = arith.constant 0 : index
    %414 = vector.load %arg13[%c3_144, %c0_145, %c0_146] : memref<4x16x72xbf16, #tpu.memory_space<vmem>>, vector<1x16x72xbf16>
    %415 = vector.shape_cast %414 : vector<1x16x72xbf16> to vector<16x72xbf16>
    %416 = vector.extract_strided_slice %340 {offsets = [3, 0], sizes = [1, 1], strides = [1, 1]} : vector<4x1xf32> to vector<1x1xf32>
    %417 = arith.extf %415 : vector<16x72xbf16> to vector<16x72xf32>
    %418 = vector.broadcast %416 : vector<1x1xf32> to vector<16x72xf32>
    %419 = arith.mulf %417, %418 : vector<16x72xf32>
    %420 = arith.addf %413, %419 : vector<16x72xf32>
    %c0_147 = arith.constant 0 : index
    %c0_148 = arith.constant 0 : index
    %c0_149 = arith.constant 0 : index
    %421 = vector.load %arg13[%c0_147, %c0_148, %c0_149] : memref<4x16x72xbf16, #tpu.memory_space<vmem>>, vector<1x16x72xbf16>
    %422 = vector.shape_cast %421 : vector<1x16x72xbf16> to vector<16x72xbf16>
    %423 = vector.extract_strided_slice %385 {offsets = [0, 0], sizes = [1, 1], strides = [1, 1]} : vector<4x1xf32> to vector<1x1xf32>
    %424 = arith.extf %422 : vector<16x72xbf16> to vector<16x72xf32>
    %425 = vector.broadcast %423 : vector<1x1xf32> to vector<16x72xf32>
    %426 = arith.mulf %424, %425 : vector<16x72xf32>
    %c1_150 = arith.constant 1 : index
    %c0_151 = arith.constant 0 : index
    %c0_152 = arith.constant 0 : index
    %427 = vector.load %arg13[%c1_150, %c0_151, %c0_152] : memref<4x16x72xbf16, #tpu.memory_space<vmem>>, vector<1x16x72xbf16>
    %428 = vector.shape_cast %427 : vector<1x16x72xbf16> to vector<16x72xbf16>
    %429 = vector.extract_strided_slice %385 {offsets = [1, 0], sizes = [1, 1], strides = [1, 1]} : vector<4x1xf32> to vector<1x1xf32>
    %430 = arith.extf %428 : vector<16x72xbf16> to vector<16x72xf32>
    %431 = vector.broadcast %429 : vector<1x1xf32> to vector<16x72xf32>
    %432 = arith.mulf %430, %431 : vector<16x72xf32>
    %433 = arith.addf %426, %432 : vector<16x72xf32>
    %c2_153 = arith.constant 2 : index
    %c0_154 = arith.constant 0 : index
    %c0_155 = arith.constant 0 : index
    %434 = vector.load %arg13[%c2_153, %c0_154, %c0_155] : memref<4x16x72xbf16, #tpu.memory_space<vmem>>, vector<1x16x72xbf16>
    %435 = vector.shape_cast %434 : vector<1x16x72xbf16> to vector<16x72xbf16>
    %436 = vector.extract_strided_slice %385 {offsets = [2, 0], sizes = [1, 1], strides = [1, 1]} : vector<4x1xf32> to vector<1x1xf32>
    %437 = arith.extf %435 : vector<16x72xbf16> to vector<16x72xf32>
    %438 = vector.broadcast %436 : vector<1x1xf32> to vector<16x72xf32>
    %439 = arith.mulf %437, %438 : vector<16x72xf32>
    %440 = arith.addf %433, %439 : vector<16x72xf32>
    %c3_156 = arith.constant 3 : index
    %c0_157 = arith.constant 0 : index
    %c0_158 = arith.constant 0 : index
    %441 = vector.load %arg13[%c3_156, %c0_157, %c0_158] : memref<4x16x72xbf16, #tpu.memory_space<vmem>>, vector<1x16x72xbf16>
    %442 = vector.shape_cast %441 : vector<1x16x72xbf16> to vector<16x72xbf16>
    %443 = vector.extract_strided_slice %385 {offsets = [3, 0], sizes = [1, 1], strides = [1, 1]} : vector<4x1xf32> to vector<1x1xf32>
    %444 = arith.extf %442 : vector<16x72xbf16> to vector<16x72xf32>
    %445 = vector.broadcast %443 : vector<1x1xf32> to vector<16x72xf32>
    %446 = arith.mulf %444, %445 : vector<16x72xf32>
    %447 = arith.addf %440, %446 : vector<16x72xf32>
    %cst_159 = arith.constant 0.000000e+00 : f32
    %448 = vector.broadcast %cst_159 : f32 to vector<16x256xf32>
    %cst_160 = arith.constant 0.000000e+00 : f32
    %449 = vector.broadcast %cst_160 : f32 to vector<16x256xf32>
    %c17_i32_161 = arith.constant 17 : i32
    %450 = tpu.dynamic_rotate %393 by %c17_i32_161 dim 1 : vector<8x512xf32>, i32 -> vector<8x512xf32>
    %c0_162 = arith.constant 0 : index
    %c0_163 = arith.constant 0 : index
    %451 = vector.load %arg3[%c0_162, %c0_163] : memref<9x512xf32, #tpu.memory_space<vmem>>, vector<1x512xf32>
    %452 = vector.broadcast %451 : vector<1x512xf32> to vector<8x512xf32>
    %453 = arith.mulf %450, %452 : vector<8x512xf32>
    %454 = arith.truncf %453 : vector<8x512xf32> to vector<8x512xbf16>
    %455 = vector.extract_strided_slice %420 {offsets = [0, 0], sizes = [16, 8], strides = [1, 1]} : vector<16x72xf32> to vector<16x8xf32>
    %456 = vector.extract_strided_slice %330 {offsets = [0, 0], sizes = [1, 1], strides = [1, 1]} : vector<9x1xf32> to vector<1x1xf32>
    %457 = vector.broadcast %456 : vector<1x1xf32> to vector<16x8xf32>
    %458 = arith.mulf %455, %457 : vector<16x8xf32>
    %459 = arith.truncf %458 : vector<16x8xf32> to vector<16x8xbf16>
    %460 = vector.extract_strided_slice %454 {offsets = [0, 0], sizes = [8, 256], strides = [1, 1]} : vector<8x512xbf16> to vector<8x256xbf16>
    %cst_164 = arith.constant dense<0.000000e+00> : vector<16x256xf32>
    %461 = tpu.matmul %459, %460, %cst_164 {dimension_numbers = #tpu.dot_dimension_numbers<[1], [0], [0], [1], [0, 0, 1, 1], [], []>} : vector<16x8xbf16>, vector<8x256xbf16>, vector<16x256xf32> -> vector<16x256xf32>
    %462 = arith.addf %448, %461 : vector<16x256xf32>
    %463 = vector.extract_strided_slice %447 {offsets = [0, 0], sizes = [16, 8], strides = [1, 1]} : vector<16x72xf32> to vector<16x8xf32>
    %464 = vector.extract_strided_slice %375 {offsets = [0, 0], sizes = [1, 1], strides = [1, 1]} : vector<9x1xf32> to vector<1x1xf32>
    %465 = vector.broadcast %464 : vector<1x1xf32> to vector<16x8xf32>
    %466 = arith.mulf %463, %465 : vector<16x8xf32>
    %467 = arith.truncf %466 : vector<16x8xf32> to vector<16x8xbf16>
    %468 = vector.extract_strided_slice %454 {offsets = [0, 256], sizes = [8, 256], strides = [1, 1]} : vector<8x512xbf16> to vector<8x256xbf16>
    %cst_165 = arith.constant dense<0.000000e+00> : vector<16x256xf32>
    %469 = tpu.matmul %467, %468, %cst_165 {dimension_numbers = #tpu.dot_dimension_numbers<[1], [0], [0], [1], [0, 0, 1, 1], [], []>} : vector<16x8xbf16>, vector<8x256xbf16>, vector<16x256xf32> -> vector<16x256xf32>
    %470 = arith.addf %449, %469 : vector<16x256xf32>
    %c16_i32_166 = arith.constant 16 : i32
    %471 = tpu.dynamic_rotate %393 by %c16_i32_166 dim 1 : vector<8x512xf32>, i32 -> vector<8x512xf32>
    %c1_167 = arith.constant 1 : index
    %c0_168 = arith.constant 0 : index
    %472 = vector.load %arg3[%c1_167, %c0_168] : memref<9x512xf32, #tpu.memory_space<vmem>>, vector<1x512xf32>
    %473 = vector.broadcast %472 : vector<1x512xf32> to vector<8x512xf32>
    %474 = arith.mulf %471, %473 : vector<8x512xf32>
    %475 = arith.truncf %474 : vector<8x512xf32> to vector<8x512xbf16>
    %476 = vector.extract_strided_slice %420 {offsets = [0, 8], sizes = [16, 8], strides = [1, 1]} : vector<16x72xf32> to vector<16x8xf32>
    %477 = vector.extract_strided_slice %330 {offsets = [1, 0], sizes = [1, 1], strides = [1, 1]} : vector<9x1xf32> to vector<1x1xf32>
    %478 = vector.broadcast %477 : vector<1x1xf32> to vector<16x8xf32>
    %479 = arith.mulf %476, %478 : vector<16x8xf32>
    %480 = arith.truncf %479 : vector<16x8xf32> to vector<16x8xbf16>
    %481 = vector.extract_strided_slice %475 {offsets = [0, 0], sizes = [8, 256], strides = [1, 1]} : vector<8x512xbf16> to vector<8x256xbf16>
    %cst_169 = arith.constant dense<0.000000e+00> : vector<16x256xf32>
    %482 = tpu.matmul %480, %481, %cst_169 {dimension_numbers = #tpu.dot_dimension_numbers<[1], [0], [0], [1], [0, 0, 1, 1], [], []>} : vector<16x8xbf16>, vector<8x256xbf16>, vector<16x256xf32> -> vector<16x256xf32>
    %483 = arith.addf %462, %482 : vector<16x256xf32>
    %484 = vector.extract_strided_slice %447 {offsets = [0, 8], sizes = [16, 8], strides = [1, 1]} : vector<16x72xf32> to vector<16x8xf32>
    %485 = vector.extract_strided_slice %375 {offsets = [1, 0], sizes = [1, 1], strides = [1, 1]} : vector<9x1xf32> to vector<1x1xf32>
    %486 = vector.broadcast %485 : vector<1x1xf32> to vector<16x8xf32>
    %487 = arith.mulf %484, %486 : vector<16x8xf32>
    %488 = arith.truncf %487 : vector<16x8xf32> to vector<16x8xbf16>
    %489 = vector.extract_strided_slice %475 {offsets = [0, 256], sizes = [8, 256], strides = [1, 1]} : vector<8x512xbf16> to vector<8x256xbf16>
    %cst_170 = arith.constant dense<0.000000e+00> : vector<16x256xf32>
    %490 = tpu.matmul %488, %489, %cst_170 {dimension_numbers = #tpu.dot_dimension_numbers<[1], [0], [0], [1], [0, 0, 1, 1], [], []>} : vector<16x8xbf16>, vector<8x256xbf16>, vector<16x256xf32> -> vector<16x256xf32>
    %491 = arith.addf %470, %490 : vector<16x256xf32>
    %c15_i32_171 = arith.constant 15 : i32
    %492 = tpu.dynamic_rotate %393 by %c15_i32_171 dim 1 : vector<8x512xf32>, i32 -> vector<8x512xf32>
    %c2_172 = arith.constant 2 : index
    %c0_173 = arith.constant 0 : index
    %493 = vector.load %arg3[%c2_172, %c0_173] : memref<9x512xf32, #tpu.memory_space<vmem>>, vector<1x512xf32>
    %494 = vector.broadcast %493 : vector<1x512xf32> to vector<8x512xf32>
    %495 = arith.mulf %492, %494 : vector<8x512xf32>
    %496 = arith.truncf %495 : vector<8x512xf32> to vector<8x512xbf16>
    %497 = vector.extract_strided_slice %420 {offsets = [0, 16], sizes = [16, 8], strides = [1, 1]} : vector<16x72xf32> to vector<16x8xf32>
    %498 = vector.extract_strided_slice %330 {offsets = [2, 0], sizes = [1, 1], strides = [1, 1]} : vector<9x1xf32> to vector<1x1xf32>
    %499 = vector.broadcast %498 : vector<1x1xf32> to vector<16x8xf32>
    %500 = arith.mulf %497, %499 : vector<16x8xf32>
    %501 = arith.truncf %500 : vector<16x8xf32> to vector<16x8xbf16>
    %502 = vector.extract_strided_slice %496 {offsets = [0, 0], sizes = [8, 256], strides = [1, 1]} : vector<8x512xbf16> to vector<8x256xbf16>
    %cst_174 = arith.constant dense<0.000000e+00> : vector<16x256xf32>
    %503 = tpu.matmul %501, %502, %cst_174 {dimension_numbers = #tpu.dot_dimension_numbers<[1], [0], [0], [1], [0, 0, 1, 1], [], []>} : vector<16x8xbf16>, vector<8x256xbf16>, vector<16x256xf32> -> vector<16x256xf32>
    %504 = arith.addf %483, %503 : vector<16x256xf32>
    %505 = vector.extract_strided_slice %447 {offsets = [0, 16], sizes = [16, 8], strides = [1, 1]} : vector<16x72xf32> to vector<16x8xf32>
    %506 = vector.extract_strided_slice %375 {offsets = [2, 0], sizes = [1, 1], strides = [1, 1]} : vector<9x1xf32> to vector<1x1xf32>
    %507 = vector.broadcast %506 : vector<1x1xf32> to vector<16x8xf32>
    %508 = arith.mulf %505, %507 : vector<16x8xf32>
    %509 = arith.truncf %508 : vector<16x8xf32> to vector<16x8xbf16>
    %510 = vector.extract_strided_slice %496 {offsets = [0, 256], sizes = [8, 256], strides = [1, 1]} : vector<8x512xbf16> to vector<8x256xbf16>
    %cst_175 = arith.constant dense<0.000000e+00> : vector<16x256xf32>
    %511 = tpu.matmul %509, %510, %cst_175 {dimension_numbers = #tpu.dot_dimension_numbers<[1], [0], [0], [1], [0, 0, 1, 1], [], []>} : vector<16x8xbf16>, vector<8x256xbf16>, vector<16x256xf32> -> vector<16x256xf32>
    %512 = arith.addf %491, %511 : vector<16x256xf32>
    %c1_i32_176 = arith.constant 1 : i32
    %513 = tpu.dynamic_rotate %393 by %c1_i32_176 dim 1 : vector<8x512xf32>, i32 -> vector<8x512xf32>
    %c3_177 = arith.constant 3 : index
    %c0_178 = arith.constant 0 : index
    %514 = vector.load %arg3[%c3_177, %c0_178] : memref<9x512xf32, #tpu.memory_space<vmem>>, vector<1x512xf32>
    %515 = vector.broadcast %514 : vector<1x512xf32> to vector<8x512xf32>
    %516 = arith.mulf %513, %515 : vector<8x512xf32>
    %517 = arith.truncf %516 : vector<8x512xf32> to vector<8x512xbf16>
    %518 = vector.extract_strided_slice %420 {offsets = [0, 24], sizes = [16, 8], strides = [1, 1]} : vector<16x72xf32> to vector<16x8xf32>
    %519 = vector.extract_strided_slice %330 {offsets = [3, 0], sizes = [1, 1], strides = [1, 1]} : vector<9x1xf32> to vector<1x1xf32>
    %520 = vector.broadcast %519 : vector<1x1xf32> to vector<16x8xf32>
    %521 = arith.mulf %518, %520 : vector<16x8xf32>
    %522 = arith.truncf %521 : vector<16x8xf32> to vector<16x8xbf16>
    %523 = vector.extract_strided_slice %517 {offsets = [0, 0], sizes = [8, 256], strides = [1, 1]} : vector<8x512xbf16> to vector<8x256xbf16>
    %cst_179 = arith.constant dense<0.000000e+00> : vector<16x256xf32>
    %524 = tpu.matmul %522, %523, %cst_179 {dimension_numbers = #tpu.dot_dimension_numbers<[1], [0], [0], [1], [0, 0, 1, 1], [], []>} : vector<16x8xbf16>, vector<8x256xbf16>, vector<16x256xf32> -> vector<16x256xf32>
    %525 = arith.addf %504, %524 : vector<16x256xf32>
    %526 = vector.extract_strided_slice %447 {offsets = [0, 24], sizes = [16, 8], strides = [1, 1]} : vector<16x72xf32> to vector<16x8xf32>
    %527 = vector.extract_strided_slice %375 {offsets = [3, 0], sizes = [1, 1], strides = [1, 1]} : vector<9x1xf32> to vector<1x1xf32>
    %528 = vector.broadcast %527 : vector<1x1xf32> to vector<16x8xf32>
    %529 = arith.mulf %526, %528 : vector<16x8xf32>
    %530 = arith.truncf %529 : vector<16x8xf32> to vector<16x8xbf16>
    %531 = vector.extract_strided_slice %517 {offsets = [0, 256], sizes = [8, 256], strides = [1, 1]} : vector<8x512xbf16> to vector<8x256xbf16>
    %cst_180 = arith.constant dense<0.000000e+00> : vector<16x256xf32>
    %532 = tpu.matmul %530, %531, %cst_180 {dimension_numbers = #tpu.dot_dimension_numbers<[1], [0], [0], [1], [0, 0, 1, 1], [], []>} : vector<16x8xbf16>, vector<8x256xbf16>, vector<16x256xf32> -> vector<16x256xf32>
    %533 = arith.addf %512, %532 : vector<16x256xf32>
    %534 = arith.truncf %393 : vector<8x512xf32> to vector<8x512xbf16>
    %535 = vector.extract_strided_slice %420 {offsets = [0, 32], sizes = [16, 8], strides = [1, 1]} : vector<16x72xf32> to vector<16x8xf32>
    %536 = vector.extract_strided_slice %330 {offsets = [4, 0], sizes = [1, 1], strides = [1, 1]} : vector<9x1xf32> to vector<1x1xf32>
    %537 = vector.broadcast %536 : vector<1x1xf32> to vector<16x8xf32>
    %538 = arith.mulf %535, %537 : vector<16x8xf32>
    %539 = arith.truncf %538 : vector<16x8xf32> to vector<16x8xbf16>
    %540 = vector.extract_strided_slice %534 {offsets = [0, 0], sizes = [8, 256], strides = [1, 1]} : vector<8x512xbf16> to vector<8x256xbf16>
    %cst_181 = arith.constant dense<0.000000e+00> : vector<16x256xf32>
    %541 = tpu.matmul %539, %540, %cst_181 {dimension_numbers = #tpu.dot_dimension_numbers<[1], [0], [0], [1], [0, 0, 1, 1], [], []>} : vector<16x8xbf16>, vector<8x256xbf16>, vector<16x256xf32> -> vector<16x256xf32>
    %542 = arith.addf %525, %541 : vector<16x256xf32>
    %543 = vector.extract_strided_slice %447 {offsets = [0, 32], sizes = [16, 8], strides = [1, 1]} : vector<16x72xf32> to vector<16x8xf32>
    %544 = vector.extract_strided_slice %375 {offsets = [4, 0], sizes = [1, 1], strides = [1, 1]} : vector<9x1xf32> to vector<1x1xf32>
    %545 = vector.broadcast %544 : vector<1x1xf32> to vector<16x8xf32>
    %546 = arith.mulf %543, %545 : vector<16x8xf32>
    %547 = arith.truncf %546 : vector<16x8xf32> to vector<16x8xbf16>
    %548 = vector.extract_strided_slice %534 {offsets = [0, 256], sizes = [8, 256], strides = [1, 1]} : vector<8x512xbf16> to vector<8x256xbf16>
    %cst_182 = arith.constant dense<0.000000e+00> : vector<16x256xf32>
    %549 = tpu.matmul %547, %548, %cst_182 {dimension_numbers = #tpu.dot_dimension_numbers<[1], [0], [0], [1], [0, 0, 1, 1], [], []>} : vector<16x8xbf16>, vector<8x256xbf16>, vector<16x256xf32> -> vector<16x256xf32>
    %550 = arith.addf %533, %549 : vector<16x256xf32>
    %c511_i32_183 = arith.constant 511 : i32
    %551 = tpu.dynamic_rotate %393 by %c511_i32_183 dim 1 : vector<8x512xf32>, i32 -> vector<8x512xf32>
    %c5_184 = arith.constant 5 : index
    %c0_185 = arith.constant 0 : index
    %552 = vector.load %arg3[%c5_184, %c0_185] : memref<9x512xf32, #tpu.memory_space<vmem>>, vector<1x512xf32>
    %553 = vector.broadcast %552 : vector<1x512xf32> to vector<8x512xf32>
    %554 = arith.mulf %551, %553 : vector<8x512xf32>
    %555 = arith.truncf %554 : vector<8x512xf32> to vector<8x512xbf16>
    %556 = vector.extract_strided_slice %420 {offsets = [0, 40], sizes = [16, 8], strides = [1, 1]} : vector<16x72xf32> to vector<16x8xf32>
    %557 = vector.extract_strided_slice %330 {offsets = [5, 0], sizes = [1, 1], strides = [1, 1]} : vector<9x1xf32> to vector<1x1xf32>
    %558 = vector.broadcast %557 : vector<1x1xf32> to vector<16x8xf32>
    %559 = arith.mulf %556, %558 : vector<16x8xf32>
    %560 = arith.truncf %559 : vector<16x8xf32> to vector<16x8xbf16>
    %561 = vector.extract_strided_slice %555 {offsets = [0, 0], sizes = [8, 256], strides = [1, 1]} : vector<8x512xbf16> to vector<8x256xbf16>
    %cst_186 = arith.constant dense<0.000000e+00> : vector<16x256xf32>
    %562 = tpu.matmul %560, %561, %cst_186 {dimension_numbers = #tpu.dot_dimension_numbers<[1], [0], [0], [1], [0, 0, 1, 1], [], []>} : vector<16x8xbf16>, vector<8x256xbf16>, vector<16x256xf32> -> vector<16x256xf32>
    %563 = arith.addf %542, %562 : vector<16x256xf32>
    %564 = vector.extract_strided_slice %447 {offsets = [0, 40], sizes = [16, 8], strides = [1, 1]} : vector<16x72xf32> to vector<16x8xf32>
    %565 = vector.extract_strided_slice %375 {offsets = [5, 0], sizes = [1, 1], strides = [1, 1]} : vector<9x1xf32> to vector<1x1xf32>
    %566 = vector.broadcast %565 : vector<1x1xf32> to vector<16x8xf32>
    %567 = arith.mulf %564, %566 : vector<16x8xf32>
    %568 = arith.truncf %567 : vector<16x8xf32> to vector<16x8xbf16>
    %569 = vector.extract_strided_slice %555 {offsets = [0, 256], sizes = [8, 256], strides = [1, 1]} : vector<8x512xbf16> to vector<8x256xbf16>
    %cst_187 = arith.constant dense<0.000000e+00> : vector<16x256xf32>
    %570 = tpu.matmul %568, %569, %cst_187 {dimension_numbers = #tpu.dot_dimension_numbers<[1], [0], [0], [1], [0, 0, 1, 1], [], []>} : vector<16x8xbf16>, vector<8x256xbf16>, vector<16x256xf32> -> vector<16x256xf32>
    %571 = arith.addf %550, %570 : vector<16x256xf32>
    %c497_i32_188 = arith.constant 497 : i32
    %572 = tpu.dynamic_rotate %393 by %c497_i32_188 dim 1 : vector<8x512xf32>, i32 -> vector<8x512xf32>
    %c6_189 = arith.constant 6 : index
    %c0_190 = arith.constant 0 : index
    %573 = vector.load %arg3[%c6_189, %c0_190] : memref<9x512xf32, #tpu.memory_space<vmem>>, vector<1x512xf32>
    %574 = vector.broadcast %573 : vector<1x512xf32> to vector<8x512xf32>
    %575 = arith.mulf %572, %574 : vector<8x512xf32>
    %576 = arith.truncf %575 : vector<8x512xf32> to vector<8x512xbf16>
    %577 = vector.extract_strided_slice %420 {offsets = [0, 48], sizes = [16, 8], strides = [1, 1]} : vector<16x72xf32> to vector<16x8xf32>
    %578 = vector.extract_strided_slice %330 {offsets = [6, 0], sizes = [1, 1], strides = [1, 1]} : vector<9x1xf32> to vector<1x1xf32>
    %579 = vector.broadcast %578 : vector<1x1xf32> to vector<16x8xf32>
    %580 = arith.mulf %577, %579 : vector<16x8xf32>
    %581 = arith.truncf %580 : vector<16x8xf32> to vector<16x8xbf16>
    %582 = vector.extract_strided_slice %576 {offsets = [0, 0], sizes = [8, 256], strides = [1, 1]} : vector<8x512xbf16> to vector<8x256xbf16>
    %cst_191 = arith.constant dense<0.000000e+00> : vector<16x256xf32>
    %583 = tpu.matmul %581, %582, %cst_191 {dimension_numbers = #tpu.dot_dimension_numbers<[1], [0], [0], [1], [0, 0, 1, 1], [], []>} : vector<16x8xbf16>, vector<8x256xbf16>, vector<16x256xf32> -> vector<16x256xf32>
    %584 = arith.addf %563, %583 : vector<16x256xf32>
    %585 = vector.extract_strided_slice %447 {offsets = [0, 48], sizes = [16, 8], strides = [1, 1]} : vector<16x72xf32> to vector<16x8xf32>
    %586 = vector.extract_strided_slice %375 {offsets = [6, 0], sizes = [1, 1], strides = [1, 1]} : vector<9x1xf32> to vector<1x1xf32>
    %587 = vector.broadcast %586 : vector<1x1xf32> to vector<16x8xf32>
    %588 = arith.mulf %585, %587 : vector<16x8xf32>
    %589 = arith.truncf %588 : vector<16x8xf32> to vector<16x8xbf16>
    %590 = vector.extract_strided_slice %576 {offsets = [0, 256], sizes = [8, 256], strides = [1, 1]} : vector<8x512xbf16> to vector<8x256xbf16>
    %cst_192 = arith.constant dense<0.000000e+00> : vector<16x256xf32>
    %591 = tpu.matmul %589, %590, %cst_192 {dimension_numbers = #tpu.dot_dimension_numbers<[1], [0], [0], [1], [0, 0, 1, 1], [], []>} : vector<16x8xbf16>, vector<8x256xbf16>, vector<16x256xf32> -> vector<16x256xf32>
    %592 = arith.addf %571, %591 : vector<16x256xf32>
    %c496_i32_193 = arith.constant 496 : i32
    %593 = tpu.dynamic_rotate %393 by %c496_i32_193 dim 1 : vector<8x512xf32>, i32 -> vector<8x512xf32>
    %c7_194 = arith.constant 7 : index
    %c0_195 = arith.constant 0 : index
    %594 = vector.load %arg3[%c7_194, %c0_195] : memref<9x512xf32, #tpu.memory_space<vmem>>, vector<1x512xf32>
    %595 = vector.broadcast %594 : vector<1x512xf32> to vector<8x512xf32>
    %596 = arith.mulf %593, %595 : vector<8x512xf32>
    %597 = arith.truncf %596 : vector<8x512xf32> to vector<8x512xbf16>
    %598 = vector.extract_strided_slice %420 {offsets = [0, 56], sizes = [16, 8], strides = [1, 1]} : vector<16x72xf32> to vector<16x8xf32>
    %599 = vector.extract_strided_slice %330 {offsets = [7, 0], sizes = [1, 1], strides = [1, 1]} : vector<9x1xf32> to vector<1x1xf32>
    %600 = vector.broadcast %599 : vector<1x1xf32> to vector<16x8xf32>
    %601 = arith.mulf %598, %600 : vector<16x8xf32>
    %602 = arith.truncf %601 : vector<16x8xf32> to vector<16x8xbf16>
    %603 = vector.extract_strided_slice %597 {offsets = [0, 0], sizes = [8, 256], strides = [1, 1]} : vector<8x512xbf16> to vector<8x256xbf16>
    %cst_196 = arith.constant dense<0.000000e+00> : vector<16x256xf32>
    %604 = tpu.matmul %602, %603, %cst_196 {dimension_numbers = #tpu.dot_dimension_numbers<[1], [0], [0], [1], [0, 0, 1, 1], [], []>} : vector<16x8xbf16>, vector<8x256xbf16>, vector<16x256xf32> -> vector<16x256xf32>
    %605 = arith.addf %584, %604 : vector<16x256xf32>
    %606 = vector.extract_strided_slice %447 {offsets = [0, 56], sizes = [16, 8], strides = [1, 1]} : vector<16x72xf32> to vector<16x8xf32>
    %607 = vector.extract_strided_slice %375 {offsets = [7, 0], sizes = [1, 1], strides = [1, 1]} : vector<9x1xf32> to vector<1x1xf32>
    %608 = vector.broadcast %607 : vector<1x1xf32> to vector<16x8xf32>
    %609 = arith.mulf %606, %608 : vector<16x8xf32>
    %610 = arith.truncf %609 : vector<16x8xf32> to vector<16x8xbf16>
    %611 = vector.extract_strided_slice %597 {offsets = [0, 256], sizes = [8, 256], strides = [1, 1]} : vector<8x512xbf16> to vector<8x256xbf16>
    %cst_197 = arith.constant dense<0.000000e+00> : vector<16x256xf32>
    %612 = tpu.matmul %610, %611, %cst_197 {dimension_numbers = #tpu.dot_dimension_numbers<[1], [0], [0], [1], [0, 0, 1, 1], [], []>} : vector<16x8xbf16>, vector<8x256xbf16>, vector<16x256xf32> -> vector<16x256xf32>
    %613 = arith.addf %592, %612 : vector<16x256xf32>
    %c495_i32_198 = arith.constant 495 : i32
    %614 = tpu.dynamic_rotate %393 by %c495_i32_198 dim 1 : vector<8x512xf32>, i32 -> vector<8x512xf32>
    %c8_199 = arith.constant 8 : index
    %c0_200 = arith.constant 0 : index
    %615 = vector.load %arg3[%c8_199, %c0_200] : memref<9x512xf32, #tpu.memory_space<vmem>>, vector<1x512xf32>
    %616 = vector.broadcast %615 : vector<1x512xf32> to vector<8x512xf32>
    %617 = arith.mulf %614, %616 : vector<8x512xf32>
    %618 = arith.truncf %617 : vector<8x512xf32> to vector<8x512xbf16>
    %619 = vector.extract_strided_slice %420 {offsets = [0, 64], sizes = [16, 8], strides = [1, 1]} : vector<16x72xf32> to vector<16x8xf32>
    %620 = vector.extract_strided_slice %330 {offsets = [8, 0], sizes = [1, 1], strides = [1, 1]} : vector<9x1xf32> to vector<1x1xf32>
    %621 = vector.broadcast %620 : vector<1x1xf32> to vector<16x8xf32>
    %622 = arith.mulf %619, %621 : vector<16x8xf32>
    %623 = arith.truncf %622 : vector<16x8xf32> to vector<16x8xbf16>
    %624 = vector.extract_strided_slice %618 {offsets = [0, 0], sizes = [8, 256], strides = [1, 1]} : vector<8x512xbf16> to vector<8x256xbf16>
    %cst_201 = arith.constant dense<0.000000e+00> : vector<16x256xf32>
    %625 = tpu.matmul %623, %624, %cst_201 {dimension_numbers = #tpu.dot_dimension_numbers<[1], [0], [0], [1], [0, 0, 1, 1], [], []>} : vector<16x8xbf16>, vector<8x256xbf16>, vector<16x256xf32> -> vector<16x256xf32>
    %626 = arith.addf %605, %625 : vector<16x256xf32>
    %627 = vector.extract_strided_slice %447 {offsets = [0, 64], sizes = [16, 8], strides = [1, 1]} : vector<16x72xf32> to vector<16x8xf32>
    %628 = vector.extract_strided_slice %375 {offsets = [8, 0], sizes = [1, 1], strides = [1, 1]} : vector<9x1xf32> to vector<1x1xf32>
    %629 = vector.broadcast %628 : vector<1x1xf32> to vector<16x8xf32>
    %630 = arith.mulf %627, %629 : vector<16x8xf32>
    %631 = arith.truncf %630 : vector<16x8xf32> to vector<16x8xbf16>
    %632 = vector.extract_strided_slice %618 {offsets = [0, 256], sizes = [8, 256], strides = [1, 1]} : vector<8x512xbf16> to vector<8x256xbf16>
    %cst_202 = arith.constant dense<0.000000e+00> : vector<16x256xf32>
    %633 = tpu.matmul %631, %632, %cst_202 {dimension_numbers = #tpu.dot_dimension_numbers<[1], [0], [0], [1], [0, 0, 1, 1], [], []>} : vector<16x8xbf16>, vector<8x256xbf16>, vector<16x256xf32> -> vector<16x256xf32>
    %634 = arith.addf %613, %633 : vector<16x256xf32>
    %635 = vector.broadcast %324 : vector<16x1xf32> to vector<16x256xf32>
    %636 = arith.mulf %626, %635 : vector<16x256xf32>
    %637 = vector.extract_strided_slice %0 {offsets = [0, 0], sizes = [16, 256], strides = [1, 1]} : vector<16x512xf32> to vector<16x256xf32>
    %638 = arith.addf %636, %637 : vector<16x256xf32>
    %c0_203 = arith.constant 0 : index
    %c0_204 = arith.constant 0 : index
    %639 = vector.load %arg14[%c0_203, %c0_204] : memref<16x512xf32, #tpu.memory_space<vmem>>, vector<16x256xf32>
    tpu.vector_store %arg14[%c0_203, %c0_204], %638 {strides = array<i32>} : memref<16x512xf32, #tpu.memory_space<vmem>>, vector<16x256xf32>,
    %640 = vector.broadcast %369 : vector<16x1xf32> to vector<16x256xf32>
    %641 = arith.mulf %634, %640 : vector<16x256xf32>
    %642 = vector.extract_strided_slice %0 {offsets = [0, 256], sizes = [16, 256], strides = [1, 1]} : vector<16x512xf32> to vector<16x256xf32>
    %643 = arith.addf %641, %642 : vector<16x256xf32>
    %c0_205 = arith.constant 0 : index
    %c256 = arith.constant 256 : index
    %644 = vector.load %arg14[%c0_205, %c256] : memref<16x512xf32, #tpu.memory_space<vmem>>, vector<16x256xf32>
    tpu.vector_store %arg14[%c0_205, %c256], %643 {strides = array<i32>} : memref<16x512xf32, #tpu.memory_space<vmem>>, vector<16x256xf32>,
    return
  }
  func.func @transform_0(%arg0: i32) -> (i32, i32) {
    %c0_i32 = arith.constant 0 : i32
    %c0_i32_0 = arith.constant 0 : i32
    %c0_i32_1 = arith.constant 0 : i32
    return %c0_i32, %c0_i32_0 : i32, i32
  }
  func.func @transform_1(%arg0: i32) -> (i32, i32) {
    %c0_i32 = arith.constant 0 : i32
    %c0_i32_0 = arith.constant 0 : i32
    %c0_i32_1 = arith.constant 0 : i32
    return %c0_i32, %c0_i32_0 : i32, i32
  }
  func.func @transform_2(%arg0: i32) -> (i32, i32) {
    %c0_i32 = arith.constant 0 : i32
    %c0_i32_0 = arith.constant 0 : i32
    %c0_i32_1 = arith.constant 0 : i32
    return %c0_i32, %c0_i32_0 : i32, i32
  }
  func.func @transform_3(%arg0: i32) -> (i32, i32) {
    %c0_i32 = arith.constant 0 : i32
    %c0_i32_0 = arith.constant 0 : i32
    %c0_i32_1 = arith.constant 0 : i32
    return %c0_i32, %c0_i32_0 : i32, i32
  }
  func.func @transform_4(%arg0: i32) -> (i32, i32, i32) {
    %c0_i32 = arith.constant 0 : i32
    %c0_i32_0 = arith.constant 0 : i32
    %c0_i32_1 = arith.constant 0 : i32
    %c0_i32_2 = arith.constant 0 : i32
    return %c0_i32, %c0_i32_0, %c0_i32_1 : i32, i32, i32
  }
  func.func @transform_5(%arg0: i32) -> (i32, i32) {
    %c0_i32 = arith.constant 0 : i32
    %c0_i32_0 = arith.constant 0 : i32
    %c0_i32_1 = arith.constant 0 : i32
    return %c0_i32, %c0_i32_0 : i32, i32
  }
  func.func @transform_6(%arg0: i32) -> (i32, i32) {
    %c0_i32 = arith.constant 0 : i32
    %c0_i32_0 = arith.constant 0 : i32
    %c0_i32_1 = arith.constant 0 : i32
    return %c0_i32, %c0_i32_0 : i32, i32
  }
  func.func @transform_7(%arg0: i32) -> (i32, i32) {
    %c0_i32 = arith.constant 0 : i32
    %c0_i32_0 = arith.constant 0 : i32
    %c0_i32_1 = arith.constant 0 : i32
    return %c0_i32, %c0_i32_0 : i32, i32
  }
  func.func @transform_8(%arg0: i32) -> (i32, i32) {
    %c0_i32 = arith.constant 0 : i32
    %c0_i32_0 = arith.constant 0 : i32
    %c0_i32_1 = arith.constant 0 : i32
    return %c0_i32, %c0_i32_0 : i32, i32
  }
  func.func @transform_9(%arg0: i32) -> (i32, i32) {
    %c0_i32 = arith.constant 0 : i32
    %c0_i32_0 = arith.constant 0 : i32
    %c0_i32_1 = arith.constant 0 : i32
    return %c0_i32, %c0_i32_0 : i32, i32
  }
  func.func @transform_10(%arg0: i32) -> (i32, i32) {
    %c0_i32 = arith.constant 0 : i32
    %c0_i32_0 = arith.constant 0 : i32
    %c0_i32_1 = arith.constant 0 : i32
    return %c0_i32, %c0_i32_0 : i32, i32
  }
  func.func @transform_11(%arg0: i32) -> (i32, i32) {
    %c0_i32 = arith.constant 0 : i32
    %c0_i32_0 = arith.constant 0 : i32
    %c0_i32_1 = arith.constant 0 : i32
    return %c0_i32, %c0_i32_0 : i32, i32
  }
  func.func @transform_12(%arg0: i32) -> (i32, i32, i32) {
    %c0_i32 = arith.constant 0 : i32
    %c0_i32_0 = arith.constant 0 : i32
    %c0_i32_1 = arith.constant 0 : i32
    %c0_i32_2 = arith.constant 0 : i32
    return %c0_i32, %c0_i32_0, %c0_i32_1 : i32, i32, i32
  }
  func.func @transform_13(%arg0: i32) -> (i32, i32) {
    %c0_i32 = arith.constant 0 : i32
    %c0_i32_0 = arith.constant 0 : i32
    %c0_i32_1 = arith.constant 0 : i32
    return %c0_i32, %c0_i32_0 : i32, i32
  }
}

</mosaic_0001>

<llo_original>
// kernel: squeeze.1
$region0: #{squeeze.1}
  %s0 = inlined_call_operand.vmem [shape: f32[4,5,5], index: 0, kind: input, shape index: {}]
  %s1 = inlined_call_operand.vmem [shape: f32[4,25], index: 1, kind: output, shape index: {}]
  $region1: #{squeeze.1} parent=0
    #allocation0 [shape = 'u8[4096]{0}', space=vmem, size = 0x1000, scoped, tag = 'scoped mem for output reshape']
    %v2 = vld [vmem:[%s0] ss:$8 sm:$0xf]
    %vm3 = vcmask 39936
    %4 = vst.msk [vmem:[#allocation0] sm:$0xf] %vm3, %v2
    %s5 = scalar_lea.vmem %s0, 4
    %v6 = vld [vmem:[%s5] ss:$8 sm:$0xf]
    %7 = vrot.lane.b32.xlu0 %v6, 20
    %v8 = vpop.permute.xlu0 %7
    %vm9 = vcmask 203936
    %10 = vst.msk [vmem:[#allocation0] sm:$0xf] %vm9, %v8
    %s11 = scalar_lea.vmem %s0, 3
    %v12 = vld [vmem:[%s11] ss:$8 sm:$0xf]
    %13 = vrot.lane.b32.xlu0 %v12, 15
    %v14 = vpop.permute.xlu0 %13
    %vm15 = vcmask 162936
    %16 = vst.msk [vmem:[#allocation0] sm:$0xf] %vm15, %v14
    %s17 = scalar_lea.vmem %s0, 2
    %v18 = vld [vmem:[%s17] ss:$8 sm:$0xf]
    %19 = vrot.lane.b32.xlu0 %v18, 10
    %v20 = vpop.permute.xlu0 %19
    %vm21 = vcmask 121936
    %22 = vst.msk [vmem:[#allocation0] sm:$0xf] %vm21, %v20
    %s23 = scalar_lea.vmem %s0, 1
    %v24 = vld [vmem:[%s23] ss:$8 sm:$0xf]
    %25 = vrot.lane.b32.xlu0 %v24, 5
    %v26 = vpop.permute.xlu0 %25
    %vm27 = vcmask 80936
    %28 = vst.msk [vmem:[#allocation0] sm:$0xf] %vm27, %v26
    %s30 = ssub.s32 16, 1
    %v31 = vld [vmem:[#allocation0] sm:%s30]
    %s33 = ssub.s32 16, 1
    %34 = vst [vmem:[%s1] sm:%s33] %v31

// kernel: _lambda_.1
$region0: #{_lambda_.1}
  #allocation0 [shape = 'u32[]', space=smem, size = 0x4, offset = 0x4, fixed_abs, tag = 'smem constant byte address 0x4 - core index']
  #allocation1 [shape = 'u32[72,128]{1,0:T(1,128)}', space=vmem, size = 0x9000, scoped, tag = 'internal scratch']
  %s0 = inlined_call_operand.vmem [shape: f32[16,512], index: 0, kind: input, shape index: {}]
  %s1 = inlined_call_operand.vmem [shape: f32[2,512], index: 1, kind: input, shape index: {}]
  %s2 = inlined_call_operand.vmem [shape: f32[9,512], index: 2, kind: input, shape index: {}]
  %s3 = inlined_call_operand.vmem [shape: f32[25,512], index: 3, kind: input, shape index: {}]
  %s4 = inlined_call_operand.vmem [shape: bf16[9,4,16], index: 4, kind: input, shape index: {}]
  %s5 = inlined_call_operand.vmem [shape: f32[4,1], index: 5, kind: input, shape index: {}]
  %s6 = inlined_call_operand.vmem [shape: f32[4,25], index: 6, kind: input, shape index: {}]
  %s7 = inlined_call_operand.vmem [shape: f32[4,1], index: 7, kind: input, shape index: {}]
  %s8 = inlined_call_operand.vmem [shape: f32[16,8], index: 8, kind: input, shape index: {}]
  %s9 = inlined_call_operand.vmem [shape: f32[16,1], index: 9, kind: input, shape index: {}]
  %s10 = inlined_call_operand.vmem [shape: f32[37,16], index: 10, kind: input, shape index: {}]
  %s11 = inlined_call_operand.vmem [shape: f32[37,1], index: 11, kind: input, shape index: {}]
  %s12 = inlined_call_operand.vmem [shape: bf16[4,16,72], index: 12, kind: input, shape index: {}]
  %s13 = inlined_call_operand.vmem [shape: f32[16,512], index: 13, kind: output, shape index: {}]
  %s14 = sld [smem:[#allocation0]]
  $region62: #{_lambda_.1} parent=0
    _
  %s16 = ssub.s32 1, %s14
  %s17 = scalar_select 0, %s16, %s14
  // Predicated region
  $region2: #{_lambda_.1} parent=0 // pred_check
    _
  $region3: #{_lambda_.1} parent=0 // pred_check_branch
    %19 = sbr.rel (0) target = $region5
  $region4: #{_lambda_.1} parent=0 // pred_region
    _
  $region5: #{_lambda_.1} parent=0 // pred_fallthru
    _
  // Predicated region
  $region6: #{_lambda_.1} parent=0 // pred_check
    _
  $region7: #{_lambda_.1} parent=0 // pred_check_branch
    %21 = sbr.rel (0) target = $region9
  $region8: #{_lambda_.1} parent=0 // pred_region
    _
  $region9: #{_lambda_.1} parent=0 // pred_fallthru
    _
  // Predicated region
  $region10: #{_lambda_.1} parent=0 // pred_check
    _
  $region11: #{_lambda_.1} parent=0 // pred_check_branch
    %23 = sbr.rel (0) target = $region13
  $region12: #{_lambda_.1} parent=0 // pred_region
    _
  $region13: #{_lambda_.1} parent=0 // pred_fallthru
    _
  // Predicated region
  $region14: #{_lambda_.1} parent=0 // pred_check
    _
  $region15: #{_lambda_.1} parent=0 // pred_check_branch
    %25 = sbr.rel (0) target = $region17
  $region16: #{_lambda_.1} parent=0 // pred_region
    _
  $region17: #{_lambda_.1} parent=0 // pred_fallthru
    _
  // Predicated region
  $region18: #{_lambda_.1} parent=0 // pred_check
    _
  $region19: #{_lambda_.1} parent=0 // pred_check_branch
    %27 = sbr.rel (0) target = $region21
  $region20: #{_lambda_.1} parent=0 // pred_region
    _
  $region21: #{_lambda_.1} parent=0 // pred_fallthru
    _
  // Predicated region
  $region22: #{_lambda_.1} parent=0 // pred_check
    _
  $region23: #{_lambda_.1} parent=0 // pred_check_branch
    %29 = sbr.rel (0) target = $region25
  $region24: #{_lambda_.1} parent=0 // pred_region
    _
  $region25: #{_lambda_.1} parent=0 // pred_fallthru
    _
  // Predicated region
  $region26: #{_lambda_.1} parent=0 // pred_check
    _
  $region27: #{_lambda_.1} parent=0 // pred_check_branch
    %31 = sbr.rel (0) target = $region29
  $region28: #{_lambda_.1} parent=0 // pred_region
    _
  $region29: #{_lambda_.1} parent=0 // pred_fallthru
    _
  // Predicated region
  $region30: #{_lambda_.1} parent=0 // pred_check
    _
  $region31: #{_lambda_.1} parent=0 // pred_check_branch
    %33 = sbr.rel (0) target = $region33
  $region32: #{_lambda_.1} parent=0 // pred_region
    _
  $region33: #{_lambda_.1} parent=0 // pred_fallthru
    _
  // Predicated region
  $region34: #{_lambda_.1} parent=0 // pred_check
    _
  $region35: #{_lambda_.1} parent=0 // pred_check_branch
    %35 = sbr.rel (0) target = $region37
  $region36: #{_lambda_.1} parent=0 // pred_region
    _
  $region37: #{_lambda_.1} parent=0 // pred_fallthru
    _
  // Predicated region
  $region38: #{_lambda_.1} parent=0 // pred_check
    _
  $region39: #{_lambda_.1} parent=0 // pred_check_branch
    %37 = sbr.rel (0) target = $region41
  $region40: #{_lambda_.1} parent=0 // pred_region
    _
  $region41: #{_lambda_.1} parent=0 // pred_fallthru
    _
  // Predicated region
  $region42: #{_lambda_.1} parent=0 // pred_check
    _
  $region43: #{_lambda_.1} parent=0 // pred_check_branch
    %39 = sbr.rel (0) target = $region45
  $region44: #{_lambda_.1} parent=0 // pred_region
    _
  $region45: #{_lambda_.1} parent=0 // pred_fallthru
    _
  // Predicated region
  $region46: #{_lambda_.1} parent=0 // pred_check
    _
  $region47: #{_lambda_.1} parent=0 // pred_check_branch
    %41 = sbr.rel (0) target = $region49
  $region48: #{_lambda_.1} parent=0 // pred_region
    _
  $region49: #{_lambda_.1} parent=0 // pred_fallthru
    _
  // Predicated region
  $region50: #{_lambda_.1} parent=0 // pred_check
    _
  $region51: #{_lambda_.1} parent=0 // pred_check_branch
    %43 = sbr.rel (0) target = $region53
  $region52: #{_lambda_.1} parent=0 // pred_region
    _
  $region53: #{_lambda_.1} parent=0 // pred_fallthru
    _
  %v45 = vld [vmem:[%s0] sm:$0xff]
  %v46 = vld [vmem:[%s0 + $0x8] sm:$0xff]
  %v47 = vld [vmem:[%s0 + $0x10] sm:$0xff]
  %v48 = vld [vmem:[%s0 + $0x18] sm:$0xff]
  %v49 = vld [vmem:[%s0 + $0x20] sm:$0xff]
  %v50 = vld [vmem:[%s0 + $0x28] sm:$0xff]
  %v51 = vld [vmem:[%s0 + $0x30] sm:$0xff]
  %v52 = vld [vmem:[%s0 + $0x38] sm:$0xff]
  %53 = vrot.lane.b32.xlu0 %v45, 17
  %v54 = vpop.permute.xlu0 %53
  %55 = vrot.lane.b32.xlu0 %v49, 17
  %v56 = vpop.permute.xlu0 %55
  %57 = vrot.lane.b32.xlu0 %v46, 17
  %v58 = vpop.permute.xlu0 %57
  %59 = vrot.lane.b32.xlu0 %v50, 17
  %v60 = vpop.permute.xlu0 %59
  %61 = vrot.lane.b32.xlu0 %v47, 17
  %v62 = vpop.permute.xlu0 %61
  %63 = vrot.lane.b32.xlu0 %v51, 17
  %v64 = vpop.permute.xlu0 %63
  %65 = vrot.lane.b32.xlu0 %v48, 17
  %v66 = vpop.permute.xlu0 %65
  %67 = vrot.lane.b32.xlu0 %v52, 17
  %v68 = vpop.permute.xlu0 %67
  %v69 = vlaneseq
  %v70 = vand.u32 %v69, 127
  %vm71 = vcmp.lt.s32.totalorder %v70, 17
  %v72 = vsel %vm71, %v62, %v66
  %v73 = vsel %vm71, %v64, %v68
  %v74 = vsel %vm71, %v58, %v62
  %v75 = vsel %vm71, %v60, %v64
  %v76 = vsel %vm71, %v54, %v58
  %v77 = vsel %vm71, %v56, %v60
  %v78 = vsel %vm71, %v66, %v54
  %v79 = vsel %vm71, %v68, %v56
  %v80 = vld [vmem:[%s2] ss:$8 sm:$0xf]
  %v82 = vperm.slane %v80, 0
  %v83 = vperm.slane %v80, 1
  %v84 = vperm.slane %v80, 2
  %v85 = vperm.slane %v80, 3
  %v90 = vmul.f32 %v78, %v82
  %v91 = vmul.f32 %v76, %v83
  %v92 = vmul.f32 %v74, %v84
  %v93 = vmul.f32 %v72, %v85
  %v94 = vmul.f32 %v79, %v82
  %v95 = vmul.f32 %v77, %v83
  %v96 = vmul.f32 %v75, %v84
  %v97 = vmul.f32 %v73, %v85
  %v98 = vld [vmem:[%s4] sm:$0x3]
  %v99 = vpack.c.bf16 %v94, %v90
  %v100 = vpack.c.bf16 %v95, %v91
  %v101 = vpack.c.bf16 %v96, %v92
  %v102 = vpack.c.bf16 %v97, %v93
  %103 = vrot.lane.b32.xlu0 %v45, 16
  %v104 = vpop.permute.xlu0 %103
  %105 = vrot.lane.b32.xlu0 %v49, 16
  %v106 = vpop.permute.xlu0 %105
  %107 = vrot.lane.b32.xlu0 %v46, 16
  %v108 = vpop.permute.xlu0 %107
  %109 = vrot.lane.b32.xlu0 %v50, 16
  %v110 = vpop.permute.xlu0 %109
  %111 = vrot.lane.b32.xlu0 %v47, 16
  %v112 = vpop.permute.xlu0 %111
  %113 = vrot.lane.b32.xlu0 %v51, 16
  %v114 = vpop.permute.xlu0 %113
  %115 = vrot.lane.b32.xlu0 %v48, 16
  %v116 = vpop.permute.xlu0 %115
  %117 = vrot.lane.b32.xlu0 %v52, 16
  %v118 = vpop.permute.xlu0 %117
  %vm119 = vcmp.lt.s32.totalorder %v70, 16
  %v120 = vsel %vm119, %v112, %v116
  %v121 = vsel %vm119, %v114, %v118
  %v122 = vsel %vm119, %v108, %v112
  %v123 = vsel %vm119, %v110, %v114
  %v124 = vsel %vm119, %v104, %v108
  %v125 = vsel %vm119, %v106, %v110
  %v126 = vsel %vm119, %v116, %v104
  %v127 = vsel %vm119, %v118, %v106
  %s128 = scalar_lea.vmem %s2, 1
  %v129 = vld [vmem:[%s128] ss:$8 sm:$0xf]
  %v131 = vperm.slane %v129, 0
  %v132 = vperm.slane %v129, 1
  %v133 = vperm.slane %v129, 2
  %v134 = vperm.slane %v129, 3
  %v139 = vmul.f32 %v126, %v131
  %v140 = vmul.f32 %v124, %v132
  %v141 = vmul.f32 %v122, %v133
  %v142 = vmul.f32 %v120, %v134
  %v143 = vmul.f32 %v127, %v131
  %v144 = vmul.f32 %v125, %v132
  %v145 = vmul.f32 %v123, %v133
  %v146 = vmul.f32 %v121, %v134
  %s147 = scalar_lea.vmem %s4, 2
  %v148 = vld [vmem:[%s147] sm:$0x3]
  %v149 = vpack.c.bf16 %v143, %v139
  %v150 = vpack.c.bf16 %v144, %v140
  %v151 = vpack.c.bf16 %v145, %v141
  %v152 = vpack.c.bf16 %v146, %v142
  %vm153 = vcmask 130048
  %v155 = vsel %vm153, %v148, 0
  %157 = vmatpush.bf16.msra.mxu0 0
  %158 = vmatpush.bf16.msra.mxu0 0
  %159 = vmatpush.bf16.msra.mxu0 0
  %160 = vmatpush.bf16.msra.mxu0 0
  %161 = vmatpush.bf16.msra.mxu0 0
  %162 = vmatpush.bf16.msra.mxu0 0
  %163 = vmatpush.bf16.msra.mxu0 0
  %164 = vmatpush.bf16.msra.mxu0 %v149
  %165 = vmatmul.bf16.gmra.mxu0 %v155
  %v166 = vpop.f32.mrf.mxu0
  %v167 = vadd.f32 0.0, %v166
  %v168 = vpop.f32.mrf.mxu0
  %169 = vdwg.mxu0
  %170 = vmatpush.bf16.msra.mxu0 0
  %171 = vmatpush.bf16.msra.mxu0 0
  %172 = vmatpush.bf16.msra.mxu0 0
  %173 = vmatpush.bf16.msra.mxu0 0
  %174 = vmatpush.bf16.msra.mxu0 0
  %175 = vmatpush.bf16.msra.mxu0 0
  %176 = vmatpush.bf16.msra.mxu0 0
  %177 = vmatpush.bf16.msra.mxu0 %v150
  %178 = vmatmul.bf16.gmra.mxu0 %v155
  %v179 = vpop.f32.mrf.mxu0
  %v180 = vadd.f32 0.0, %v179
  %v181 = vpop.f32.mrf.mxu0
  %182 = vdwg.mxu0
  %183 = vmatpush.bf16.msra.mxu0 0
  %184 = vmatpush.bf16.msra.mxu0 0
  %185 = vmatpush.bf16.msra.mxu0 0
  %186 = vmatpush.bf16.msra.mxu0 0
  %187 = vmatpush.bf16.msra.mxu0 0
  %188 = vmatpush.bf16.msra.mxu0 0
  %189 = vmatpush.bf16.msra.mxu0 0
  %190 = vmatpush.bf16.msra.mxu0 %v151
  %191 = vmatmul.bf16.gmra.mxu0 %v155
  %v192 = vpop.f32.mrf.mxu0
  %v193 = vadd.f32 0.0, %v192
  %v194 = vpop.f32.mrf.mxu0
  %195 = vdwg.mxu0
  %196 = vmatpush.bf16.msra.mxu0 0
  %197 = vmatpush.bf16.msra.mxu0 0
  %198 = vmatpush.bf16.msra.mxu0 0
  %199 = vmatpush.bf16.msra.mxu0 0
  %200 = vmatpush.bf16.msra.mxu0 0
  %201 = vmatpush.bf16.msra.mxu0 0
  %202 = vmatpush.bf16.msra.mxu0 0
  %203 = vmatpush.bf16.msra.mxu0 %v152
  %204 = vmatmul.bf16.gmra.mxu0 %v155
  %v205 = vpop.f32.mrf.mxu0
  %v206 = vadd.f32 0.0, %v205
  %v207 = vpop.f32.mrf.mxu0
  %208 = vdwg.mxu0
  %v210 = vsel %vm153, %v98, 0
  %212 = vmatpush.bf16.msra.mxu0 0
  %213 = vmatpush.bf16.msra.mxu0 0
  %214 = vmatpush.bf16.msra.mxu0 0
  %215 = vmatpush.bf16.msra.mxu0 0
  %216 = vmatpush.bf16.msra.mxu0 0
  %217 = vmatpush.bf16.msra.mxu0 0
  %218 = vmatpush.bf16.msra.mxu0 0
  %219 = vmatpush.bf16.msra.mxu0 %v99
  %220 = vmatmul.bf16.gmra.mxu0 %v210
  %v221 = vpop.f32.mrf.mxu0
  %v222 = vadd.f32 %v167, %v221
  %v223 = vpop.f32.mrf.mxu0
  %224 = vdwg.mxu0
  %225 = vmatpush.bf16.msra.mxu0 0
  %226 = vmatpush.bf16.msra.mxu0 0
  %227 = vmatpush.bf16.msra.mxu0 0
  %228 = vmatpush.bf16.msra.mxu0 0
  %229 = vmatpush.bf16.msra.mxu0 0
  %230 = vmatpush.bf16.msra.mxu0 0
  %231 = vmatpush.bf16.msra.mxu0 0
  %232 = vmatpush.bf16.msra.mxu0 %v100
  %233 = vmatmul.bf16.gmra.mxu0 %v210
  %v234 = vpop.f32.mrf.mxu0
  %v235 = vadd.f32 %v180, %v234
  %v236 = vpop.f32.mrf.mxu0
  %237 = vdwg.mxu0
  %238 = vmatpush.bf16.msra.mxu0 0
  %239 = vmatpush.bf16.msra.mxu0 0
  %240 = vmatpush.bf16.msra.mxu0 0
  %241 = vmatpush.bf16.msra.mxu0 0
  %242 = vmatpush.bf16.msra.mxu0 0
  %243 = vmatpush.bf16.msra.mxu0 0
  %244 = vmatpush.bf16.msra.mxu0 0
  %245 = vmatpush.bf16.msra.mxu0 %v101
  %246 = vmatmul.bf16.gmra.mxu0 %v210
  %v247 = vpop.f32.mrf.mxu0
  %v248 = vadd.f32 %v193, %v247
  %v249 = vpop.f32.mrf.mxu0
  %250 = vdwg.mxu0
  %251 = vmatpush.bf16.msra.mxu0 0
  %252 = vmatpush.bf16.msra.mxu0 0
  %253 = vmatpush.bf16.msra.mxu0 0
  %254 = vmatpush.bf16.msra.mxu0 0
  %255 = vmatpush.bf16.msra.mxu0 0
  %256 = vmatpush.bf16.msra.mxu0 0
  %257 = vmatpush.bf16.msra.mxu0 0
  %258 = vmatpush.bf16.msra.mxu0 %v102
  %259 = vmatmul.bf16.gmra.mxu0 %v210
  %v260 = vpop.f32.mrf.mxu0
  %v261 = vadd.f32 %v206, %v260
  %v262 = vpop.f32.mrf.mxu0
  %263 = vdwg.mxu0
  %264 = vrot.lane.b32.xlu0 %v45, 15
  %v265 = vpop.permute.xlu0 %264
  %266 = vrot.lane.b32.xlu0 %v49, 15
  %v267 = vpop.permute.xlu0 %266
  %268 = vrot.lane.b32.xlu0 %v46, 15
  %v269 = vpop.permute.xlu0 %268
  %270 = vrot.lane.b32.xlu0 %v50, 15
  %v271 = vpop.permute.xlu0 %270
  %272 = vrot.lane.b32.xlu0 %v47, 15
  %v273 = vpop.permute.xlu0 %272
  %274 = vrot.lane.b32.xlu0 %v51, 15
  %v275 = vpop.permute.xlu0 %274
  %276 = vrot.lane.b32.xlu0 %v48, 15
  %v277 = vpop.permute.xlu0 %276
  %278 = vrot.lane.b32.xlu0 %v52, 15
  %v279 = vpop.permute.xlu0 %278
  %vm280 = vcmp.lt.s32.totalorder %v70, 15
  %v281 = vsel %vm280, %v273, %v277
  %v282 = vsel %vm280, %v275, %v279
  %v283 = vsel %vm280, %v269, %v273
  %v284 = vsel %vm280, %v271, %v275
  %v285 = vsel %vm280, %v265, %v269
  %v286 = vsel %vm280, %v267, %v271
  %v287 = vsel %vm280, %v277, %v265
  %v288 = vsel %vm280, %v279, %v267
  %s289 = scalar_lea.vmem %s2, 2
  %v290 = vld [vmem:[%s289] ss:$8 sm:$0xf]
  %v292 = vperm.slane %v290, 0
  %v293 = vperm.slane %v290, 1
  %v294 = vperm.slane %v290, 2
  %v295 = vperm.slane %v290, 3
  %v300 = vmul.f32 %v287, %v292
  %v301 = vmul.f32 %v285, %v293
  %v302 = vmul.f32 %v283, %v294
  %v303 = vmul.f32 %v281, %v295
  %v304 = vmul.f32 %v288, %v292
  %v305 = vmul.f32 %v286, %v293
  %v306 = vmul.f32 %v284, %v294
  %v307 = vmul.f32 %v282, %v295
  %s308 = scalar_lea.vmem %s4, 4
  %v309 = vld [vmem:[%s308] sm:$0x3]
  %v310 = vpack.c.bf16 %v304, %v300
  %v311 = vpack.c.bf16 %v305, %v301
  %v312 = vpack.c.bf16 %v306, %v302
  %v313 = vpack.c.bf16 %v307, %v303
  %v315 = vsel %vm153, %v309, 0
  %317 = vmatpush.bf16.msra.mxu0 0
  %318 = vmatpush.bf16.msra.mxu0 0
  %319 = vmatpush.bf16.msra.mxu0 0
  %320 = vmatpush.bf16.msra.mxu0 0
  %321 = vmatpush.bf16.msra.mxu0 0
  %322 = vmatpush.bf16.msra.mxu0 0
  %323 = vmatpush.bf16.msra.mxu0 0
  %324 = vmatpush.bf16.msra.mxu0 %v310
  %325 = vmatmul.bf16.gmra.mxu0 %v315
  %v326 = vpop.f32.mrf.mxu0
  %v327 = vadd.f32 0.0, %v326
  %v328 = vpop.f32.mrf.mxu0
  %329 = vdwg.mxu0
  %330 = vmatpush.bf16.msra.mxu0 0
  %331 = vmatpush.bf16.msra.mxu0 0
  %332 = vmatpush.bf16.msra.mxu0 0
  %333 = vmatpush.bf16.msra.mxu0 0
  %334 = vmatpush.bf16.msra.mxu0 0
  %335 = vmatpush.bf16.msra.mxu0 0
  %336 = vmatpush.bf16.msra.mxu0 0
  %337 = vmatpush.bf16.msra.mxu0 %v311
  %338 = vmatmul.bf16.gmra.mxu0 %v315
  %v339 = vpop.f32.mrf.mxu0
  %v340 = vadd.f32 0.0, %v339
  %v341 = vpop.f32.mrf.mxu0
  %342 = vdwg.mxu0
  %343 = vmatpush.bf16.msra.mxu0 0
  %344 = vmatpush.bf16.msra.mxu0 0
  %345 = vmatpush.bf16.msra.mxu0 0
  %346 = vmatpush.bf16.msra.mxu0 0
  %347 = vmatpush.bf16.msra.mxu0 0
  %348 = vmatpush.bf16.msra.mxu0 0
  %349 = vmatpush.bf16.msra.mxu0 0
  %350 = vmatpush.bf16.msra.mxu0 %v312
  %351 = vmatmul.bf16.gmra.mxu0 %v315
  %v352 = vpop.f32.mrf.mxu0
  %v353 = vadd.f32 0.0, %v352
  %v354 = vpop.f32.mrf.mxu0
  %355 = vdwg.mxu0
  %356 = vmatpush.bf16.msra.mxu0 0
  %357 = vmatpush.bf16.msra.mxu0 0
  %358 = vmatpush.bf16.msra.mxu0 0
  %359 = vmatpush.bf16.msra.mxu0 0
  %360 = vmatpush.bf16.msra.mxu0 0
  %361 = vmatpush.bf16.msra.mxu0 0
  %362 = vmatpush.bf16.msra.mxu0 0
  %363 = vmatpush.bf16.msra.mxu0 %v313
  %364 = vmatmul.bf16.gmra.mxu0 %v315
  %v365 = vpop.f32.mrf.mxu0
  %v366 = vadd.f32 0.0, %v365
  %v367 = vpop.f32.mrf.mxu0
  %368 = vdwg.mxu0
  %v369 = vadd.f32 %v222, %v327
  %v370 = vadd.f32 %v235, %v340
  %v371 = vadd.f32 %v248, %v353
  %v372 = vadd.f32 %v261, %v366
  %373 = vrot.lane.b32.xlu0 %v45, 1
  %v374 = vpop.permute.xlu0 %373
  %375 = vrot.lane.b32.xlu0 %v49, 1
  %v376 = vpop.permute.xlu0 %375
  %377 = vrot.lane.b32.xlu0 %v46, 1
  %v378 = vpop.permute.xlu0 %377
  %379 = vrot.lane.b32.xlu0 %v50, 1
  %v380 = vpop.permute.xlu0 %379
  %381 = vrot.lane.b32.xlu0 %v47, 1
  %v382 = vpop.permute.xlu0 %381
  %383 = vrot.lane.b32.xlu0 %v51, 1
  %v384 = vpop.permute.xlu0 %383
  %385 = vrot.lane.b32.xlu0 %v48, 1
  %v386 = vpop.permute.xlu0 %385
  %387 = vrot.lane.b32.xlu0 %v52, 1
  %v388 = vpop.permute.xlu0 %387
  %vm389 = vcmp.lt.s32.totalorder %v70, 1
  %v390 = vsel %vm389, %v382, %v386
  %v391 = vsel %vm389, %v384, %v388
  %v392 = vsel %vm389, %v378, %v382
  %v393 = vsel %vm389, %v380, %v384
  %v394 = vsel %vm389, %v374, %v378
  %v395 = vsel %vm389, %v376, %v380
  %v396 = vsel %vm389, %v386, %v374
  %v397 = vsel %vm389, %v388, %v376
  %s398 = scalar_lea.vmem %s2, 3
  %v399 = vld [vmem:[%s398] ss:$8 sm:$0xf]
  %v401 = vperm.slane %v399, 0
  %v402 = vperm.slane %v399, 1
  %v403 = vperm.slane %v399, 2
  %v404 = vperm.slane %v399, 3
  %v409 = vmul.f32 %v396, %v401
  %v410 = vmul.f32 %v394, %v402
  %v411 = vmul.f32 %v392, %v403
  %v412 = vmul.f32 %v390, %v404
  %v413 = vmul.f32 %v397, %v401
  %v414 = vmul.f32 %v395, %v402
  %v415 = vmul.f32 %v393, %v403
  %v416 = vmul.f32 %v391, %v404
  %s417 = scalar_lea.vmem %s4, 6
  %v418 = vld [vmem:[%s417] sm:$0x3]
  %v419 = vpack.c.bf16 %v413, %v409
  %v420 = vpack.c.bf16 %v414, %v410
  %v421 = vpack.c.bf16 %v415, %v411
  %v422 = vpack.c.bf16 %v416, %v412
  %v424 = vsel %vm153, %v418, 0
  %426 = vmatpush.bf16.msra.mxu0 0
  %427 = vmatpush.bf16.msra.mxu0 0
  %428 = vmatpush.bf16.msra.mxu0 0
  %429 = vmatpush.bf16.msra.mxu0 0
  %430 = vmatpush.bf16.msra.mxu0 0
  %431 = vmatpush.bf16.msra.mxu0 0
  %432 = vmatpush.bf16.msra.mxu0 0
  %433 = vmatpush.bf16.msra.mxu0 %v419
  %434 = vmatmul.bf16.gmra.mxu0 %v424
  %v435 = vpop.f32.mrf.mxu0
  %v436 = vadd.f32 0.0, %v435
  %v437 = vpop.f32.mrf.mxu0
  %438 = vdwg.mxu0
  %439 = vmatpush.bf16.msra.mxu0 0
  %440 = vmatpush.bf16.msra.mxu0 0
  %441 = vmatpush.bf16.msra.mxu0 0
  %442 = vmatpush.bf16.msra.mxu0 0
  %443 = vmatpush.bf16.msra.mxu0 0
  %444 = vmatpush.bf16.msra.mxu0 0
  %445 = vmatpush.bf16.msra.mxu0 0
  %446 = vmatpush.bf16.msra.mxu0 %v420
  %447 = vmatmul.bf16.gmra.mxu0 %v424
  %v448 = vpop.f32.mrf.mxu0
  %v449 = vadd.f32 0.0, %v448
  %v450 = vpop.f32.mrf.mxu0
  %451 = vdwg.mxu0
  %452 = vmatpush.bf16.msra.mxu0 0
  %453 = vmatpush.bf16.msra.mxu0 0
  %454 = vmatpush.bf16.msra.mxu0 0
  %455 = vmatpush.bf16.msra.mxu0 0
  %456 = vmatpush.bf16.msra.mxu0 0
  %457 = vmatpush.bf16.msra.mxu0 0
  %458 = vmatpush.bf16.msra.mxu0 0
  %459 = vmatpush.bf16.msra.mxu0 %v421
  %460 = vmatmul.bf16.gmra.mxu0 %v424
  %v461 = vpop.f32.mrf.mxu0
  %v462 = vadd.f32 0.0, %v461
  %v463 = vpop.f32.mrf.mxu0
  %464 = vdwg.mxu0
  %465 = vmatpush.bf16.msra.mxu0 0
  %466 = vmatpush.bf16.msra.mxu0 0
  %467 = vmatpush.bf16.msra.mxu0 0
  %468 = vmatpush.bf16.msra.mxu0 0
  %469 = vmatpush.bf16.msra.mxu0 0
  %470 = vmatpush.bf16.msra.mxu0 0
  %471 = vmatpush.bf16.msra.mxu0 0
  %472 = vmatpush.bf16.msra.mxu0 %v422
  %473 = vmatmul.bf16.gmra.mxu0 %v424
  %v474 = vpop.f32.mrf.mxu0
  %v475 = vadd.f32 0.0, %v474
  %v476 = vpop.f32.mrf.mxu0
  %477 = vdwg.mxu0
  %v478 = vadd.f32 %v369, %v436
  %v479 = vadd.f32 %v370, %v449
  %v480 = vadd.f32 %v371, %v462
  %v481 = vadd.f32 %v372, %v475
  %s482 = scalar_lea.vmem %s4, 8
  %v483 = vld [vmem:[%s482] sm:$0x3]
  %v484 = vpack.c.bf16 %v49, %v45
  %v485 = vpack.c.bf16 %v50, %v46
  %v486 = vpack.c.bf16 %v51, %v47
  %v487 = vpack.c.bf16 %v52, %v48
  %v489 = vsel %vm153, %v483, 0
  %491 = vmatpush.bf16.msra.mxu0 0
  %492 = vmatpush.bf16.msra.mxu0 0
  %493 = vmatpush.bf16.msra.mxu0 0
  %494 = vmatpush.bf16.msra.mxu0 0
  %495 = vmatpush.bf16.msra.mxu0 0
  %496 = vmatpush.bf16.msra.mxu0 0
  %497 = vmatpush.bf16.msra.mxu0 0
  %498 = vmatpush.bf16.msra.mxu0 %v484
  %499 = vmatmul.bf16.gmra.mxu0 %v489
  %v500 = vpop.f32.mrf.mxu0
  %v501 = vadd.f32 0.0, %v500
  %v502 = vpop.f32.mrf.mxu0
  %503 = vdwg.mxu0
  %504 = vmatpush.bf16.msra.mxu0 0
  %505 = vmatpush.bf16.msra.mxu0 0
  %506 = vmatpush.bf16.msra.mxu0 0
  %507 = vmatpush.bf16.msra.mxu0 0
  %508 = vmatpush.bf16.msra.mxu0 0
  %509 = vmatpush.bf16.msra.mxu0 0
  %510 = vmatpush.bf16.msra.mxu0 0
  %511 = vmatpush.bf16.msra.mxu0 %v485
  %512 = vmatmul.bf16.gmra.mxu0 %v489
  %v513 = vpop.f32.mrf.mxu0
  %v514 = vadd.f32 0.0, %v513
  %v515 = vpop.f32.mrf.mxu0
  %516 = vdwg.mxu0
  %517 = vmatpush.bf16.msra.mxu0 0
  %518 = vmatpush.bf16.msra.mxu0 0
  %519 = vmatpush.bf16.msra.mxu0 0
  %520 = vmatpush.bf16.msra.mxu0 0
  %521 = vmatpush.bf16.msra.mxu0 0
  %522 = vmatpush.bf16.msra.mxu0 0
  %523 = vmatpush.bf16.msra.mxu0 0
  %524 = vmatpush.bf16.msra.mxu0 %v486
  %525 = vmatmul.bf16.gmra.mxu0 %v489
  %v526 = vpop.f32.mrf.mxu0
  %v527 = vadd.f32 0.0, %v526
  %v528 = vpop.f32.mrf.mxu0
  %529 = vdwg.mxu0
  %530 = vmatpush.bf16.msra.mxu0 0
  %531 = vmatpush.bf16.msra.mxu0 0
  %532 = vmatpush.bf16.msra.mxu0 0
  %533 = vmatpush.bf16.msra.mxu0 0
  %534 = vmatpush.bf16.msra.mxu0 0
  %535 = vmatpush.bf16.msra.mxu0 0
  %536 = vmatpush.bf16.msra.mxu0 0
  %537 = vmatpush.bf16.msra.mxu0 %v487
  %538 = vmatmul.bf16.gmra.mxu0 %v489
  %v539 = vpop.f32.mrf.mxu0
  %v540 = vadd.f32 0.0, %v539
  %v541 = vpop.f32.mrf.mxu0
  %542 = vdwg.mxu0
  %v543 = vadd.f32 %v478, %v501
  %v544 = vadd.f32 %v479, %v514
  %v545 = vadd.f32 %v480, %v527
  %v546 = vadd.f32 %v481, %v540
  %547 = vrot.lane.b32.xlu0 %v45, 127
  %v548 = vpop.permute.xlu0 %547
  %549 = vrot.lane.b32.xlu0 %v49, 127
  %v550 = vpop.permute.xlu0 %549
  %551 = vrot.lane.b32.xlu0 %v46, 127
  %v552 = vpop.permute.xlu0 %551
  %553 = vrot.lane.b32.xlu0 %v50, 127
  %v554 = vpop.permute.xlu0 %553
  %555 = vrot.lane.b32.xlu0 %v47, 127
  %v556 = vpop.permute.xlu0 %555
  %557 = vrot.lane.b32.xlu0 %v51, 127
  %v558 = vpop.permute.xlu0 %557
  %559 = vrot.lane.b32.xlu0 %v48, 127
  %v560 = vpop.permute.xlu0 %559
  %561 = vrot.lane.b32.xlu0 %v52, 127
  %v562 = vpop.permute.xlu0 %561
  %vm563 = vcmp.lt.s32.totalorder %v70, 127
  %v564 = vsel %vm563, %v556, %v560
  %v565 = vsel %vm563, %v558, %v562
  %v566 = vsel %vm563, %v552, %v556
  %v567 = vsel %vm563, %v554, %v558
  %v568 = vsel %vm563, %v548, %v552
  %v569 = vsel %vm563, %v550, %v554
  %v570 = vsel %vm563, %v560, %v548
  %v571 = vsel %vm563, %v562, %v550
  %s572 = scalar_lea.vmem %s2, 5
  %v573 = vld [vmem:[%s572] ss:$8 sm:$0xf]
  %v575 = vperm.slane %v573, 0
  %v576 = vperm.slane %v573, 1
  %v577 = vperm.slane %v573, 2
  %v578 = vperm.slane %v573, 3
  %v583 = vmul.f32 %v568, %v575
  %v584 = vmul.f32 %v566, %v576
  %v585 = vmul.f32 %v564, %v577
  %v586 = vmul.f32 %v570, %v578
  %v587 = vmul.f32 %v569, %v575
  %v588 = vmul.f32 %v567, %v576
  %v589 = vmul.f32 %v565, %v577
  %v590 = vmul.f32 %v571, %v578
  %s591 = scalar_lea.vmem %s4, 10
  %v592 = vld [vmem:[%s591] sm:$0x3]
  %v593 = vpack.c.bf16 %v587, %v583
  %v594 = vpack.c.bf16 %v588, %v584
  %v595 = vpack.c.bf16 %v589, %v585
  %v596 = vpack.c.bf16 %v590, %v586
  %v598 = vsel %vm153, %v592, 0
  %600 = vmatpush.bf16.msra.mxu0 0
  %601 = vmatpush.bf16.msra.mxu0 0
  %602 = vmatpush.bf16.msra.mxu0 0
  %603 = vmatpush.bf16.msra.mxu0 0
  %604 = vmatpush.bf16.msra.mxu0 0
  %605 = vmatpush.bf16.msra.mxu0 0
  %606 = vmatpush.bf16.msra.mxu0 0
  %607 = vmatpush.bf16.msra.mxu0 %v593
  %608 = vmatmul.bf16.gmra.mxu0 %v598
  %v609 = vpop.f32.mrf.mxu0
  %v610 = vadd.f32 0.0, %v609
  %v611 = vpop.f32.mrf.mxu0
  %612 = vdwg.mxu0
  %613 = vmatpush.bf16.msra.mxu0 0
  %614 = vmatpush.bf16.msra.mxu0 0
  %615 = vmatpush.bf16.msra.mxu0 0
  %616 = vmatpush.bf16.msra.mxu0 0
  %617 = vmatpush.bf16.msra.mxu0 0
  %618 = vmatpush.bf16.msra.mxu0 0
  %619 = vmatpush.bf16.msra.mxu0 0
  %620 = vmatpush.bf16.msra.mxu0 %v594
  %621 = vmatmul.bf16.gmra.mxu0 %v598
  %v622 = vpop.f32.mrf.mxu0
  %v623 = vadd.f32 0.0, %v622
  %v624 = vpop.f32.mrf.mxu0
  %625 = vdwg.mxu0
  %626 = vmatpush.bf16.msra.mxu0 0
  %627 = vmatpush.bf16.msra.mxu0 0
  %628 = vmatpush.bf16.msra.mxu0 0
  %629 = vmatpush.bf16.msra.mxu0 0
  %630 = vmatpush.bf16.msra.mxu0 0
  %631 = vmatpush.bf16.msra.mxu0 0
  %632 = vmatpush.bf16.msra.mxu0 0
  %633 = vmatpush.bf16.msra.mxu0 %v595
  %634 = vmatmul.bf16.gmra.mxu0 %v598
  %v635 = vpop.f32.mrf.mxu0
  %v636 = vadd.f32 0.0, %v635
  %v637 = vpop.f32.mrf.mxu0
  %638 = vdwg.mxu0
  %639 = vmatpush.bf16.msra.mxu0 0
  %640 = vmatpush.bf16.msra.mxu0 0
  %641 = vmatpush.bf16.msra.mxu0 0
  %642 = vmatpush.bf16.msra.mxu0 0
  %643 = vmatpush.bf16.msra.mxu0 0
  %644 = vmatpush.bf16.msra.mxu0 0
  %645 = vmatpush.bf16.msra.mxu0 0
  %646 = vmatpush.bf16.msra.mxu0 %v596
  %647 = vmatmul.bf16.gmra.mxu0 %v598
  %v648 = vpop.f32.mrf.mxu0
  %v649 = vadd.f32 0.0, %v648
  %v650 = vpop.f32.mrf.mxu0
  %651 = vdwg.mxu0
  %v652 = vadd.f32 %v543, %v610
  %v653 = vadd.f32 %v544, %v623
  %v654 = vadd.f32 %v545, %v636
  %v655 = vadd.f32 %v546, %v649
  %656 = vrot.lane.b32.xlu0 %v45, 113
  %v657 = vpop.permute.xlu0 %656
  %658 = vrot.lane.b32.xlu0 %v49, 113
  %v659 = vpop.permute.xlu0 %658
  %660 = vrot.lane.b32.xlu0 %v46, 113
  %v661 = vpop.permute.xlu0 %660
  %662 = vrot.lane.b32.xlu0 %v50, 113
  %v663 = vpop.permute.xlu0 %662
  %664 = vrot.lane.b32.xlu0 %v47, 113
  %v665 = vpop.permute.xlu0 %664
  %666 = vrot.lane.b32.xlu0 %v51, 113
  %v667 = vpop.permute.xlu0 %666
  %668 = vrot.lane.b32.xlu0 %v48, 113
  %v669 = vpop.permute.xlu0 %668
  %670 = vrot.lane.b32.xlu0 %v52, 113
  %v671 = vpop.permute.xlu0 %670
  %vm672 = vcmp.lt.s32.totalorder %v70, 113
  %v673 = vsel %vm672, %v665, %v669
  %v674 = vsel %vm672, %v667, %v671
  %v675 = vsel %vm672, %v661, %v665
  %v676 = vsel %vm672, %v663, %v667
  %v677 = vsel %vm672, %v657, %v661
  %v678 = vsel %vm672, %v659, %v663
  %v679 = vsel %vm672, %v669, %v657
  %v680 = vsel %vm672, %v671, %v659
  %s681 = scalar_lea.vmem %s2, 6
  %v682 = vld [vmem:[%s681] ss:$8 sm:$0xf]
  %v684 = vperm.slane %v682, 0
  %v685 = vperm.slane %v682, 1
  %v686 = vperm.slane %v682, 2
  %v687 = vperm.slane %v682, 3
  %v692 = vmul.f32 %v677, %v684
  %v693 = vmul.f32 %v675, %v685
  %v694 = vmul.f32 %v673, %v686
  %v695 = vmul.f32 %v679, %v687
  %v696 = vmul.f32 %v678, %v684
  %v697 = vmul.f32 %v676, %v685
  %v698 = vmul.f32 %v674, %v686
  %v699 = vmul.f32 %v680, %v687
  %s700 = scalar_lea.vmem %s4, 12
  %v701 = vld [vmem:[%s700] sm:$0x3]
  %v702 = vpack.c.bf16 %v696, %v692
  %v703 = vpack.c.bf16 %v697, %v693
  %v704 = vpack.c.bf16 %v698, %v694
  %v705 = vpack.c.bf16 %v699, %v695
  %v707 = vsel %vm153, %v701, 0
  %709 = vmatpush.bf16.msra.mxu0 0
  %710 = vmatpush.bf16.msra.mxu0 0
  %711 = vmatpush.bf16.msra.mxu0 0
  %712 = vmatpush.bf16.msra.mxu0 0
  %713 = vmatpush.bf16.msra.mxu0 0
  %714 = vmatpush.bf16.msra.mxu0 0
  %715 = vmatpush.bf16.msra.mxu0 0
  %716 = vmatpush.bf16.msra.mxu0 %v702
  %717 = vmatmul.bf16.gmra.mxu0 %v707
  %v718 = vpop.f32.mrf.mxu0
  %v719 = vadd.f32 0.0, %v718
  %v720 = vpop.f32.mrf.mxu0
  %721 = vdwg.mxu0
  %722 = vmatpush.bf16.msra.mxu0 0
  %723 = vmatpush.bf16.msra.mxu0 0
  %724 = vmatpush.bf16.msra.mxu0 0
  %725 = vmatpush.bf16.msra.mxu0 0
  %726 = vmatpush.bf16.msra.mxu0 0
  %727 = vmatpush.bf16.msra.mxu0 0
  %728 = vmatpush.bf16.msra.mxu0 0
  %729 = vmatpush.bf16.msra.mxu0 %v703
  %730 = vmatmul.bf16.gmra.mxu0 %v707
  %v731 = vpop.f32.mrf.mxu0
  %v732 = vadd.f32 0.0, %v731
  %v733 = vpop.f32.mrf.mxu0
  %734 = vdwg.mxu0
  %735 = vmatpush.bf16.msra.mxu0 0
  %736 = vmatpush.bf16.msra.mxu0 0
  %737 = vmatpush.bf16.msra.mxu0 0
  %738 = vmatpush.bf16.msra.mxu0 0
  %739 = vmatpush.bf16.msra.mxu0 0
  %740 = vmatpush.bf16.msra.mxu0 0
  %741 = vmatpush.bf16.msra.mxu0 0
  %742 = vmatpush.bf16.msra.mxu0 %v704
  %743 = vmatmul.bf16.gmra.mxu0 %v707
  %v744 = vpop.f32.mrf.mxu0
  %v745 = vadd.f32 0.0, %v744
  %v746 = vpop.f32.mrf.mxu0
  %747 = vdwg.mxu0
  %748 = vmatpush.bf16.msra.mxu0 0
  %749 = vmatpush.bf16.msra.mxu0 0
  %750 = vmatpush.bf16.msra.mxu0 0
  %751 = vmatpush.bf16.msra.mxu0 0
  %752 = vmatpush.bf16.msra.mxu0 0
  %753 = vmatpush.bf16.msra.mxu0 0
  %754 = vmatpush.bf16.msra.mxu0 0
  %755 = vmatpush.bf16.msra.mxu0 %v705
  %756 = vmatmul.bf16.gmra.mxu0 %v707
  %v757 = vpop.f32.mrf.mxu0
  %v758 = vadd.f32 0.0, %v757
  %v759 = vpop.f32.mrf.mxu0
  %760 = vdwg.mxu0
  %v761 = vadd.f32 %v652, %v719
  %v762 = vadd.f32 %v653, %v732
  %v763 = vadd.f32 %v654, %v745
  %v764 = vadd.f32 %v655, %v758
  %765 = vrot.lane.b32.xlu0 %v45, 112
  %v766 = vpop.permute.xlu0 %765
  %767 = vrot.lane.b32.xlu0 %v49, 112
  %v768 = vpop.permute.xlu0 %767
  %769 = vrot.lane.b32.xlu0 %v46, 112
  %v770 = vpop.permute.xlu0 %769
  %771 = vrot.lane.b32.xlu0 %v50, 112
  %v772 = vpop.permute.xlu0 %771
  %773 = vrot.lane.b32.xlu0 %v47, 112
  %v774 = vpop.permute.xlu0 %773
  %775 = vrot.lane.b32.xlu0 %v51, 112
  %v776 = vpop.permute.xlu0 %775
  %777 = vrot.lane.b32.xlu0 %v48, 112
  %v778 = vpop.permute.xlu0 %777
  %779 = vrot.lane.b32.xlu0 %v52, 112
  %v780 = vpop.permute.xlu0 %779
  %vm781 = vcmp.lt.s32.totalorder %v70, 112
  %v782 = vsel %vm781, %v774, %v778
  %v783 = vsel %vm781, %v776, %v780
  %v784 = vsel %vm781, %v770, %v774
  %v785 = vsel %vm781, %v772, %v776
  %v786 = vsel %vm781, %v766, %v770
  %v787 = vsel %vm781, %v768, %v772
  %v788 = vsel %vm781, %v778, %v766
  %v789 = vsel %vm781, %v780, %v768
  %s790 = scalar_lea.vmem %s2, 7
  %v791 = vld [vmem:[%s790] ss:$8 sm:$0xf]
  %v793 = vperm.slane %v791, 0
  %v794 = vperm.slane %v791, 1
  %v795 = vperm.slane %v791, 2
  %v796 = vperm.slane %v791, 3
  %v801 = vmul.f32 %v786, %v793
  %v802 = vmul.f32 %v784, %v794
  %v803 = vmul.f32 %v782, %v795
  %v804 = vmul.f32 %v788, %v796
  %v805 = vmul.f32 %v787, %v793
  %v806 = vmul.f32 %v785, %v794
  %v807 = vmul.f32 %v783, %v795
  %v808 = vmul.f32 %v789, %v796
  %s809 = scalar_lea.vmem %s4, 14
  %v810 = vld [vmem:[%s809] sm:$0x3]
  %v811 = vpack.c.bf16 %v805, %v801
  %v812 = vpack.c.bf16 %v806, %v802
  %v813 = vpack.c.bf16 %v807, %v803
  %v814 = vpack.c.bf16 %v808, %v804
  %v816 = vsel %vm153, %v810, 0
  %818 = vmatpush.bf16.msra.mxu0 0
  %819 = vmatpush.bf16.msra.mxu0 0
  %820 = vmatpush.bf16.msra.mxu0 0
  %821 = vmatpush.bf16.msra.mxu0 0
  %822 = vmatpush.bf16.msra.mxu0 0
  %823 = vmatpush.bf16.msra.mxu0 0
  %824 = vmatpush.bf16.msra.mxu0 0
  %825 = vmatpush.bf16.msra.mxu0 %v811
  %826 = vmatmul.bf16.gmra.mxu0 %v816
  %v827 = vpop.f32.mrf.mxu0
  %v828 = vadd.f32 0.0, %v827
  %v829 = vpop.f32.mrf.mxu0
  %830 = vdwg.mxu0
  %831 = vmatpush.bf16.msra.mxu0 0
  %832 = vmatpush.bf16.msra.mxu0 0
  %833 = vmatpush.bf16.msra.mxu0 0
  %834 = vmatpush.bf16.msra.mxu0 0
  %835 = vmatpush.bf16.msra.mxu0 0
  %836 = vmatpush.bf16.msra.mxu0 0
  %837 = vmatpush.bf16.msra.mxu0 0
  %838 = vmatpush.bf16.msra.mxu0 %v812
  %839 = vmatmul.bf16.gmra.mxu0 %v816
  %v840 = vpop.f32.mrf.mxu0
  %v841 = vadd.f32 0.0, %v840
  %v842 = vpop.f32.mrf.mxu0
  %843 = vdwg.mxu0
  %844 = vmatpush.bf16.msra.mxu0 0
  %845 = vmatpush.bf16.msra.mxu0 0
  %846 = vmatpush.bf16.msra.mxu0 0
  %847 = vmatpush.bf16.msra.mxu0 0
  %848 = vmatpush.bf16.msra.mxu0 0
  %849 = vmatpush.bf16.msra.mxu0 0
  %850 = vmatpush.bf16.msra.mxu0 0
  %851 = vmatpush.bf16.msra.mxu0 %v813
  %852 = vmatmul.bf16.gmra.mxu0 %v816
  %v853 = vpop.f32.mrf.mxu0
  %v854 = vadd.f32 0.0, %v853
  %v855 = vpop.f32.mrf.mxu0
  %856 = vdwg.mxu0
  %857 = vmatpush.bf16.msra.mxu0 0
  %858 = vmatpush.bf16.msra.mxu0 0
  %859 = vmatpush.bf16.msra.mxu0 0
  %860 = vmatpush.bf16.msra.mxu0 0
  %861 = vmatpush.bf16.msra.mxu0 0
  %862 = vmatpush.bf16.msra.mxu0 0
  %863 = vmatpush.bf16.msra.mxu0 0
  %864 = vmatpush.bf16.msra.mxu0 %v814
  %865 = vmatmul.bf16.gmra.mxu0 %v816
  %v866 = vpop.f32.mrf.mxu0
  %v867 = vadd.f32 0.0, %v866
  %v868 = vpop.f32.mrf.mxu0
  %869 = vdwg.mxu0
  %v870 = vadd.f32 %v761, %v828
  %v871 = vadd.f32 %v762, %v841
  %v872 = vadd.f32 %v763, %v854
  %v873 = vadd.f32 %v764, %v867
  %874 = vrot.lane.b32.xlu0 %v45, 111
  %v875 = vpop.permute.xlu0 %874
  %876 = vrot.lane.b32.xlu0 %v49, 111
  %v877 = vpop.permute.xlu0 %876
  %878 = vrot.lane.b32.xlu0 %v46, 111
  %v879 = vpop.permute.xlu0 %878
  %880 = vrot.lane.b32.xlu0 %v50, 111
  %v881 = vpop.permute.xlu0 %880
  %882 = vrot.lane.b32.xlu0 %v47, 111
  %v883 = vpop.permute.xlu0 %882
  %884 = vrot.lane.b32.xlu0 %v51, 111
  %v885 = vpop.permute.xlu0 %884
  %886 = vrot.lane.b32.xlu0 %v48, 111
  %v887 = vpop.permute.xlu0 %886
  %888 = vrot.lane.b32.xlu0 %v52, 111
  %v889 = vpop.permute.xlu0 %888
  %vm890 = vcmp.lt.s32.totalorder %v70, 111
  %v891 = vsel %vm890, %v883, %v887
  %v892 = vsel %vm890, %v885, %v889
  %v893 = vsel %vm890, %v879, %v883
  %v894 = vsel %vm890, %v881, %v885
  %v895 = vsel %vm890, %v875, %v879
  %v896 = vsel %vm890, %v877, %v881
  %v897 = vsel %vm890, %v887, %v875
  %v898 = vsel %vm890, %v889, %v877
  %s899 = scalar_lea.vmem %s2, 32
  %v900 = vld [vmem:[%s899] ss:$8 sm:$0xf]
  %v902 = vperm.slane %v900, 0
  %v903 = vperm.slane %v900, 1
  %v904 = vperm.slane %v900, 2
  %v905 = vperm.slane %v900, 3
  %v910 = vmul.f32 %v895, %v902
  %v911 = vmul.f32 %v893, %v903
  %v912 = vmul.f32 %v891, %v904
  %v913 = vmul.f32 %v897, %v905
  %v914 = vmul.f32 %v896, %v902
  %v915 = vmul.f32 %v894, %v903
  %v916 = vmul.f32 %v892, %v904
  %v917 = vmul.f32 %v898, %v905
  %s918 = scalar_lea.vmem %s4, 16
  %v919 = vld [vmem:[%s918] sm:$0x3]
  %v920 = vpack.c.bf16 %v914, %v910
  %v921 = vpack.c.bf16 %v915, %v911
  %v922 = vpack.c.bf16 %v916, %v912
  %v923 = vpack.c.bf16 %v917, %v913
  %v925 = vsel %vm153, %v919, 0
  %927 = vmatpush.bf16.msra.mxu0 0
  %928 = vmatpush.bf16.msra.mxu0 0
  %929 = vmatpush.bf16.msra.mxu0 0
  %930 = vmatpush.bf16.msra.mxu0 0
  %931 = vmatpush.bf16.msra.mxu0 0
  %932 = vmatpush.bf16.msra.mxu0 0
  %933 = vmatpush.bf16.msra.mxu0 0
  %934 = vmatpush.bf16.msra.mxu0 %v920
  %935 = vmatmul.bf16.gmra.mxu0 %v925
  %v936 = vpop.f32.mrf.mxu0
  %v937 = vadd.f32 0.0, %v936
  %v938 = vpop.f32.mrf.mxu0
  %939 = vdwg.mxu0
  %940 = vmatpush.bf16.msra.mxu0 0
  %941 = vmatpush.bf16.msra.mxu0 0
  %942 = vmatpush.bf16.msra.mxu0 0
  %943 = vmatpush.bf16.msra.mxu0 0
  %944 = vmatpush.bf16.msra.mxu0 0
  %945 = vmatpush.bf16.msra.mxu0 0
  %946 = vmatpush.bf16.msra.mxu0 0
  %947 = vmatpush.bf16.msra.mxu0 %v921
  %948 = vmatmul.bf16.gmra.mxu0 %v925
  %v949 = vpop.f32.mrf.mxu0
  %v950 = vadd.f32 0.0, %v949
  %v951 = vpop.f32.mrf.mxu0
  %952 = vdwg.mxu0
  %953 = vmatpush.bf16.msra.mxu0 0
  %954 = vmatpush.bf16.msra.mxu0 0
  %955 = vmatpush.bf16.msra.mxu0 0
  %956 = vmatpush.bf16.msra.mxu0 0
  %957 = vmatpush.bf16.msra.mxu0 0
  %958 = vmatpush.bf16.msra.mxu0 0
  %959 = vmatpush.bf16.msra.mxu0 0
  %960 = vmatpush.bf16.msra.mxu0 %v922
  %961 = vmatmul.bf16.gmra.mxu0 %v925
  %v962 = vpop.f32.mrf.mxu0
  %v963 = vadd.f32 0.0, %v962
  %v964 = vpop.f32.mrf.mxu0
  %965 = vdwg.mxu0
  %966 = vmatpush.bf16.msra.mxu0 0
  %967 = vmatpush.bf16.msra.mxu0 0
  %968 = vmatpush.bf16.msra.mxu0 0
  %969 = vmatpush.bf16.msra.mxu0 0
  %970 = vmatpush.bf16.msra.mxu0 0
  %971 = vmatpush.bf16.msra.mxu0 0
  %972 = vmatpush.bf16.msra.mxu0 0
  %973 = vmatpush.bf16.msra.mxu0 %v923
  %974 = vmatmul.bf16.gmra.mxu0 %v925
  %v975 = vpop.f32.mrf.mxu0
  %v976 = vadd.f32 0.0, %v975
  %v977 = vpop.f32.mrf.mxu0
  %978 = vdwg.mxu0
  %v979 = vadd.f32 %v870, %v937
  %v980 = vadd.f32 %v871, %v950
  %v981 = vadd.f32 %v872, %v963
  %v982 = vadd.f32 %v873, %v976
  %v983 = vld [vmem:[%s5] sm:$0xf]
  %985 = vset.pattern.permute.xlu0 0
  %986 = vperm.xlu0 %985, %v983
  %v987 = vpop.permute.xlu0 %986
  %v989 = vadd.f32 %v979, %v987
  %v990 = vadd.f32 %v980, %v987
  %v991 = vadd.f32 %v981, %v987
  %v992 = vadd.f32 %v982, %v987
  %v993 = vxor.u32 %v989, 2147483648
  %v994 = vxor.u32 %v990, 2147483648
  %v995 = vxor.u32 %v991, 2147483648
  %v996 = vxor.u32 %v992, 2147483648
  %v997 = vmul.f32 %v993, 1.442695
  %v998 = vpow.pop %v997
  %v999 = vmul.f32 %v994, 1.442695
  %v1000 = vpow.pop %v999
  %v1001 = vmul.f32 %v995, 1.442695
  %v1002 = vpow.pop %v1001
  %v1003 = vmul.f32 %v996, 1.442695
  %v1004 = vpow.pop %v1003
  %v1005 = vadd.f32 %v998, 1.0
  %v1006 = vadd.f32 %v1000, 1.0
  %v1007 = vadd.f32 %v1002, 1.0
  %v1008 = vadd.f32 %v1004, 1.0
  %v1009 = vrcp.pop %v1005
  %v1010 = vmul.f32 %v1005, %v1009
  %v1011 = vsub.f32 1.0, %v1010
  %v1012 = vmul.f32 %v1009, %v1011
  %v1013 = vadd.f32 %v1009, %v1012
  %vm1014 = vweird.f32 %v1005
  %vm1015 = vweird.f32 %v1009
  %vm1016 = vmor %vm1014, %vm1015
  %v1017 = vsel %vm1016, %v1009, %v1013
  %v1018 = vand.u32 2147483647, %v1005
  %vm1019 = vcmp.eq.f32.partialorder %v1018, 8.507059e+37
  %v1020 = vand.u32 %v1005, 2147483648
  %v1021 = vor.u32 1.1754944e-38, %v1020
  %v1022 = vsel %vm1019, %v1021, %v1017
  %v1023 = vmul.f32 1.0, %v1022
  %v1024 = vrcp.pop %v1006
  %v1025 = vmul.f32 %v1006, %v1024
  %v1026 = vsub.f32 1.0, %v1025
  %v1027 = vmul.f32 %v1024, %v1026
  %v1028 = vadd.f32 %v1024, %v1027
  %vm1029 = vweird.f32 %v1006
  %vm1030 = vweird.f32 %v1024
  %vm1031 = vmor %vm1029, %vm1030
  %v1032 = vsel %vm1031, %v1024, %v1028
  %v1033 = vand.u32 2147483647, %v1006
  %vm1034 = vcmp.eq.f32.partialorder %v1033, 8.507059e+37
  %v1035 = vand.u32 %v1006, 2147483648
  %v1036 = vor.u32 1.1754944e-38, %v1035
  %v1037 = vsel %vm1034, %v1036, %v1032
  %v1038 = vmul.f32 1.0, %v1037
  %v1039 = vrcp.pop %v1007
  %v1040 = vmul.f32 %v1007, %v1039
  %v1041 = vsub.f32 1.0, %v1040
  %v1042 = vmul.f32 %v1039, %v1041
  %v1043 = vadd.f32 %v1039, %v1042
  %vm1044 = vweird.f32 %v1007
  %vm1045 = vweird.f32 %v1039
  %vm1046 = vmor %vm1044, %vm1045
  %v1047 = vsel %vm1046, %v1039, %v1043
  %v1048 = vand.u32 2147483647, %v1007
  %vm1049 = vcmp.eq.f32.partialorder %v1048, 8.507059e+37
  %v1050 = vand.u32 %v1007, 2147483648
  %v1051 = vor.u32 1.1754944e-38, %v1050
  %v1052 = vsel %vm1049, %v1051, %v1047
  %v1053 = vmul.f32 1.0, %v1052
  %v1054 = vrcp.pop %v1008
  %v1055 = vmul.f32 %v1008, %v1054
  %v1056 = vsub.f32 1.0, %v1055
  %v1057 = vmul.f32 %v1054, %v1056
  %v1058 = vadd.f32 %v1054, %v1057
  %vm1059 = vweird.f32 %v1008
  %vm1060 = vweird.f32 %v1054
  %vm1061 = vmor %vm1059, %vm1060
  %v1062 = vsel %vm1061, %v1054, %v1058
  %v1063 = vand.u32 2147483647, %v1008
  %vm1064 = vcmp.eq.f32.partialorder %v1063, 8.507059e+37
  %v1065 = vand.u32 %v1008, 2147483648
  %v1066 = vor.u32 1.1754944e-38, %v1065
  %v1067 = vsel %vm1064, %v1066, %v1062
  %v1068 = vmul.f32 1.0, %v1067
  %v1069 = vmul.f32 %v989, %v1023
  %v1070 = vmul.f32 %v990, %v1038
  %v1071 = vmul.f32 %v991, %v1053
  %v1072 = vmul.f32 %v992, %v1068
  %v1073 = vld [vmem:[%s6] sm:$0xf]
  %1074 = vrot.lane.b32.xlu0 %v1069, 34
  %v1075 = vpop.permute.xlu0 %1074
  %1076 = vrot.lane.b32.xlu0 %v1070, 34
  %v1077 = vpop.permute.xlu0 %1076
  %1078 = vrot.lane.b32.xlu0 %v1071, 34
  %v1079 = vpop.permute.xlu0 %1078
  %1080 = vrot.lane.b32.xlu0 %v1072, 34
  %v1081 = vpop.permute.xlu0 %1080
  %vm1082 = vcmp.lt.s32.totalorder %v70, 34
  %v1083 = vsel %vm1082, %v1079, %v1081
  %v1084 = vsel %vm1082, %v1077, %v1079
  %v1085 = vsel %vm1082, %v1075, %v1077
  %v1086 = vsel %vm1082, %v1081, %v1075
  %v1087 = vld [vmem:[%s3] ss:$8 sm:$0xf]
  %1089 = vset.pattern.permute.xlu0 0
  %1090 = vperm.xlu0 %1089, %v1073
  %v1091 = vpop.permute.xlu0 %1090
  %v1094 = vperm.slane %v1087, 0
  %v1095 = vperm.slane %v1087, 1
  %v1096 = vperm.slane %v1087, 2
  %v1097 = vperm.slane %v1087, 3
  %v1102 = vmul.f32 %v1091, %v1094
  %v1103 = vmul.f32 %v1091, %v1095
  %v1104 = vmul.f32 %v1091, %v1096
  %v1105 = vmul.f32 %v1091, %v1097
  %v1106 = vmul.f32 %v1086, %v1102
  %v1107 = vmul.f32 %v1085, %v1103
  %v1108 = vmul.f32 %v1084, %v1104
  %v1109 = vmul.f32 %v1083, %v1105
  %v1110 = vadd.f32 %v1106, 0.0
  %v1111 = vadd.f32 %v1107, 0.0
  %v1112 = vadd.f32 %v1108, 0.0
  %v1113 = vadd.f32 %v1109, 0.0
  %1114 = vrot.lane.b32.xlu0 %v1069, 33
  %v1115 = vpop.permute.xlu0 %1114
  %1116 = vrot.lane.b32.xlu0 %v1070, 33
  %v1117 = vpop.permute.xlu0 %1116
  %1118 = vrot.lane.b32.xlu0 %v1071, 33
  %v1119 = vpop.permute.xlu0 %1118
  %1120 = vrot.lane.b32.xlu0 %v1072, 33
  %v1121 = vpop.permute.xlu0 %1120
  %vm1122 = vcmp.lt.s32.totalorder %v70, 33
  %v1123 = vsel %vm1122, %v1119, %v1121
  %v1124 = vsel %vm1122, %v1117, %v1119
  %v1125 = vsel %vm1122, %v1115, %v1117
  %v1126 = vsel %vm1122, %v1121, %v1115
  %s1127 = scalar_lea.vmem %s3, 1
  %v1128 = vld [vmem:[%s1127] ss:$8 sm:$0xf]
  %1129 = vset.pattern.permute.xlu0 1
  %1130 = vperm.xlu0 %1129, %v1073
  %v1131 = vpop.permute.xlu0 %1130
  %v1134 = vperm.slane %v1128, 0
  %v1135 = vperm.slane %v1128, 1
  %v1136 = vperm.slane %v1128, 2
  %v1137 = vperm.slane %v1128, 3
  %v1142 = vmul.f32 %v1131, %v1134
  %v1143 = vmul.f32 %v1131, %v1135
  %v1144 = vmul.f32 %v1131, %v1136
  %v1145 = vmul.f32 %v1131, %v1137
  %v1146 = vmul.f32 %v1126, %v1142
  %v1147 = vmul.f32 %v1125, %v1143
  %v1148 = vmul.f32 %v1124, %v1144
  %v1149 = vmul.f32 %v1123, %v1145
  %v1150 = vadd.f32 %v1110, %v1146
  %v1151 = vadd.f32 %v1111, %v1147
  %v1152 = vadd.f32 %v1112, %v1148
  %v1153 = vadd.f32 %v1113, %v1149
  %1154 = vrot.lane.b32.xlu0 %v1069, 32
  %v1155 = vpop.permute.xlu0 %1154
  %1156 = vrot.lane.b32.xlu0 %v1070, 32
  %v1157 = vpop.permute.xlu0 %1156
  %1158 = vrot.lane.b32.xlu0 %v1071, 32
  %v1159 = vpop.permute.xlu0 %1158
  %1160 = vrot.lane.b32.xlu0 %v1072, 32
  %v1161 = vpop.permute.xlu0 %1160
  %vm1162 = vcmp.lt.s32.totalorder %v70, 32
  %v1163 = vsel %vm1162, %v1159, %v1161
  %v1164 = vsel %vm1162, %v1157, %v1159
  %v1165 = vsel %vm1162, %v1155, %v1157
  %v1166 = vsel %vm1162, %v1161, %v1155
  %s1167 = scalar_lea.vmem %s3, 2
  %v1168 = vld [vmem:[%s1167] ss:$8 sm:$0xf]
  %1169 = vset.pattern.permute.xlu0 2
  %1170 = vperm.xlu0 %1169, %v1073
  %v1171 = vpop.permute.xlu0 %1170
  %v1174 = vperm.slane %v1168, 0
  %v1175 = vperm.slane %v1168, 1
  %v1176 = vperm.slane %v1168, 2
  %v1177 = vperm.slane %v1168, 3
  %v1182 = vmul.f32 %v1171, %v1174
  %v1183 = vmul.f32 %v1171, %v1175
  %v1184 = vmul.f32 %v1171, %v1176
  %v1185 = vmul.f32 %v1171, %v1177
  %v1186 = vmul.f32 %v1166, %v1182
  %v1187 = vmul.f32 %v1165, %v1183
  %v1188 = vmul.f32 %v1164, %v1184
  %v1189 = vmul.f32 %v1163, %v1185
  %v1190 = vadd.f32 %v1150, %v1186
  %v1191 = vadd.f32 %v1151, %v1187
  %v1192 = vadd.f32 %v1152, %v1188
  %v1193 = vadd.f32 %v1153, %v1189
  %1194 = vrot.lane.b32.xlu0 %v1069, 31
  %v1195 = vpop.permute.xlu0 %1194
  %1196 = vrot.lane.b32.xlu0 %v1070, 31
  %v1197 = vpop.permute.xlu0 %1196
  %1198 = vrot.lane.b32.xlu0 %v1071, 31
  %v1199 = vpop.permute.xlu0 %1198
  %1200 = vrot.lane.b32.xlu0 %v1072, 31
  %v1201 = vpop.permute.xlu0 %1200
  %vm1202 = vcmp.lt.s32.totalorder %v70, 31
  %v1203 = vsel %vm1202, %v1199, %v1201
  %v1204 = vsel %vm1202, %v1197, %v1199
  %v1205 = vsel %vm1202, %v1195, %v1197
  %v1206 = vsel %vm1202, %v1201, %v1195
  %s1207 = scalar_lea.vmem %s3, 3
  %v1208 = vld [vmem:[%s1207] ss:$8 sm:$0xf]
  %1209 = vset.pattern.permute.xlu0 3
  %1210 = vperm.xlu0 %1209, %v1073
  %v1211 = vpop.permute.xlu0 %1210
  %v1214 = vperm.slane %v1208, 0
  %v1215 = vperm.slane %v1208, 1
  %v1216 = vperm.slane %v1208, 2
  %v1217 = vperm.slane %v1208, 3
  %v1222 = vmul.f32 %v1211, %v1214
  %v1223 = vmul.f32 %v1211, %v1215
  %v1224 = vmul.f32 %v1211, %v1216
  %v1225 = vmul.f32 %v1211, %v1217
  %v1226 = vmul.f32 %v1206, %v1222
  %v1227 = vmul.f32 %v1205, %v1223
  %v1228 = vmul.f32 %v1204, %v1224
  %v1229 = vmul.f32 %v1203, %v1225
  %v1230 = vadd.f32 %v1190, %v1226
  %v1231 = vadd.f32 %v1191, %v1227
  %v1232 = vadd.f32 %v1192, %v1228
  %v1233 = vadd.f32 %v1193, %v1229
  %1234 = vrot.lane.b32.xlu0 %v1069, 30
  %v1235 = vpop.permute.xlu0 %1234
  %1236 = vrot.lane.b32.xlu0 %v1070, 30
  %v1237 = vpop.permute.xlu0 %1236
  %1238 = vrot.lane.b32.xlu0 %v1071, 30
  %v1239 = vpop.permute.xlu0 %1238
  %1240 = vrot.lane.b32.xlu0 %v1072, 30
  %v1241 = vpop.permute.xlu0 %1240
  %vm1242 = vcmp.lt.s32.totalorder %v70, 30
  %v1243 = vsel %vm1242, %v1239, %v1241
  %v1244 = vsel %vm1242, %v1237, %v1239
  %v1245 = vsel %vm1242, %v1235, %v1237
  %v1246 = vsel %vm1242, %v1241, %v1235
  %s1247 = scalar_lea.vmem %s3, 4
  %v1248 = vld [vmem:[%s1247] ss:$8 sm:$0xf]
  %1249 = vset.pattern.permute.xlu0 4
  %1250 = vperm.xlu0 %1249, %v1073
  %v1251 = vpop.permute.xlu0 %1250
  %v1254 = vperm.slane %v1248, 0
  %v1255 = vperm.slane %v1248, 1
  %v1256 = vperm.slane %v1248, 2
  %v1257 = vperm.slane %v1248, 3
  %v1262 = vmul.f32 %v1251, %v1254
  %v1263 = vmul.f32 %v1251, %v1255
  %v1264 = vmul.f32 %v1251, %v1256
  %v1265 = vmul.f32 %v1251, %v1257
  %v1266 = vmul.f32 %v1246, %v1262
  %v1267 = vmul.f32 %v1245, %v1263
  %v1268 = vmul.f32 %v1244, %v1264
  %v1269 = vmul.f32 %v1243, %v1265
  %v1270 = vadd.f32 %v1230, %v1266
  %v1271 = vadd.f32 %v1231, %v1267
  %v1272 = vadd.f32 %v1232, %v1268
  %v1273 = vadd.f32 %v1233, %v1269
  %1274 = vrot.lane.b32.xlu0 %v1069, 18
  %v1275 = vpop.permute.xlu0 %1274
  %1276 = vrot.lane.b32.xlu0 %v1070, 18
  %v1277 = vpop.permute.xlu0 %1276
  %1278 = vrot.lane.b32.xlu0 %v1071, 18
  %v1279 = vpop.permute.xlu0 %1278
  %1280 = vrot.lane.b32.xlu0 %v1072, 18
  %v1281 = vpop.permute.xlu0 %1280
  %vm1282 = vcmp.lt.s32.totalorder %v70, 18
  %v1283 = vsel %vm1282, %v1279, %v1281
  %v1284 = vsel %vm1282, %v1277, %v1279
  %v1285 = vsel %vm1282, %v1275, %v1277
  %v1286 = vsel %vm1282, %v1281, %v1275
  %s1287 = scalar_lea.vmem %s3, 5
  %v1288 = vld [vmem:[%s1287] ss:$8 sm:$0xf]
  %1289 = vset.pattern.permute.xlu0 5
  %1290 = vperm.xlu0 %1289, %v1073
  %v1291 = vpop.permute.xlu0 %1290
  %v1294 = vperm.slane %v1288, 0
  %v1295 = vperm.slane %v1288, 1
  %v1296 = vperm.slane %v1288, 2
  %v1297 = vperm.slane %v1288, 3
  %v1302 = vmul.f32 %v1291, %v1294
  %v1303 = vmul.f32 %v1291, %v1295
  %v1304 = vmul.f32 %v1291, %v1296
  %v1305 = vmul.f32 %v1291, %v1297
  %v1306 = vmul.f32 %v1286, %v1302
  %v1307 = vmul.f32 %v1285, %v1303
  %v1308 = vmul.f32 %v1284, %v1304
  %v1309 = vmul.f32 %v1283, %v1305
  %v1310 = vadd.f32 %v1270, %v1306
  %v1311 = vadd.f32 %v1271, %v1307
  %v1312 = vadd.f32 %v1272, %v1308
  %v1313 = vadd.f32 %v1273, %v1309
  %1314 = vrot.lane.b32.xlu0 %v1069, 17
  %v1315 = vpop.permute.xlu0 %1314
  %1316 = vrot.lane.b32.xlu0 %v1070, 17
  %v1317 = vpop.permute.xlu0 %1316
  %1318 = vrot.lane.b32.xlu0 %v1071, 17
  %v1319 = vpop.permute.xlu0 %1318
  %1320 = vrot.lane.b32.xlu0 %v1072, 17
  %v1321 = vpop.permute.xlu0 %1320
  %v1322 = vsel %vm71, %v1319, %v1321
  %v1323 = vsel %vm71, %v1317, %v1319
  %v1324 = vsel %vm71, %v1315, %v1317
  %v1325 = vsel %vm71, %v1321, %v1315
  %s1326 = scalar_lea.vmem %s3, 6
  %v1327 = vld [vmem:[%s1326] ss:$8 sm:$0xf]
  %1328 = vset.pattern.permute.xlu0 6
  %1329 = vperm.xlu0 %1328, %v1073
  %v1330 = vpop.permute.xlu0 %1329
  %v1333 = vperm.slane %v1327, 0
  %v1334 = vperm.slane %v1327, 1
  %v1335 = vperm.slane %v1327, 2
  %v1336 = vperm.slane %v1327, 3
  %v1341 = vmul.f32 %v1330, %v1333
  %v1342 = vmul.f32 %v1330, %v1334
  %v1343 = vmul.f32 %v1330, %v1335
  %v1344 = vmul.f32 %v1330, %v1336
  %v1345 = vmul.f32 %v1325, %v1341
  %v1346 = vmul.f32 %v1324, %v1342
  %v1347 = vmul.f32 %v1323, %v1343
  %v1348 = vmul.f32 %v1322, %v1344
  %v1349 = vadd.f32 %v1310, %v1345
  %v1350 = vadd.f32 %v1311, %v1346
  %v1351 = vadd.f32 %v1312, %v1347
  %v1352 = vadd.f32 %v1313, %v1348
  %1353 = vrot.lane.b32.xlu0 %v1069, 16
  %v1354 = vpop.permute.xlu0 %1353
  %1355 = vrot.lane.b32.xlu0 %v1070, 16
  %v1356 = vpop.permute.xlu0 %1355
  %1357 = vrot.lane.b32.xlu0 %v1071, 16
  %v1358 = vpop.permute.xlu0 %1357
  %1359 = vrot.lane.b32.xlu0 %v1072, 16
  %v1360 = vpop.permute.xlu0 %1359
  %v1361 = vsel %vm119, %v1358, %v1360
  %v1362 = vsel %vm119, %v1356, %v1358
  %v1363 = vsel %vm119, %v1354, %v1356
  %v1364 = vsel %vm119, %v1360, %v1354
  %s1365 = scalar_lea.vmem %s3, 7
  %v1366 = vld [vmem:[%s1365] ss:$8 sm:$0xf]
  %1367 = vset.pattern.permute.xlu0 7
  %1368 = vperm.xlu0 %1367, %v1073
  %v1369 = vpop.permute.xlu0 %1368
  %v1372 = vperm.slane %v1366, 0
  %v1373 = vperm.slane %v1366, 1
  %v1374 = vperm.slane %v1366, 2
  %v1375 = vperm.slane %v1366, 3
  %v1380 = vmul.f32 %v1369, %v1372
  %v1381 = vmul.f32 %v1369, %v1373
  %v1382 = vmul.f32 %v1369, %v1374
  %v1383 = vmul.f32 %v1369, %v1375
  %v1384 = vmul.f32 %v1364, %v1380
  %v1385 = vmul.f32 %v1363, %v1381
  %v1386 = vmul.f32 %v1362, %v1382
  %v1387 = vmul.f32 %v1361, %v1383
  %v1388 = vadd.f32 %v1349, %v1384
  %v1389 = vadd.f32 %v1350, %v1385
  %v1390 = vadd.f32 %v1351, %v1386
  %v1391 = vadd.f32 %v1352, %v1387
  %1392 = vrot.lane.b32.xlu0 %v1069, 15
  %v1393 = vpop.permute.xlu0 %1392
  %1394 = vrot.lane.b32.xlu0 %v1070, 15
  %v1395 = vpop.permute.xlu0 %1394
  %1396 = vrot.lane.b32.xlu0 %v1071, 15
  %v1397 = vpop.permute.xlu0 %1396
  %1398 = vrot.lane.b32.xlu0 %v1072, 15
  %v1399 = vpop.permute.xlu0 %1398
  %v1400 = vsel %vm280, %v1397, %v1399
  %v1401 = vsel %vm280, %v1395, %v1397
  %v1402 = vsel %vm280, %v1393, %v1395
  %v1403 = vsel %vm280, %v1399, %v1393
  %s1404 = scalar_lea.vmem %s3, 32
  %v1405 = vld [vmem:[%s1404] ss:$8 sm:$0xf]
  %1406 = vset.pattern.permute.xlu0 8
  %1407 = vperm.xlu0 %1406, %v1073
  %v1408 = vpop.permute.xlu0 %1407
  %v1411 = vperm.slane %v1405, 0
  %v1412 = vperm.slane %v1405, 1
  %v1413 = vperm.slane %v1405, 2
  %v1414 = vperm.slane %v1405, 3
  %v1419 = vmul.f32 %v1408, %v1411
  %v1420 = vmul.f32 %v1408, %v1412
  %v1421 = vmul.f32 %v1408, %v1413
  %v1422 = vmul.f32 %v1408, %v1414
  %v1423 = vmul.f32 %v1403, %v1419
  %v1424 = vmul.f32 %v1402, %v1420
  %v1425 = vmul.f32 %v1401, %v1421
  %v1426 = vmul.f32 %v1400, %v1422
  %v1427 = vadd.f32 %v1388, %v1423
  %v1428 = vadd.f32 %v1389, %v1424
  %v1429 = vadd.f32 %v1390, %v1425
  %v1430 = vadd.f32 %v1391, %v1426
  %1431 = vrot.lane.b32.xlu0 %v1069, 14
  %v1432 = vpop.permute.xlu0 %1431
  %1433 = vrot.lane.b32.xlu0 %v1070, 14
  %v1434 = vpop.permute.xlu0 %1433
  %1435 = vrot.lane.b32.xlu0 %v1071, 14
  %v1436 = vpop.permute.xlu0 %1435
  %1437 = vrot.lane.b32.xlu0 %v1072, 14
  %v1438 = vpop.permute.xlu0 %1437
  %vm1439 = vcmp.lt.s32.totalorder %v70, 14
  %v1440 = vsel %vm1439, %v1436, %v1438
  %v1441 = vsel %vm1439, %v1434, %v1436
  %v1442 = vsel %vm1439, %v1432, %v1434
  %v1443 = vsel %vm1439, %v1438, %v1432
  %s1444 = scalar_lea.vmem %s3, 33
  %v1445 = vld [vmem:[%s1444] ss:$8 sm:$0xf]
  %1446 = vset.pattern.permute.xlu0 9
  %1447 = vperm.xlu0 %1446, %v1073
  %v1448 = vpop.permute.xlu0 %1447
  %v1451 = vperm.slane %v1445, 0
  %v1452 = vperm.slane %v1445, 1
  %v1453 = vperm.slane %v1445, 2
  %v1454 = vperm.slane %v1445, 3
  %v1459 = vmul.f32 %v1448, %v1451
  %v1460 = vmul.f32 %v1448, %v1452
  %v1461 = vmul.f32 %v1448, %v1453
  %v1462 = vmul.f32 %v1448, %v1454
  %v1463 = vmul.f32 %v1443, %v1459
  %v1464 = vmul.f32 %v1442, %v1460
  %v1465 = vmul.f32 %v1441, %v1461
  %v1466 = vmul.f32 %v1440, %v1462
  %v1467 = vadd.f32 %v1427, %v1463
  %v1468 = vadd.f32 %v1428, %v1464
  %v1469 = vadd.f32 %v1429, %v1465
  %v1470 = vadd.f32 %v1430, %v1466
  %1471 = vrot.lane.b32.xlu0 %v1069, 2
  %v1472 = vpop.permute.xlu0 %1471
  %1473 = vrot.lane.b32.xlu0 %v1070, 2
  %v1474 = vpop.permute.xlu0 %1473
  %1475 = vrot.lane.b32.xlu0 %v1071, 2
  %v1476 = vpop.permute.xlu0 %1475
  %1477 = vrot.lane.b32.xlu0 %v1072, 2
  %v1478 = vpop.permute.xlu0 %1477
  %vm1479 = vcmp.lt.s32.totalorder %v70, 2
  %v1480 = vsel %vm1479, %v1476, %v1478
  %v1481 = vsel %vm1479, %v1474, %v1476
  %v1482 = vsel %vm1479, %v1472, %v1474
  %v1483 = vsel %vm1479, %v1478, %v1472
  %s1484 = scalar_lea.vmem %s3, 34
  %v1485 = vld [vmem:[%s1484] ss:$8 sm:$0xf]
  %1486 = vset.pattern.permute.xlu0 10
  %1487 = vperm.xlu0 %1486, %v1073
  %v1488 = vpop.permute.xlu0 %1487
  %v1491 = vperm.slane %v1485, 0
  %v1492 = vperm.slane %v1485, 1
  %v1493 = vperm.slane %v1485, 2
  %v1494 = vperm.slane %v1485, 3
  %v1499 = vmul.f32 %v1488, %v1491
  %v1500 = vmul.f32 %v1488, %v1492
  %v1501 = vmul.f32 %v1488, %v1493
  %v1502 = vmul.f32 %v1488, %v1494
  %v1503 = vmul.f32 %v1483, %v1499
  %v1504 = vmul.f32 %v1482, %v1500
  %v1505 = vmul.f32 %v1481, %v1501
  %v1506 = vmul.f32 %v1480, %v1502
  %v1507 = vadd.f32 %v1467, %v1503
  %v1508 = vadd.f32 %v1468, %v1504
  %v1509 = vadd.f32 %v1469, %v1505
  %v1510 = vadd.f32 %v1470, %v1506
  %1511 = vrot.lane.b32.xlu0 %v1069, 1
  %v1512 = vpop.permute.xlu0 %1511
  %1513 = vrot.lane.b32.xlu0 %v1070, 1
  %v1514 = vpop.permute.xlu0 %1513
  %1515 = vrot.lane.b32.xlu0 %v1071, 1
  %v1516 = vpop.permute.xlu0 %1515
  %1517 = vrot.lane.b32.xlu0 %v1072, 1
  %v1518 = vpop.permute.xlu0 %1517
  %v1519 = vsel %vm389, %v1516, %v1518
  %v1520 = vsel %vm389, %v1514, %v1516
  %v1521 = vsel %vm389, %v1512, %v1514
  %v1522 = vsel %vm389, %v1518, %v1512
  %s1523 = scalar_lea.vmem %s3, 35
  %v1524 = vld [vmem:[%s1523] ss:$8 sm:$0xf]
  %1525 = vset.pattern.permute.xlu0 11
  %1526 = vperm.xlu0 %1525, %v1073
  %v1527 = vpop.permute.xlu0 %1526
  %v1530 = vperm.slane %v1524, 0
  %v1531 = vperm.slane %v1524, 1
  %v1532 = vperm.slane %v1524, 2
  %v1533 = vperm.slane %v1524, 3
  %v1538 = vmul.f32 %v1527, %v1530
  %v1539 = vmul.f32 %v1527, %v1531
  %v1540 = vmul.f32 %v1527, %v1532
  %v1541 = vmul.f32 %v1527, %v1533
  %v1542 = vmul.f32 %v1522, %v1538
  %v1543 = vmul.f32 %v1521, %v1539
  %v1544 = vmul.f32 %v1520, %v1540
  %v1545 = vmul.f32 %v1519, %v1541
  %v1546 = vadd.f32 %v1507, %v1542
  %v1547 = vadd.f32 %v1508, %v1543
  %v1548 = vadd.f32 %v1509, %v1544
  %v1549 = vadd.f32 %v1510, %v1545
  %1550 = vset.pattern.permute.xlu0 12
  %1551 = vperm.xlu0 %1550, %v1073
  %v1552 = vpop.permute.xlu0 %1551
  %v1554 = vmul.f32 %v1069, %v1552
  %v1555 = vmul.f32 %v1070, %v1552
  %v1556 = vmul.f32 %v1071, %v1552
  %v1557 = vmul.f32 %v1072, %v1552
  %v1558 = vadd.f32 %v1546, %v1554
  %v1559 = vadd.f32 %v1547, %v1555
  %v1560 = vadd.f32 %v1548, %v1556
  %v1561 = vadd.f32 %v1549, %v1557
  %1562 = vrot.lane.b32.xlu0 %v1069, 127
  %v1563 = vpop.permute.xlu0 %1562
  %1564 = vrot.lane.b32.xlu0 %v1070, 127
  %v1565 = vpop.permute.xlu0 %1564
  %1566 = vrot.lane.b32.xlu0 %v1071, 127
  %v1567 = vpop.permute.xlu0 %1566
  %1568 = vrot.lane.b32.xlu0 %v1072, 127
  %v1569 = vpop.permute.xlu0 %1568
  %v1570 = vsel %vm563, %v1567, %v1569
  %v1571 = vsel %vm563, %v1565, %v1567
  %v1572 = vsel %vm563, %v1563, %v1565
  %v1573 = vsel %vm563, %v1569, %v1563
  %s1574 = scalar_lea.vmem %s3, 37
  %v1575 = vld [vmem:[%s1574] ss:$8 sm:$0xf]
  %1576 = vset.pattern.permute.xlu0 13
  %1577 = vperm.xlu0 %1576, %v1073
  %v1578 = vpop.permute.xlu0 %1577
  %v1581 = vperm.slane %v1575, 0
  %v1582 = vperm.slane %v1575, 1
  %v1583 = vperm.slane %v1575, 2
  %v1584 = vperm.slane %v1575, 3
  %v1589 = vmul.f32 %v1578, %v1581
  %v1590 = vmul.f32 %v1578, %v1582
  %v1591 = vmul.f32 %v1578, %v1583
  %v1592 = vmul.f32 %v1578, %v1584
  %v1593 = vmul.f32 %v1572, %v1589
  %v1594 = vmul.f32 %v1571, %v1590
  %v1595 = vmul.f32 %v1570, %v1591
  %v1596 = vmul.f32 %v1573, %v1592
  %v1597 = vadd.f32 %v1558, %v1593
  %v1598 = vadd.f32 %v1559, %v1594
  %v1599 = vadd.f32 %v1560, %v1595
  %v1600 = vadd.f32 %v1561, %v1596
  %1601 = vrot.lane.b32.xlu0 %v1069, 126
  %v1602 = vpop.permute.xlu0 %1601
  %1603 = vrot.lane.b32.xlu0 %v1070, 126
  %v1604 = vpop.permute.xlu0 %1603
  %1605 = vrot.lane.b32.xlu0 %v1071, 126
  %v1606 = vpop.permute.xlu0 %1605
  %1607 = vrot.lane.b32.xlu0 %v1072, 126
  %v1608 = vpop.permute.xlu0 %1607
  %vm1609 = vcmp.lt.s32.totalorder %v70, 126
  %v1610 = vsel %vm1609, %v1606, %v1608
  %v1611 = vsel %vm1609, %v1604, %v1606
  %v1612 = vsel %vm1609, %v1602, %v1604
  %v1613 = vsel %vm1609, %v1608, %v1602
  %s1614 = scalar_lea.vmem %s3, 38
  %v1615 = vld [vmem:[%s1614] ss:$8 sm:$0xf]
  %1616 = vset.pattern.permute.xlu0 14
  %1617 = vperm.xlu0 %1616, %v1073
  %v1618 = vpop.permute.xlu0 %1617
  %v1621 = vperm.slane %v1615, 0
  %v1622 = vperm.slane %v1615, 1
  %v1623 = vperm.slane %v1615, 2
  %v1624 = vperm.slane %v1615, 3
  %v1629 = vmul.f32 %v1618, %v1621
  %v1630 = vmul.f32 %v1618, %v1622
  %v1631 = vmul.f32 %v1618, %v1623
  %v1632 = vmul.f32 %v1618, %v1624
  %v1633 = vmul.f32 %v1612, %v1629
  %v1634 = vmul.f32 %v1611, %v1630
  %v1635 = vmul.f32 %v1610, %v1631
  %v1636 = vmul.f32 %v1613, %v1632
  %v1637 = vadd.f32 %v1597, %v1633
  %v1638 = vadd.f32 %v1598, %v1634
  %v1639 = vadd.f32 %v1599, %v1635
  %v1640 = vadd.f32 %v1600, %v1636
  %1641 = vrot.lane.b32.xlu0 %v1069, 114
  %v1642 = vpop.permute.xlu0 %1641
  %1643 = vrot.lane.b32.xlu0 %v1070, 114
  %v1644 = vpop.permute.xlu0 %1643
  %1645 = vrot.lane.b32.xlu0 %v1071, 114
  %v1646 = vpop.permute.xlu0 %1645
  %1647 = vrot.lane.b32.xlu0 %v1072, 114
  %v1648 = vpop.permute.xlu0 %1647
  %vm1649 = vcmp.lt.s32.totalorder %v70, 114
  %v1650 = vsel %vm1649, %v1646, %v1648
  %v1651 = vsel %vm1649, %v1644, %v1646
  %v1652 = vsel %vm1649, %v1642, %v1644
  %v1653 = vsel %vm1649, %v1648, %v1642
  %s1654 = scalar_lea.vmem %s3, 39
  %v1655 = vld [vmem:[%s1654] ss:$8 sm:$0xf]
  %1656 = vset.pattern.permute.xlu0 15
  %1657 = vperm.xlu0 %1656, %v1073
  %v1658 = vpop.permute.xlu0 %1657
  %v1661 = vperm.slane %v1655, 0
  %v1662 = vperm.slane %v1655, 1
  %v1663 = vperm.slane %v1655, 2
  %v1664 = vperm.slane %v1655, 3
  %v1669 = vmul.f32 %v1658, %v1661
  %v1670 = vmul.f32 %v1658, %v1662
  %v1671 = vmul.f32 %v1658, %v1663
  %v1672 = vmul.f32 %v1658, %v1664
  %v1673 = vmul.f32 %v1652, %v1669
  %v1674 = vmul.f32 %v1651, %v1670
  %v1675 = vmul.f32 %v1650, %v1671
  %v1676 = vmul.f32 %v1653, %v1672
  %v1677 = vadd.f32 %v1637, %v1673
  %v1678 = vadd.f32 %v1638, %v1674
  %v1679 = vadd.f32 %v1639, %v1675
  %v1680 = vadd.f32 %v1640, %v1676
  %1681 = vrot.lane.b32.xlu0 %v1069, 113
  %v1682 = vpop.permute.xlu0 %1681
  %1683 = vrot.lane.b32.xlu0 %v1070, 113
  %v1684 = vpop.permute.xlu0 %1683
  %1685 = vrot.lane.b32.xlu0 %v1071, 113
  %v1686 = vpop.permute.xlu0 %1685
  %1687 = vrot.lane.b32.xlu0 %v1072, 113
  %v1688 = vpop.permute.xlu0 %1687
  %v1689 = vsel %vm672, %v1686, %v1688
  %v1690 = vsel %vm672, %v1684, %v1686
  %v1691 = vsel %vm672, %v1682, %v1684
  %v1692 = vsel %vm672, %v1688, %v1682
  %s1693 = scalar_lea.vmem %s3, 64
  %v1694 = vld [vmem:[%s1693] ss:$8 sm:$0xf]
  %1695 = vset.pattern.permute.xlu0 16
  %1696 = vperm.xlu0 %1695, %v1073
  %v1697 = vpop.permute.xlu0 %1696
  %v1700 = vperm.slane %v1694, 0
  %v1701 = vperm.slane %v1694, 1
  %v1702 = vperm.slane %v1694, 2
  %v1703 = vperm.slane %v1694, 3
  %v1708 = vmul.f32 %v1697, %v1700
  %v1709 = vmul.f32 %v1697, %v1701
  %v1710 = vmul.f32 %v1697, %v1702
  %v1711 = vmul.f32 %v1697, %v1703
  %v1712 = vmul.f32 %v1691, %v1708
  %v1713 = vmul.f32 %v1690, %v1709
  %v1714 = vmul.f32 %v1689, %v1710
  %v1715 = vmul.f32 %v1692, %v1711
  %v1716 = vadd.f32 %v1677, %v1712
  %v1717 = vadd.f32 %v1678, %v1713
  %v1718 = vadd.f32 %v1679, %v1714
  %v1719 = vadd.f32 %v1680, %v1715
  %1720 = vrot.lane.b32.xlu0 %v1069, 112
  %v1721 = vpop.permute.xlu0 %1720
  %1722 = vrot.lane.b32.xlu0 %v1070, 112
  %v1723 = vpop.permute.xlu0 %1722
  %1724 = vrot.lane.b32.xlu0 %v1071, 112
  %v1725 = vpop.permute.xlu0 %1724
  %1726 = vrot.lane.b32.xlu0 %v1072, 112
  %v1727 = vpop.permute.xlu0 %1726
  %v1728 = vsel %vm781, %v1725, %v1727
  %v1729 = vsel %vm781, %v1723, %v1725
  %v1730 = vsel %vm781, %v1721, %v1723
  %v1731 = vsel %vm781, %v1727, %v1721
  %s1732 = scalar_lea.vmem %s3, 65
  %v1733 = vld [vmem:[%s1732] ss:$8 sm:$0xf]
  %1734 = vset.pattern.permute.xlu0 17
  %1735 = vperm.xlu0 %1734, %v1073
  %v1736 = vpop.permute.xlu0 %1735
  %v1739 = vperm.slane %v1733, 0
  %v1740 = vperm.slane %v1733, 1
  %v1741 = vperm.slane %v1733, 2
  %v1742 = vperm.slane %v1733, 3
  %v1747 = vmul.f32 %v1736, %v1739
  %v1748 = vmul.f32 %v1736, %v1740
  %v1749 = vmul.f32 %v1736, %v1741
  %v1750 = vmul.f32 %v1736, %v1742
  %v1751 = vmul.f32 %v1730, %v1747
  %v1752 = vmul.f32 %v1729, %v1748
  %v1753 = vmul.f32 %v1728, %v1749
  %v1754 = vmul.f32 %v1731, %v1750
  %v1755 = vadd.f32 %v1716, %v1751
  %v1756 = vadd.f32 %v1717, %v1752
  %v1757 = vadd.f32 %v1718, %v1753
  %v1758 = vadd.f32 %v1719, %v1754
  %1759 = vrot.lane.b32.xlu0 %v1069, 111
  %v1760 = vpop.permute.xlu0 %1759
  %1761 = vrot.lane.b32.xlu0 %v1070, 111
  %v1762 = vpop.permute.xlu0 %1761
  %1763 = vrot.lane.b32.xlu0 %v1071, 111
  %v1764 = vpop.permute.xlu0 %1763
  %1765 = vrot.lane.b32.xlu0 %v1072, 111
  %v1766 = vpop.permute.xlu0 %1765
  %v1767 = vsel %vm890, %v1764, %v1766
  %v1768 = vsel %vm890, %v1762, %v1764
  %v1769 = vsel %vm890, %v1760, %v1762
  %v1770 = vsel %vm890, %v1766, %v1760
  %s1771 = scalar_lea.vmem %s3, 66
  %v1772 = vld [vmem:[%s1771] ss:$8 sm:$0xf]
  %1773 = vset.pattern.permute.xlu0 18
  %1774 = vperm.xlu0 %1773, %v1073
  %v1775 = vpop.permute.xlu0 %1774
  %v1778 = vperm.slane %v1772, 0
  %v1779 = vperm.slane %v1772, 1
  %v1780 = vperm.slane %v1772, 2
  %v1781 = vperm.slane %v1772, 3
  %v1786 = vmul.f32 %v1775, %v1778
  %v1787 = vmul.f32 %v1775, %v1779
  %v1788 = vmul.f32 %v1775, %v1780
  %v1789 = vmul.f32 %v1775, %v1781
  %v1790 = vmul.f32 %v1769, %v1786
  %v1791 = vmul.f32 %v1768, %v1787
  %v1792 = vmul.f32 %v1767, %v1788
  %v1793 = vmul.f32 %v1770, %v1789
  %v1794 = vadd.f32 %v1755, %v1790
  %v1795 = vadd.f32 %v1756, %v1791
  %v1796 = vadd.f32 %v1757, %v1792
  %v1797 = vadd.f32 %v1758, %v1793
  %1798 = vrot.lane.b32.xlu0 %v1069, 110
  %v1799 = vpop.permute.xlu0 %1798
  %1800 = vrot.lane.b32.xlu0 %v1070, 110
  %v1801 = vpop.permute.xlu0 %1800
  %1802 = vrot.lane.b32.xlu0 %v1071, 110
  %v1803 = vpop.permute.xlu0 %1802
  %1804 = vrot.lane.b32.xlu0 %v1072, 110
  %v1805 = vpop.permute.xlu0 %1804
  %vm1806 = vcmp.lt.s32.totalorder %v70, 110
  %v1807 = vsel %vm1806, %v1803, %v1805
  %v1808 = vsel %vm1806, %v1801, %v1803
  %v1809 = vsel %vm1806, %v1799, %v1801
  %v1810 = vsel %vm1806, %v1805, %v1799
  %s1811 = scalar_lea.vmem %s3, 67
  %v1812 = vld [vmem:[%s1811] ss:$8 sm:$0xf]
  %1813 = vset.pattern.permute.xlu0 19
  %1814 = vperm.xlu0 %1813, %v1073
  %v1815 = vpop.permute.xlu0 %1814
  %v1818 = vperm.slane %v1812, 0
  %v1819 = vperm.slane %v1812, 1
  %v1820 = vperm.slane %v1812, 2
  %v1821 = vperm.slane %v1812, 3
  %v1826 = vmul.f32 %v1815, %v1818
  %v1827 = vmul.f32 %v1815, %v1819
  %v1828 = vmul.f32 %v1815, %v1820
  %v1829 = vmul.f32 %v1815, %v1821
  %v1830 = vmul.f32 %v1809, %v1826
  %v1831 = vmul.f32 %v1808, %v1827
  %v1832 = vmul.f32 %v1807, %v1828
  %v1833 = vmul.f32 %v1810, %v1829
  %v1834 = vadd.f32 %v1794, %v1830
  %v1835 = vadd.f32 %v1795, %v1831
  %v1836 = vadd.f32 %v1796, %v1832
  %v1837 = vadd.f32 %v1797, %v1833
  %1838 = vrot.lane.b32.xlu0 %v1069, 98
  %v1839 = vpop.permute.xlu0 %1838
  %1840 = vrot.lane.b32.xlu0 %v1070, 98
  %v1841 = vpop.permute.xlu0 %1840
  %1842 = vrot.lane.b32.xlu0 %v1071, 98
  %v1843 = vpop.permute.xlu0 %1842
  %1844 = vrot.lane.b32.xlu0 %v1072, 98
  %v1845 = vpop.permute.xlu0 %1844
  %vm1846 = vcmp.lt.s32.totalorder %v70, 98
  %v1847 = vsel %vm1846, %v1843, %v1845
  %v1848 = vsel %vm1846, %v1841, %v1843
  %v1849 = vsel %vm1846, %v1839, %v1841
  %v1850 = vsel %vm1846, %v1845, %v1839
  %s1851 = scalar_lea.vmem %s3, 68
  %v1852 = vld [vmem:[%s1851] ss:$8 sm:$0xf]
  %1853 = vset.pattern.permute.xlu0 20
  %1854 = vperm.xlu0 %1853, %v1073
  %v1855 = vpop.permute.xlu0 %1854
  %v1858 = vperm.slane %v1852, 0
  %v1859 = vperm.slane %v1852, 1
  %v1860 = vperm.slane %v1852, 2
  %v1861 = vperm.slane %v1852, 3
  %v1866 = vmul.f32 %v1855, %v1858
  %v1867 = vmul.f32 %v1855, %v1859
  %v1868 = vmul.f32 %v1855, %v1860
  %v1869 = vmul.f32 %v1855, %v1861
  %v1870 = vmul.f32 %v1849, %v1866
  %v1871 = vmul.f32 %v1848, %v1867
  %v1872 = vmul.f32 %v1847, %v1868
  %v1873 = vmul.f32 %v1850, %v1869
  %v1874 = vadd.f32 %v1834, %v1870
  %v1875 = vadd.f32 %v1835, %v1871
  %v1876 = vadd.f32 %v1836, %v1872
  %v1877 = vadd.f32 %v1837, %v1873
  %1878 = vrot.lane.b32.xlu0 %v1069, 97
  %v1879 = vpop.permute.xlu0 %1878
  %1880 = vrot.lane.b32.xlu0 %v1070, 97
  %v1881 = vpop.permute.xlu0 %1880
  %1882 = vrot.lane.b32.xlu0 %v1071, 97
  %v1883 = vpop.permute.xlu0 %1882
  %1884 = vrot.lane.b32.xlu0 %v1072, 97
  %v1885 = vpop.permute.xlu0 %1884
  %vm1886 = vcmp.lt.s32.totalorder %v70, 97
  %v1887 = vsel %vm1886, %v1883, %v1885
  %v1888 = vsel %vm1886, %v1881, %v1883
  %v1889 = vsel %vm1886, %v1879, %v1881
  %v1890 = vsel %vm1886, %v1885, %v1879
  %s1891 = scalar_lea.vmem %s3, 69
  %v1892 = vld [vmem:[%s1891] ss:$8 sm:$0xf]
  %1893 = vset.pattern.permute.xlu0 21
  %1894 = vperm.xlu0 %1893, %v1073
  %v1895 = vpop.permute.xlu0 %1894
  %v1898 = vperm.slane %v1892, 0
  %v1899 = vperm.slane %v1892, 1
  %v1900 = vperm.slane %v1892, 2
  %v1901 = vperm.slane %v1892, 3
  %v1906 = vmul.f32 %v1895, %v1898
  %v1907 = vmul.f32 %v1895, %v1899
  %v1908 = vmul.f32 %v1895, %v1900
  %v1909 = vmul.f32 %v1895, %v1901
  %v1910 = vmul.f32 %v1889, %v1906
  %v1911 = vmul.f32 %v1888, %v1907
  %v1912 = vmul.f32 %v1887, %v1908
  %v1913 = vmul.f32 %v1890, %v1909
  %v1914 = vadd.f32 %v1874, %v1910
  %v1915 = vadd.f32 %v1875, %v1911
  %v1916 = vadd.f32 %v1876, %v1912
  %v1917 = vadd.f32 %v1877, %v1913
  %1918 = vrot.lane.b32.xlu0 %v1069, 96
  %v1919 = vpop.permute.xlu0 %1918
  %1920 = vrot.lane.b32.xlu0 %v1070, 96
  %v1921 = vpop.permute.xlu0 %1920
  %1922 = vrot.lane.b32.xlu0 %v1071, 96
  %v1923 = vpop.permute.xlu0 %1922
  %1924 = vrot.lane.b32.xlu0 %v1072, 96
  %v1925 = vpop.permute.xlu0 %1924
  %vm1926 = vcmp.lt.s32.totalorder %v70, 96
  %v1927 = vsel %vm1926, %v1923, %v1925
  %v1928 = vsel %vm1926, %v1921, %v1923
  %v1929 = vsel %vm1926, %v1919, %v1921
  %v1930 = vsel %vm1926, %v1925, %v1919
  %s1931 = scalar_lea.vmem %s3, 70
  %v1932 = vld [vmem:[%s1931] ss:$8 sm:$0xf]
  %1933 = vset.pattern.permute.xlu0 22
  %1934 = vperm.xlu0 %1933, %v1073
  %v1935 = vpop.permute.xlu0 %1934
  %v1938 = vperm.slane %v1932, 0
  %v1939 = vperm.slane %v1932, 1
  %v1940 = vperm.slane %v1932, 2
  %v1941 = vperm.slane %v1932, 3
  %v1946 = vmul.f32 %v1935, %v1938
  %v1947 = vmul.f32 %v1935, %v1939
  %v1948 = vmul.f32 %v1935, %v1940
  %v1949 = vmul.f32 %v1935, %v1941
  %v1950 = vmul.f32 %v1929, %v1946
  %v1951 = vmul.f32 %v1928, %v1947
  %v1952 = vmul.f32 %v1927, %v1948
  %v1953 = vmul.f32 %v1930, %v1949
  %v1954 = vadd.f32 %v1914, %v1950
  %v1955 = vadd.f32 %v1915, %v1951
  %v1956 = vadd.f32 %v1916, %v1952
  %v1957 = vadd.f32 %v1917, %v1953
  %1958 = vrot.lane.b32.xlu0 %v1069, 95
  %v1959 = vpop.permute.xlu0 %1958
  %1960 = vrot.lane.b32.xlu0 %v1070, 95
  %v1961 = vpop.permute.xlu0 %1960
  %1962 = vrot.lane.b32.xlu0 %v1071, 95
  %v1963 = vpop.permute.xlu0 %1962
  %1964 = vrot.lane.b32.xlu0 %v1072, 95
  %v1965 = vpop.permute.xlu0 %1964
  %vm1966 = vcmp.lt.s32.totalorder %v70, 95
  %v1967 = vsel %vm1966, %v1963, %v1965
  %v1968 = vsel %vm1966, %v1961, %v1963
  %v1969 = vsel %vm1966, %v1959, %v1961
  %v1970 = vsel %vm1966, %v1965, %v1959
  %s1971 = scalar_lea.vmem %s3, 71
  %v1972 = vld [vmem:[%s1971] ss:$8 sm:$0xf]
  %1973 = vset.pattern.permute.xlu0 23
  %1974 = vperm.xlu0 %1973, %v1073
  %v1975 = vpop.permute.xlu0 %1974
  %v1978 = vperm.slane %v1972, 0
  %v1979 = vperm.slane %v1972, 1
  %v1980 = vperm.slane %v1972, 2
  %v1981 = vperm.slane %v1972, 3
  %v1986 = vmul.f32 %v1975, %v1978
  %v1987 = vmul.f32 %v1975, %v1979
  %v1988 = vmul.f32 %v1975, %v1980
  %v1989 = vmul.f32 %v1975, %v1981
  %v1990 = vmul.f32 %v1969, %v1986
  %v1991 = vmul.f32 %v1968, %v1987
  %v1992 = vmul.f32 %v1967, %v1988
  %v1993 = vmul.f32 %v1970, %v1989
  %v1994 = vadd.f32 %v1954, %v1990
  %v1995 = vadd.f32 %v1955, %v1991
  %v1996 = vadd.f32 %v1956, %v1992
  %v1997 = vadd.f32 %v1957, %v1993
  %1998 = vrot.lane.b32.xlu0 %v1069, 94
  %v1999 = vpop.permute.xlu0 %1998
  %2000 = vrot.lane.b32.xlu0 %v1070, 94
  %v2001 = vpop.permute.xlu0 %2000
  %2002 = vrot.lane.b32.xlu0 %v1071, 94
  %v2003 = vpop.permute.xlu0 %2002
  %2004 = vrot.lane.b32.xlu0 %v1072, 94
  %v2005 = vpop.permute.xlu0 %2004
  %vm2006 = vcmp.lt.s32.totalorder %v70, 94
  %v2007 = vsel %vm2006, %v2003, %v2005
  %v2008 = vsel %vm2006, %v2001, %v2003
  %v2009 = vsel %vm2006, %v1999, %v2001
  %v2010 = vsel %vm2006, %v2005, %v1999
  %s2011 = scalar_lea.vmem %s3, 96
  %v2012 = vld [vmem:[%s2011] ss:$8 sm:$0xf]
  %2013 = vset.pattern.permute.xlu0 24
  %2014 = vperm.xlu0 %2013, %v1073
  %v2015 = vpop.permute.xlu0 %2014
  %v2018 = vperm.slane %v2012, 0
  %v2019 = vperm.slane %v2012, 1
  %v2020 = vperm.slane %v2012, 2
  %v2021 = vperm.slane %v2012, 3
  %v2026 = vmul.f32 %v2015, %v2018
  %v2027 = vmul.f32 %v2015, %v2019
  %v2028 = vmul.f32 %v2015, %v2020
  %v2029 = vmul.f32 %v2015, %v2021
  %v2030 = vmul.f32 %v2009, %v2026
  %v2031 = vmul.f32 %v2008, %v2027
  %v2032 = vmul.f32 %v2007, %v2028
  %v2033 = vmul.f32 %v2010, %v2029
  %v2034 = vadd.f32 %v1994, %v2030
  %v2035 = vadd.f32 %v1995, %v2031
  %v2036 = vadd.f32 %v1996, %v2032
  %v2037 = vadd.f32 %v1997, %v2033
  %v2038 = vld [vmem:[%s7] sm:$0xf]
  %2040 = vset.pattern.permute.xlu0 0
  %2041 = vperm.xlu0 %2040, %v2038
  %v2042 = vpop.permute.xlu0 %2041
  %v2044 = vadd.f32 %v2034, %v2042
  %v2045 = vadd.f32 %v2035, %v2042
  %v2046 = vadd.f32 %v2036, %v2042
  %v2047 = vadd.f32 %v2037, %v2042
  %v2048 = vxor.u32 %v2044, 2147483648
  %v2049 = vxor.u32 %v2045, 2147483648
  %v2050 = vxor.u32 %v2046, 2147483648
  %v2051 = vxor.u32 %v2047, 2147483648
  %v2052 = vmul.f32 %v2048, 1.442695
  %v2053 = vpow.pop %v2052
  %v2054 = vmul.f32 %v2049, 1.442695
  %v2055 = vpow.pop %v2054
  %v2056 = vmul.f32 %v2050, 1.442695
  %v2057 = vpow.pop %v2056
  %v2058 = vmul.f32 %v2051, 1.442695
  %v2059 = vpow.pop %v2058
  %v2060 = vadd.f32 %v2053, 1.0
  %v2061 = vadd.f32 %v2055, 1.0
  %v2062 = vadd.f32 %v2057, 1.0
  %v2063 = vadd.f32 %v2059, 1.0
  %v2064 = vrcp.pop %v2060
  %v2065 = vmul.f32 %v2060, %v2064
  %v2066 = vsub.f32 1.0, %v2065
  %v2067 = vmul.f32 %v2064, %v2066
  %v2068 = vadd.f32 %v2064, %v2067
  %vm2069 = vweird.f32 %v2060
  %vm2070 = vweird.f32 %v2064
  %vm2071 = vmor %vm2069, %vm2070
  %v2072 = vsel %vm2071, %v2064, %v2068
  %v2073 = vand.u32 2147483647, %v2060
  %vm2074 = vcmp.eq.f32.partialorder %v2073, 8.507059e+37
  %v2075 = vand.u32 %v2060, 2147483648
  %v2076 = vor.u32 1.1754944e-38, %v2075
  %v2077 = vsel %vm2074, %v2076, %v2072
  %v2078 = vmul.f32 1.0, %v2077
  %v2079 = vrcp.pop %v2061
  %v2080 = vmul.f32 %v2061, %v2079
  %v2081 = vsub.f32 1.0, %v2080
  %v2082 = vmul.f32 %v2079, %v2081
  %v2083 = vadd.f32 %v2079, %v2082
  %vm2084 = vweird.f32 %v2061
  %vm2085 = vweird.f32 %v2079
  %vm2086 = vmor %vm2084, %vm2085
  %v2087 = vsel %vm2086, %v2079, %v2083
  %v2088 = vand.u32 2147483647, %v2061
  %vm2089 = vcmp.eq.f32.partialorder %v2088, 8.507059e+37
  %v2090 = vand.u32 %v2061, 2147483648
  %v2091 = vor.u32 1.1754944e-38, %v2090
  %v2092 = vsel %vm2089, %v2091, %v2087
  %v2093 = vmul.f32 1.0, %v2092
  %v2094 = vrcp.pop %v2062
  %v2095 = vmul.f32 %v2062, %v2094
  %v2096 = vsub.f32 1.0, %v2095
  %v2097 = vmul.f32 %v2094, %v2096
  %v2098 = vadd.f32 %v2094, %v2097
  %vm2099 = vweird.f32 %v2062
  %vm2100 = vweird.f32 %v2094
  %vm2101 = vmor %vm2099, %vm2100
  %v2102 = vsel %vm2101, %v2094, %v2098
  %v2103 = vand.u32 2147483647, %v2062
  %vm2104 = vcmp.eq.f32.partialorder %v2103, 8.507059e+37
  %v2105 = vand.u32 %v2062, 2147483648
  %v2106 = vor.u32 1.1754944e-38, %v2105
  %v2107 = vsel %vm2104, %v2106, %v2102
  %v2108 = vmul.f32 1.0, %v2107
  %v2109 = vrcp.pop %v2063
  %v2110 = vmul.f32 %v2063, %v2109
  %v2111 = vsub.f32 1.0, %v2110
  %v2112 = vmul.f32 %v2109, %v2111
  %v2113 = vadd.f32 %v2109, %v2112
  %vm2114 = vweird.f32 %v2063
  %vm2115 = vweird.f32 %v2109
  %vm2116 = vmor %vm2114, %vm2115
  %v2117 = vsel %vm2116, %v2109, %v2113
  %v2118 = vand.u32 2147483647, %v2063
  %vm2119 = vcmp.eq.f32.partialorder %v2118, 8.507059e+37
  %v2120 = vand.u32 %v2063, 2147483648
  %v2121 = vor.u32 1.1754944e-38, %v2120
  %v2122 = vsel %vm2119, %v2121, %v2117
  %v2123 = vmul.f32 1.0, %v2122
  %v2124 = vmul.f32 %v2044, %v2078
  %v2125 = vmul.f32 %v2045, %v2093
  %v2126 = vmul.f32 %v2046, %v2108
  %v2127 = vmul.f32 %v2047, %v2123
  %v2132 = vrot.slane %v2124, 4
  %v2133 = vrot.slane %v2125, 4
  %v2134 = vrot.slane %v2126, 4
  %v2135 = vrot.slane %v2127, 4
  %vm2140 = vcmask 1043456
  %v2141 = vsel %vm2140, %v1069, %v2132
  %v2142 = vsel %vm2140, %v1070, %v2133
  %v2143 = vsel %vm2140, %v1071, %v2134
  %v2144 = vsel %vm2140, %v1072, %v2135
  %v2145 = vld [vmem:[%s1] ss:$2 sm:$0xf]
  %v2147 = vperm.slane %v2145, 0
  %v2148 = vperm.slane %v2145, 1
  %v2149 = vperm.slane %v2145, 2
  %v2150 = vperm.slane %v2145, 3
  %v2155 = vmul.f32 %v2141, %v2147
  %v2156 = vmul.f32 %v2142, %v2148
  %v2157 = vmul.f32 %v2143, %v2149
  %v2158 = vmul.f32 %v2144, %v2150
  %v2159 = vadd.f32 %v2155, %v2156
  %v2160 = vadd.f32 %v2159, %v2157
  %v2161 = vadd.f32 %v2160, %v2158
  %2162 = vadd.xlane.f32.xlu0 %v2161
  %v2163 = vpop.xlane.xlu0 %2162
  %v2164 = vmul.f32 %v2163, 0.00390625
  %v2165 = vld [vmem:[%s8] sm:$0xff]
  %v2166 = vld [vmem:[%s8 + $0x8] sm:$0xff]
  %v2167 = vld [vmem:[%s9] sm:$0xff]
  %v2168 = vld [vmem:[%s9 + $0x8] sm:$0xff]
  %vm2169 = vcmask 64512
  %v2171 = vsel %vm2169, %v2165, 0
  %v2174 = vsel %vm2169, %v2166, 0
  %2176 = vmatpush.msra.mxu0 0.0
  %2177 = vmatpush.msra.mxu0 0.0
  %2178 = vmatpush.msra.mxu0 0.0
  %2179 = vmatpush.msra.mxu0 0.0
  %2180 = vmatpush.msra.mxu0 0.0
  %2181 = vmatpush.msra.mxu0 0.0
  %2182 = vmatpush.msra.mxu0 0.0
  %2183 = vmatpush.msra.mxu0 0.0
  %2184 = vmatpush.msra.mxu0 0.0
  %2185 = vmatpush.msra.mxu0 0.0
  %2186 = vmatpush.msra.mxu0 0.0
  %2187 = vmatpush.msra.mxu0 0.0
  %2188 = vmatpush.msra.mxu0 0.0
  %2189 = vmatpush.msra.mxu0 0.0
  %2190 = vmatpush.msra.mxu0 0.0
  %2191 = vmatpush.msra.mxu0 %v2164
  %2192 = vmatmul.f32.gmra.mxu0 %v2171
  %v2193 = vpop.f32.mrf.mxu0
  %v2194 = vadd.f32 %v2167, %v2193
  %2195 = vmatmul.f32.gmra.mxu0 %v2174
  %v2196 = vpop.f32.mrf.mxu0
  %v2197 = vadd.f32 %v2168, %v2196
  %2198 = vdwg.mxu0
  %v2199 = vmax.f32 %v2194, 0.0
  %v2200 = vmax.f32 %v2197, 0.0
  %v2201 = vld [vmem:[%s10] sm:$0xff]
  %v2202 = vld [vmem:[%s10 + $0x8] sm:$0xff]
  %v2203 = vld [vmem:[%s10 + $0x10] sm:$0xff]
  %v2204 = vld [vmem:[%s10 + $0x18] sm:$0xff]
  %v2205 = vld [vmem:[%s10 + $0x20] sm:$0x1f]
  %v2206 = vld [vmem:[%s11] sm:$0xff]
  %v2207 = vld [vmem:[%s11 + $0x8] sm:$0xff]
  %v2208 = vld [vmem:[%s11 + $0x10] sm:$0xff]
  %v2209 = vld [vmem:[%s11 + $0x18] sm:$0xff]
  %v2210 = vld [vmem:[%s11 + $0x20] sm:$0x1f]
  %v2212 = vsel %vm153, %v2201, 0
  %v2215 = vsel %vm153, %v2202, 0
  %v2218 = vsel %vm153, %v2203, 0
  %v2221 = vsel %vm153, %v2204, 0
  %v2224 = vsel %vm153, %v2205, 0
  %2226 = vmatpush.msra.mxu0 0.0
  %2227 = vmatpush.msra.mxu0 0.0
  %2228 = vmatpush.msra.mxu0 0.0
  %2229 = vmatpush.msra.mxu0 0.0
  %2230 = vmatpush.msra.mxu0 0.0
  %2231 = vmatpush.msra.mxu0 0.0
  %2232 = vmatpush.msra.mxu0 0.0
  %2233 = vmatpush.msra.mxu0 0.0
  %2234 = vmatpush.msra.mxu0 0.0
  %2235 = vmatpush.msra.mxu0 0.0
  %2236 = vmatpush.msra.mxu0 0.0
  %2237 = vmatpush.msra.mxu0 0.0
  %2238 = vmatpush.msra.mxu0 0.0
  %2239 = vmatpush.msra.mxu0 0.0
  %2240 = vmatpush.msra.mxu0 %v2200
  %2241 = vmatpush.msra.mxu0 %v2199
  %2242 = vmatmul.f32.gmra.mxu0 %v2212
  %v2243 = vpop.f32.mrf.mxu0
  %v2244 = vadd.f32 %v2206, %v2243
  %2245 = vmatmul.f32.gmra.mxu0 %v2215
  %v2246 = vpop.f32.mrf.mxu0
  %v2247 = vadd.f32 %v2207, %v2246
  %2248 = vmatmul.f32.gmra.mxu0 %v2218
  %v2249 = vpop.f32.mrf.mxu0
  %v2250 = vadd.f32 %v2208, %v2249
  %2251 = vmatmul.f32.gmra.mxu0 %v2221
  %v2252 = vpop.f32.mrf.mxu0
  %v2253 = vadd.f32 %v2209, %v2252
  %2254 = vmatmul.f32.gmra.mxu0 %v2224
  %v2255 = vpop.f32.mrf.mxu0
  %v2256 = vadd.f32 %v2210, %v2255
  %2257 = vdwg.mxu0
  %v2258 = vxor.u32 %v2244, 2147483648
  %v2259 = vmul.f32 %v2258, 1.442695
  %v2260 = vpow.pop %v2259
  %v2261 = vadd.f32 %v2260, 1.0
  %v2262 = vrcp.pop %v2261
  %v2263 = vmul.f32 %v2261, %v2262
  %v2264 = vsub.f32 1.0, %v2263
  %v2265 = vmul.f32 %v2262, %v2264
  %v2266 = vadd.f32 %v2262, %v2265
  %vm2267 = vweird.f32 %v2261
  %vm2268 = vweird.f32 %v2262
  %vm2269 = vmor %vm2267, %vm2268
  %v2270 = vsel %vm2269, %v2262, %v2266
  %v2271 = vand.u32 2147483647, %v2261
  %vm2272 = vcmp.eq.f32.partialorder %v2271, 8.507059e+37
  %v2273 = vand.u32 %v2261, 2147483648
  %v2274 = vor.u32 1.1754944e-38, %v2273
  %v2275 = vsel %vm2272, %v2274, %v2270
  %v2276 = vmul.f32 1.0, %v2275
  %v2277 = vxor.u32 %v2247, 2147483648
  %v2278 = vxor.u32 %v2250, 2147483648
  %v2279 = vmul.f32 %v2277, 1.442695
  %v2280 = vpow.pop %v2279
  %v2281 = vmul.f32 %v2278, 1.442695
  %v2282 = vpow.pop %v2281
  %v2283 = vadd.f32 %v2280, 1.0
  %v2284 = vadd.f32 %v2282, 1.0
  %v2285 = vrcp.pop %v2283
  %v2286 = vmul.f32 %v2283, %v2285
  %v2287 = vsub.f32 1.0, %v2286
  %v2288 = vmul.f32 %v2285, %v2287
  %v2289 = vadd.f32 %v2285, %v2288
  %vm2290 = vweird.f32 %v2283
  %vm2291 = vweird.f32 %v2285
  %vm2292 = vmor %vm2290, %vm2291
  %v2293 = vsel %vm2292, %v2285, %v2289
  %v2294 = vand.u32 2147483647, %v2283
  %vm2295 = vcmp.eq.f32.partialorder %v2294, 8.507059e+37
  %v2296 = vand.u32 %v2283, 2147483648
  %v2297 = vor.u32 1.1754944e-38, %v2296
  %v2298 = vsel %vm2295, %v2297, %v2293
  %v2299 = vmul.f32 1.0, %v2298
  %v2300 = vrcp.pop %v2284
  %v2301 = vmul.f32 %v2284, %v2300
  %v2302 = vsub.f32 1.0, %v2301
  %v2303 = vmul.f32 %v2300, %v2302
  %v2304 = vadd.f32 %v2300, %v2303
  %vm2305 = vweird.f32 %v2284
  %vm2306 = vweird.f32 %v2300
  %vm2307 = vmor %vm2305, %vm2306
  %v2308 = vsel %vm2307, %v2300, %v2304
  %v2309 = vand.u32 2147483647, %v2284
  %vm2310 = vcmp.eq.f32.partialorder %v2309, 8.507059e+37
  %v2311 = vand.u32 %v2284, 2147483648
  %v2312 = vor.u32 1.1754944e-38, %v2311
  %v2313 = vsel %vm2310, %v2312, %v2308
  %v2314 = vmul.f32 1.0, %v2313
  %v2315 = vxor.u32 %v2253, 2147483648
  %v2316 = vxor.u32 %v2256, 2147483648
  %v2317 = vmul.f32 %v2315, 1.442695
  %v2318 = vpow.pop %v2317
  %v2319 = vmul.f32 %v2316, 1.442695
  %v2320 = vpow.pop %v2319
  %v2321 = vadd.f32 %v2318, 1.0
  %v2322 = vadd.f32 %v2320, 1.0
  %v2323 = vrcp.pop %v2321
  %v2324 = vmul.f32 %v2321, %v2323
  %v2325 = vsub.f32 1.0, %v2324
  %v2326 = vmul.f32 %v2323, %v2325
  %v2327 = vadd.f32 %v2323, %v2326
  %vm2328 = vweird.f32 %v2321
  %vm2329 = vweird.f32 %v2323
  %vm2330 = vmor %vm2328, %vm2329
  %v2331 = vsel %vm2330, %v2323, %v2327
  %v2332 = vand.u32 2147483647, %v2321
  %vm2333 = vcmp.eq.f32.partialorder %v2332, 8.507059e+37
  %v2334 = vand.u32 %v2321, 2147483648
  %v2335 = vor.u32 1.1754944e-38, %v2334
  %v2336 = vsel %vm2333, %v2335, %v2331
  %v2337 = vmul.f32 1.0, %v2336
  %v2338 = vrcp.pop %v2322
  %v2339 = vmul.f32 %v2322, %v2338
  %v2340 = vsub.f32 1.0, %v2339
  %v2341 = vmul.f32 %v2338, %v2340
  %v2342 = vadd.f32 %v2338, %v2341
  %vm2343 = vweird.f32 %v2322
  %vm2344 = vweird.f32 %v2338
  %vm2345 = vmor %vm2343, %vm2344
  %v2346 = vsel %vm2345, %v2338, %v2342
  %v2347 = vand.u32 2147483647, %v2322
  %vm2348 = vcmp.eq.f32.partialorder %v2347, 8.507059e+37
  %v2349 = vand.u32 %v2322, 2147483648
  %v2350 = vor.u32 1.1754944e-38, %v2349
  %v2351 = vsel %vm2348, %v2350, %v2346
  %v2352 = vmul.f32 1.0, %v2351
  %vm2353 = vcmask 4097
  %v2354 = vsel %vm2353, %v2256, -inf
  %v2355 = vrot.slane %v2354, 4
  %v2356 = vmax.f32 %v2354, %v2355
  %v2357 = vrot.slane %v2356, 2
  %v2358 = vmax.f32 %v2356, %v2357
  %v2359 = vrot.slane %v2358, 1
  %v2360 = vmax.f32 %v2358, %v2359
  %v2361 = vsub.f32 %v2256, %v2360
  %v2362 = vmul.f32 %v2361, 1.442695
  %v2363 = vpow.pop %v2362
  %v2365 = vrot.slane %v2363, 1
  %vm2367 = vcmask 3072
  %v2368 = vsel %vm2367, %v2365, 0.0
  %v2369 = vrot.slane %v2368, 4
  %v2370 = vadd.f32 %v2368, %v2369
  %v2371 = vrot.slane %v2370, 2
  %v2372 = vadd.f32 %v2370, %v2371
  %v2373 = vrot.slane %v2372, 1
  %v2374 = vadd.f32 %v2372, %v2373
  %v2375 = vrcp.pop %v2374
  %v2376 = vmul.f32 %v2374, %v2375
  %v2377 = vsub.f32 1.0, %v2376
  %v2378 = vmul.f32 %v2375, %v2377
  %v2379 = vadd.f32 %v2375, %v2378
  %vm2380 = vweird.f32 %v2374
  %vm2381 = vweird.f32 %v2375
  %vm2382 = vmor %vm2380, %vm2381
  %v2383 = vsel %vm2382, %v2375, %v2379
  %v2384 = vand.u32 2147483647, %v2374
  %vm2385 = vcmp.eq.f32.partialorder %v2384, 8.507059e+37
  %v2386 = vand.u32 %v2374, 2147483648
  %v2387 = vor.u32 1.1754944e-38, %v2386
  %v2388 = vsel %vm2385, %v2387, %v2383
  %v2389 = vmul.f32 %v2363, %v2388
  %s2390 = scalar_lea.vmem %s1, 1
  %v2391 = vld [vmem:[%s2390] ss:$2 sm:$0xf]
  %v2393 = vperm.slane %v2391, 0
  %v2394 = vperm.slane %v2391, 1
  %v2395 = vperm.slane %v2391, 2
  %v2396 = vperm.slane %v2391, 3
  %v2401 = vmul.f32 %v2141, %v2393
  %v2402 = vmul.f32 %v2142, %v2394
  %v2403 = vmul.f32 %v2143, %v2395
  %v2404 = vmul.f32 %v2144, %v2396
  %v2405 = vadd.f32 %v2401, %v2402
  %v2406 = vadd.f32 %v2405, %v2403
  %v2407 = vadd.f32 %v2406, %v2404
  %2408 = vadd.xlane.f32.xlu0 %v2407
  %v2409 = vpop.xlane.xlu0 %2408
  %v2410 = vmul.f32 %v2409, 0.00390625
  %2411 = vmatpush.msra.mxu0 0.0
  %2412 = vmatpush.msra.mxu0 0.0
  %2413 = vmatpush.msra.mxu0 0.0
  %2414 = vmatpush.msra.mxu0 0.0
  %2415 = vmatpush.msra.mxu0 0.0
  %2416 = vmatpush.msra.mxu0 0.0
  %2417 = vmatpush.msra.mxu0 0.0
  %2418 = vmatpush.msra.mxu0 0.0
  %2419 = vmatpush.msra.mxu0 0.0
  %2420 = vmatpush.msra.mxu0 0.0
  %2421 = vmatpush.msra.mxu0 0.0
  %2422 = vmatpush.msra.mxu0 0.0
  %2423 = vmatpush.msra.mxu0 0.0
  %2424 = vmatpush.msra.mxu0 0.0
  %2425 = vmatpush.msra.mxu0 0.0
  %2426 = vmatpush.msra.mxu0 %v2410
  %2427 = vmatmul.f32.gmra.mxu0 %v2171
  %v2428 = vpop.f32.mrf.mxu0
  %v2429 = vadd.f32 %v2167, %v2428
  %2430 = vmatmul.f32.gmra.mxu0 %v2174
  %v2431 = vpop.f32.mrf.mxu0
  %v2432 = vadd.f32 %v2168, %v2431
  %2433 = vdwg.mxu0
  %v2434 = vmax.f32 %v2429, 0.0
  %v2435 = vmax.f32 %v2432, 0.0
  %2436 = vmatpush.msra.mxu0 0.0
  %2437 = vmatpush.msra.mxu0 0.0
  %2438 = vmatpush.msra.mxu0 0.0
  %2439 = vmatpush.msra.mxu0 0.0
  %2440 = vmatpush.msra.mxu0 0.0
  %2441 = vmatpush.msra.mxu0 0.0
  %2442 = vmatpush.msra.mxu0 0.0
  %2443 = vmatpush.msra.mxu0 0.0
  %2444 = vmatpush.msra.mxu0 0.0
  %2445 = vmatpush.msra.mxu0 0.0
  %2446 = vmatpush.msra.mxu0 0.0
  %2447 = vmatpush.msra.mxu0 0.0
  %2448 = vmatpush.msra.mxu0 0.0
  %2449 = vmatpush.msra.mxu0 0.0
  %2450 = vmatpush.msra.mxu0 %v2435
  %2451 = vmatpush.msra.mxu0 %v2434
  %2452 = vmatmul.f32.gmra.mxu0 %v2212
  %v2453 = vpop.f32.mrf.mxu0
  %v2454 = vadd.f32 %v2206, %v2453
  %2455 = vmatmul.f32.gmra.mxu0 %v2215
  %v2456 = vpop.f32.mrf.mxu0
  %v2457 = vadd.f32 %v2207, %v2456
  %2458 = vmatmul.f32.gmra.mxu0 %v2218
  %v2459 = vpop.f32.mrf.mxu0
  %v2460 = vadd.f32 %v2208, %v2459
  %2461 = vmatmul.f32.gmra.mxu0 %v2221
  %v2462 = vpop.f32.mrf.mxu0
  %v2463 = vadd.f32 %v2209, %v2462
  %2464 = vmatmul.f32.gmra.mxu0 %v2224
  %v2465 = vpop.f32.mrf.mxu0
  %v2466 = vadd.f32 %v2210, %v2465
  %2467 = vdwg.mxu0
  %v2468 = vxor.u32 %v2454, 2147483648
  %v2469 = vmul.f32 %v2468, 1.442695
  %v2470 = vpow.pop %v2469
  %v2471 = vadd.f32 %v2470, 1.0
  %v2472 = vrcp.pop %v2471
  %v2473 = vmul.f32 %v2471, %v2472
  %v2474 = vsub.f32 1.0, %v2473
  %v2475 = vmul.f32 %v2472, %v2474
  %v2476 = vadd.f32 %v2472, %v2475
  %vm2477 = vweird.f32 %v2471
  %vm2478 = vweird.f32 %v2472
  %vm2479 = vmor %vm2477, %vm2478
  %v2480 = vsel %vm2479, %v2472, %v2476
  %v2481 = vand.u32 2147483647, %v2471
  %vm2482 = vcmp.eq.f32.partialorder %v2481, 8.507059e+37
  %v2483 = vand.u32 %v2471, 2147483648
  %v2484 = vor.u32 1.1754944e-38, %v2483
  %v2485 = vsel %vm2482, %v2484, %v2480
  %v2486 = vmul.f32 1.0, %v2485
  %v2487 = vxor.u32 %v2457, 2147483648
  %v2488 = vxor.u32 %v2460, 2147483648
  %v2489 = vmul.f32 %v2487, 1.442695
  %v2490 = vpow.pop %v2489
  %v2491 = vmul.f32 %v2488, 1.442695
  %v2492 = vpow.pop %v2491
  %v2493 = vadd.f32 %v2490, 1.0
  %v2494 = vadd.f32 %v2492, 1.0
  %v2495 = vrcp.pop %v2493
  %v2496 = vmul.f32 %v2493, %v2495
  %v2497 = vsub.f32 1.0, %v2496
  %v2498 = vmul.f32 %v2495, %v2497
  %v2499 = vadd.f32 %v2495, %v2498
  %vm2500 = vweird.f32 %v2493
  %vm2501 = vweird.f32 %v2495
  %vm2502 = vmor %vm2500, %vm2501
  %v2503 = vsel %vm2502, %v2495, %v2499
  %v2504 = vand.u32 2147483647, %v2493
  %vm2505 = vcmp.eq.f32.partialorder %v2504, 8.507059e+37
  %v2506 = vand.u32 %v2493, 2147483648
  %v2507 = vor.u32 1.1754944e-38, %v2506
  %v2508 = vsel %vm2505, %v2507, %v2503
  %v2509 = vmul.f32 1.0, %v2508
  %v2510 = vrcp.pop %v2494
  %v2511 = vmul.f32 %v2494, %v2510
  %v2512 = vsub.f32 1.0, %v2511
  %v2513 = vmul.f32 %v2510, %v2512
  %v2514 = vadd.f32 %v2510, %v2513
  %vm2515 = vweird.f32 %v2494
  %vm2516 = vweird.f32 %v2510
  %vm2517 = vmor %vm2515, %vm2516
  %v2518 = vsel %vm2517, %v2510, %v2514
  %v2519 = vand.u32 2147483647, %v2494
  %vm2520 = vcmp.eq.f32.partialorder %v2519, 8.507059e+37
  %v2521 = vand.u32 %v2494, 2147483648
  %v2522 = vor.u32 1.1754944e-38, %v2521
  %v2523 = vsel %vm2520, %v2522, %v2518
  %v2524 = vmul.f32 1.0, %v2523
  %v2525 = vxor.u32 %v2463, 2147483648
  %v2526 = vxor.u32 %v2466, 2147483648
  %v2527 = vmul.f32 %v2525, 1.442695
  %v2528 = vpow.pop %v2527
  %v2529 = vmul.f32 %v2526, 1.442695
  %v2530 = vpow.pop %v2529
  %v2531 = vadd.f32 %v2528, 1.0
  %v2532 = vadd.f32 %v2530, 1.0
  %v2533 = vrcp.pop %v2531
  %v2534 = vmul.f32 %v2531, %v2533
  %v2535 = vsub.f32 1.0, %v2534
  %v2536 = vmul.f32 %v2533, %v2535
  %v2537 = vadd.f32 %v2533, %v2536
  %vm2538 = vweird.f32 %v2531
  %vm2539 = vweird.f32 %v2533
  %vm2540 = vmor %vm2538, %vm2539
  %v2541 = vsel %vm2540, %v2533, %v2537
  %v2542 = vand.u32 2147483647, %v2531
  %vm2543 = vcmp.eq.f32.partialorder %v2542, 8.507059e+37
  %v2544 = vand.u32 %v2531, 2147483648
  %v2545 = vor.u32 1.1754944e-38, %v2544
  %v2546 = vsel %vm2543, %v2545, %v2541
  %v2547 = vmul.f32 1.0, %v2546
  %v2548 = vrcp.pop %v2532
  %v2549 = vmul.f32 %v2532, %v2548
  %v2550 = vsub.f32 1.0, %v2549
  %v2551 = vmul.f32 %v2548, %v2550
  %v2552 = vadd.f32 %v2548, %v2551
  %vm2553 = vweird.f32 %v2532
  %vm2554 = vweird.f32 %v2548
  %vm2555 = vmor %vm2553, %vm2554
  %v2556 = vsel %vm2555, %v2548, %v2552
  %v2557 = vand.u32 2147483647, %v2532
  %vm2558 = vcmp.eq.f32.partialorder %v2557, 8.507059e+37
  %v2559 = vand.u32 %v2532, 2147483648
  %v2560 = vor.u32 1.1754944e-38, %v2559
  %v2561 = vsel %vm2558, %v2560, %v2556
  %v2562 = vmul.f32 1.0, %v2561
  %v2563 = vsel %vm2353, %v2466, -inf
  %v2564 = vrot.slane %v2563, 4
  %v2565 = vmax.f32 %v2563, %v2564
  %v2566 = vrot.slane %v2565, 2
  %v2567 = vmax.f32 %v2565, %v2566
  %v2568 = vrot.slane %v2567, 1
  %v2569 = vmax.f32 %v2567, %v2568
  %v2570 = vsub.f32 %v2466, %v2569
  %v2571 = vmul.f32 %v2570, 1.442695
  %v2572 = vpow.pop %v2571
  %v2574 = vrot.slane %v2572, 1
  %v2576 = vsel %vm2367, %v2574, 0.0
  %v2577 = vrot.slane %v2576, 4
  %v2578 = vadd.f32 %v2576, %v2577
  %v2579 = vrot.slane %v2578, 2
  %v2580 = vadd.f32 %v2578, %v2579
  %v2581 = vrot.slane %v2580, 1
  %v2582 = vadd.f32 %v2580, %v2581
  %v2583 = vrcp.pop %v2582
  %v2584 = vmul.f32 %v2582, %v2583
  %v2585 = vsub.f32 1.0, %v2584
  %v2586 = vmul.f32 %v2583, %v2585
  %v2587 = vadd.f32 %v2583, %v2586
  %vm2588 = vweird.f32 %v2582
  %vm2589 = vweird.f32 %v2583
  %vm2590 = vmor %vm2588, %vm2589
  %v2591 = vsel %vm2590, %v2583, %v2587
  %v2592 = vand.u32 2147483647, %v2582
  %vm2593 = vcmp.eq.f32.partialorder %v2592, 8.507059e+37
  %v2594 = vand.u32 %v2582, 2147483648
  %v2595 = vor.u32 1.1754944e-38, %v2594
  %v2596 = vsel %vm2593, %v2595, %v2591
  %v2597 = vmul.f32 %v2572, %v2596
  %2599 = vset.pattern.permute.xlu0 0
  %2600 = vperm.xlu0 %2599, %v2276
  %v2601 = vpop.permute.xlu0 %2600
  %v2603 = vmul.f32 %v2601, %v2147
  %v2604 = vmul.f32 %v2601, %v2148
  %v2605 = vmul.f32 %v2601, %v2149
  %v2606 = vmul.f32 %v2601, %v2150
  %2608 = vset.pattern.permute.xlu0 0
  %2609 = vperm.xlu0 %2608, %v2486
  %v2610 = vpop.permute.xlu0 %2609
  %v2612 = vmul.f32 %v2610, %v2393
  %v2613 = vmul.f32 %v2610, %v2394
  %v2614 = vmul.f32 %v2610, %v2395
  %v2615 = vmul.f32 %v2610, %v2396
  %v2616 = vadd.f32 %v2603, %v2612
  %v2617 = vadd.f32 %v2604, %v2613
  %v2618 = vadd.f32 %v2605, %v2614
  %v2619 = vadd.f32 %v2606, %v2615
  %v2620 = vmul.f32 %v2141, %v2616
  %v2621 = vmul.f32 %v2142, %v2617
  %v2622 = vmul.f32 %v2143, %v2618
  %v2623 = vmul.f32 %v2144, %v2619
  %v2624 = vld [vmem:[%s12] sm:$0xf]
  %v2625 = vld [vmem:[%s12 + $0x4] sm:$0xf]
  %v2626 = vunpack.c.l.bf16 %v2624
  %v2627 = vunpack.c.l.bf16 %v2625
  %v2629 = vrot.slane %v2389, 1
  %s2630 = vtos %v2629
  %v2631 = vstv %s2630
  %v2633 = vmul.f32 %v2626, %v2631
  %v2634 = vmul.f32 %v2627, %v2631
  %s2635 = scalar_lea.vmem %s12, 8
  %v2636 = vld [vmem:[%s2635] sm:$0xf]
  %v2637 = vld [vmem:[%s2635 + $0x4] sm:$0xf]
  %v2638 = vunpack.c.l.bf16 %v2636
  %v2639 = vunpack.c.l.bf16 %v2637
  %v2640 = vrot.slane %v2389, 2
  %s2641 = vtos %v2640
  %v2642 = vstv %s2641
  %v2644 = vmul.f32 %v2638, %v2642
  %v2645 = vmul.f32 %v2639, %v2642
  %v2646 = vadd.f32 %v2633, %v2644
  %v2647 = vadd.f32 %v2634, %v2645
  %s2648 = scalar_lea.vmem %s12, 16
  %v2649 = vld [vmem:[%s2648] sm:$0xf]
  %v2650 = vld [vmem:[%s2648 + $0x4] sm:$0xf]
  %v2651 = vunpack.c.l.bf16 %v2649
  %v2652 = vunpack.c.l.bf16 %v2650
  %v2653 = vrot.slane %v2389, 3
  %s2654 = vtos %v2653
  %v2655 = vstv %s2654
  %v2657 = vmul.f32 %v2651, %v2655
  %v2658 = vmul.f32 %v2652, %v2655
  %v2659 = vadd.f32 %v2646, %v2657
  %v2660 = vadd.f32 %v2647, %v2658
  %s2661 = scalar_lea.vmem %s12, 24
  %v2662 = vld [vmem:[%s2661] sm:$0xf]
  %v2663 = vld [vmem:[%s2661 + $0x4] sm:$0xf]
  %v2664 = vunpack.c.l.bf16 %v2662
  %v2665 = vunpack.c.l.bf16 %v2663
  %v2666 = vrot.slane %v2389, 4
  %s2667 = vtos %v2666
  %v2668 = vstv %s2667
  %v2670 = vmul.f32 %v2664, %v2668
  %v2671 = vmul.f32 %v2665, %v2668
  %v2672 = vadd.f32 %v2659, %v2670
  %v2673 = vadd.f32 %v2660, %v2671
  %v2675 = vrot.slane %v2597, 1
  %s2676 = vtos %v2675
  %v2677 = vstv %s2676
  %v2679 = vmul.f32 %v2626, %v2677
  %v2680 = vmul.f32 %v2627, %v2677
  %v2681 = vrot.slane %v2597, 2
  %s2682 = vtos %v2681
  %v2683 = vstv %s2682
  %v2685 = vmul.f32 %v2638, %v2683
  %v2686 = vmul.f32 %v2639, %v2683
  %v2687 = vadd.f32 %v2679, %v2685
  %v2688 = vadd.f32 %v2680, %v2686
  %v2689 = vrot.slane %v2597, 3
  %s2690 = vtos %v2689
  %v2691 = vstv %s2690
  %v2693 = vmul.f32 %v2651, %v2691
  %v2694 = vmul.f32 %v2652, %v2691
  %v2695 = vadd.f32 %v2687, %v2693
  %v2696 = vadd.f32 %v2688, %v2694
  %v2697 = vrot.slane %v2597, 4
  %s2698 = vtos %v2697
  %v2699 = vstv %s2698
  %v2701 = vmul.f32 %v2664, %v2699
  %v2702 = vmul.f32 %v2665, %v2699
  %v2703 = vadd.f32 %v2695, %v2701
  %v2704 = vadd.f32 %v2696, %v2702
  %2705 = vrot.lane.b32.xlu0 %v2620, 17
  %v2706 = vpop.permute.xlu0 %2705
  %2707 = vrot.lane.b32.xlu0 %v2621, 17
  %v2708 = vpop.permute.xlu0 %2707
  %2709 = vrot.lane.b32.xlu0 %v2622, 17
  %v2710 = vpop.permute.xlu0 %2709
  %2711 = vrot.lane.b32.xlu0 %v2623, 17
  %v2712 = vpop.permute.xlu0 %2711
  %v2713 = vsel %vm71, %v2710, %v2712
  %v2714 = vsel %vm71, %v2708, %v2710
  %v2715 = vsel %vm71, %v2706, %v2708
  %v2716 = vsel %vm71, %v2712, %v2706
  %v2717 = vmul.f32 %v2716, %v82
  %v2718 = vmul.f32 %v2715, %v83
  %v2719 = vmul.f32 %v2714, %v84
  %v2720 = vmul.f32 %v2713, %v85
  %v2721 = vpack.c.bf16 %v2718, %v2717
  %v2722 = vpack.c.bf16 %v2720, %v2719
  %s2724 = vtos %v2337
  %v2725 = vstv %s2724
  %v2727 = vmul.f32 %v2672, %v2725
  %v2728 = vmul.f32 %v2673, %v2725
  %v2729 = vpack.c.bf16 %v2728, %v2727
  %s2731 = vtos %v2547
  %v2732 = vstv %s2731
  %v2734 = vmul.f32 %v2703, %v2732
  %v2735 = vmul.f32 %v2704, %v2732
  %v2736 = vpack.c.bf16 %v2735, %v2734
  %2737 = vrot.lane.b32.xlu0 %v2620, 16
  %v2738 = vpop.permute.xlu0 %2737
  %2739 = vrot.lane.b32.xlu0 %v2621, 16
  %v2740 = vpop.permute.xlu0 %2739
  %2741 = vrot.lane.b32.xlu0 %v2622, 16
  %v2742 = vpop.permute.xlu0 %2741
  %2743 = vrot.lane.b32.xlu0 %v2623, 16
  %v2744 = vpop.permute.xlu0 %2743
  %v2745 = vsel %vm119, %v2742, %v2744
  %v2746 = vsel %vm119, %v2740, %v2742
  %v2747 = vsel %vm119, %v2738, %v2740
  %v2748 = vsel %vm119, %v2744, %v2738
  %v2749 = vmul.f32 %v2748, %v131
  %v2750 = vmul.f32 %v2747, %v132
  %v2751 = vmul.f32 %v2746, %v133
  %v2752 = vmul.f32 %v2745, %v134
  %v2753 = vpack.c.bf16 %v2750, %v2749
  %v2754 = vpack.c.bf16 %v2752, %v2751
  %v2755 = vrot.slane %v2337, 1
  %s2756 = vtos %v2755
  %v2757 = vstv %s2756
  %v2759 = vmul.f32 %v2672, %v2757
  %v2760 = vmul.f32 %v2673, %v2757
  %v2761 = vpack.c.bf16 %v2760, %v2759
  %2763 = vrot.lane.b32.xlu0 %v2761, 120
  %v2764 = vpop.permute.xlu0 %2763
  %v2766 = vunpack.c.l.b16 %v2753
  %v2767 = vunpack.c.h.b16 %v2753
  %v2768 = vpack.c.b16 %v2766, %v2766
  %v2769 = vpack.c.b16 %v2767, %v2767
  %v2771 = vsel %vm2169, %v2764, 0
  %v2774 = vsel %vm2140, %v2768, 0
  %v2777 = vsel %vm2140, %v2769, 0
  %2779 = vmatpush.bf16.msra.mxu0 0
  %2780 = vmatpush.bf16.msra.mxu0 0
  %2781 = vmatpush.bf16.msra.mxu0 0
  %2782 = vmatpush.bf16.msra.mxu0 0
  %2783 = vmatpush.bf16.msra.mxu0 0
  %2784 = vmatpush.bf16.msra.mxu0 0
  %2785 = vmatpush.bf16.msra.mxu0 0
  %2786 = vmatpush.bf16.msra.mxu0 %v2774
  %2787 = vmatmul.bf16.gmra.mxu0 %v2771
  %v2788 = vpop.f32.mrf.mxu0
  %v2789 = vadd.f32 0.0, %v2788
  %v2790 = vpop.f32.mrf.mxu0
  %v2791 = vadd.f32 0.0, %v2790
  %2792 = vdwg.mxu0
  %2793 = vmatpush.bf16.msra.mxu0 0
  %2794 = vmatpush.bf16.msra.mxu0 0
  %2795 = vmatpush.bf16.msra.mxu0 0
  %2796 = vmatpush.bf16.msra.mxu0 0
  %2797 = vmatpush.bf16.msra.mxu0 0
  %2798 = vmatpush.bf16.msra.mxu0 0
  %2799 = vmatpush.bf16.msra.mxu0 0
  %2800 = vmatpush.bf16.msra.mxu0 %v2777
  %2801 = vmatmul.bf16.gmra.mxu0 %v2771
  %v2802 = vpop.f32.mrf.mxu0
  %v2803 = vadd.f32 0.0, %v2802
  %v2804 = vpop.f32.mrf.mxu0
  %v2805 = vadd.f32 0.0, %v2804
  %2806 = vdwg.mxu0
  %v2808 = vunpack.c.l.b16 %v2721
  %v2809 = vunpack.c.h.b16 %v2721
  %v2810 = vpack.c.b16 %v2808, %v2808
  %v2811 = vpack.c.b16 %v2809, %v2809
  %v2813 = vsel %vm2169, %v2729, 0
  %v2816 = vsel %vm2140, %v2810, 0
  %v2819 = vsel %vm2140, %v2811, 0
  %2821 = vmatpush.bf16.msra.mxu0 0
  %2822 = vmatpush.bf16.msra.mxu0 0
  %2823 = vmatpush.bf16.msra.mxu0 0
  %2824 = vmatpush.bf16.msra.mxu0 0
  %2825 = vmatpush.bf16.msra.mxu0 0
  %2826 = vmatpush.bf16.msra.mxu0 0
  %2827 = vmatpush.bf16.msra.mxu0 0
  %2828 = vmatpush.bf16.msra.mxu0 %v2816
  %2829 = vmatmul.bf16.gmra.mxu0 %v2813
  %v2830 = vpop.f32.mrf.mxu0
  %v2831 = vadd.f32 %v2789, %v2830
  %v2832 = vpop.f32.mrf.mxu0
  %v2833 = vadd.f32 %v2791, %v2832
  %2834 = vdwg.mxu0
  %2835 = vmatpush.bf16.msra.mxu0 0
  %2836 = vmatpush.bf16.msra.mxu0 0
  %2837 = vmatpush.bf16.msra.mxu0 0
  %2838 = vmatpush.bf16.msra.mxu0 0
  %2839 = vmatpush.bf16.msra.mxu0 0
  %2840 = vmatpush.bf16.msra.mxu0 0
  %2841 = vmatpush.bf16.msra.mxu0 0
  %2842 = vmatpush.bf16.msra.mxu0 %v2819
  %2843 = vmatmul.bf16.gmra.mxu0 %v2813
  %v2844 = vpop.f32.mrf.mxu0
  %v2845 = vadd.f32 %v2803, %v2844
  %v2846 = vpop.f32.mrf.mxu0
  %v2847 = vadd.f32 %v2805, %v2846
  %2848 = vdwg.mxu0
  %v2849 = vrot.slane %v2547, 1
  %s2850 = vtos %v2849
  %v2851 = vstv %s2850
  %v2853 = vmul.f32 %v2703, %v2851
  %v2854 = vmul.f32 %v2704, %v2851
  %v2855 = vpack.c.bf16 %v2854, %v2853
  %2857 = vrot.lane.b32.xlu0 %v2855, 120
  %v2858 = vpop.permute.xlu0 %2857
  %v2860 = vunpack.c.l.b16 %v2754
  %v2861 = vunpack.c.h.b16 %v2754
  %v2862 = vpack.c.b16 %v2860, %v2860
  %v2863 = vpack.c.b16 %v2861, %v2861
  %v2865 = vsel %vm2169, %v2858, 0
  %v2868 = vsel %vm2140, %v2862, 0
  %v2871 = vsel %vm2140, %v2863, 0
  %2873 = vmatpush.bf16.msra.mxu0 0
  %2874 = vmatpush.bf16.msra.mxu0 0
  %2875 = vmatpush.bf16.msra.mxu0 0
  %2876 = vmatpush.bf16.msra.mxu0 0
  %2877 = vmatpush.bf16.msra.mxu0 0
  %2878 = vmatpush.bf16.msra.mxu0 0
  %2879 = vmatpush.bf16.msra.mxu0 0
  %2880 = vmatpush.bf16.msra.mxu0 %v2868
  %2881 = vmatmul.bf16.gmra.mxu0 %v2865
  %v2882 = vpop.f32.mrf.mxu0
  %v2883 = vadd.f32 0.0, %v2882
  %v2884 = vpop.f32.mrf.mxu0
  %v2885 = vadd.f32 0.0, %v2884
  %2886 = vdwg.mxu0
  %2887 = vmatpush.bf16.msra.mxu0 0
  %2888 = vmatpush.bf16.msra.mxu0 0
  %2889 = vmatpush.bf16.msra.mxu0 0
  %2890 = vmatpush.bf16.msra.mxu0 0
  %2891 = vmatpush.bf16.msra.mxu0 0
  %2892 = vmatpush.bf16.msra.mxu0 0
  %2893 = vmatpush.bf16.msra.mxu0 0
  %2894 = vmatpush.bf16.msra.mxu0 %v2871
  %2895 = vmatmul.bf16.gmra.mxu0 %v2865
  %v2896 = vpop.f32.mrf.mxu0
  %v2897 = vadd.f32 0.0, %v2896
  %v2898 = vpop.f32.mrf.mxu0
  %v2899 = vadd.f32 0.0, %v2898
  %2900 = vdwg.mxu0
  %v2902 = vunpack.c.l.b16 %v2722
  %v2903 = vunpack.c.h.b16 %v2722
  %v2904 = vpack.c.b16 %v2902, %v2902
  %v2905 = vpack.c.b16 %v2903, %v2903
  %v2907 = vsel %vm2169, %v2736, 0
  %v2910 = vsel %vm2140, %v2904, 0
  %v2913 = vsel %vm2140, %v2905, 0
  %2915 = vmatpush.bf16.msra.mxu0 0
  %2916 = vmatpush.bf16.msra.mxu0 0
  %2917 = vmatpush.bf16.msra.mxu0 0
  %2918 = vmatpush.bf16.msra.mxu0 0
  %2919 = vmatpush.bf16.msra.mxu0 0
  %2920 = vmatpush.bf16.msra.mxu0 0
  %2921 = vmatpush.bf16.msra.mxu0 0
  %2922 = vmatpush.bf16.msra.mxu0 %v2910
  %2923 = vmatmul.bf16.gmra.mxu0 %v2907
  %v2924 = vpop.f32.mrf.mxu0
  %v2925 = vadd.f32 %v2883, %v2924
  %v2926 = vpop.f32.mrf.mxu0
  %v2927 = vadd.f32 %v2885, %v2926
  %2928 = vdwg.mxu0
  %2929 = vmatpush.bf16.msra.mxu0 0
  %2930 = vmatpush.bf16.msra.mxu0 0
  %2931 = vmatpush.bf16.msra.mxu0 0
  %2932 = vmatpush.bf16.msra.mxu0 0
  %2933 = vmatpush.bf16.msra.mxu0 0
  %2934 = vmatpush.bf16.msra.mxu0 0
  %2935 = vmatpush.bf16.msra.mxu0 0
  %2936 = vmatpush.bf16.msra.mxu0 %v2913
  %2937 = vmatmul.bf16.gmra.mxu0 %v2907
  %v2938 = vpop.f32.mrf.mxu0
  %v2939 = vadd.f32 %v2897, %v2938
  %v2940 = vpop.f32.mrf.mxu0
  %v2941 = vadd.f32 %v2899, %v2940
  %2942 = vdwg.mxu0
  %2943 = vrot.lane.b32.xlu0 %v2620, 15
  %v2944 = vpop.permute.xlu0 %2943
  %2945 = vrot.lane.b32.xlu0 %v2621, 15
  %v2946 = vpop.permute.xlu0 %2945
  %2947 = vrot.lane.b32.xlu0 %v2622, 15
  %v2948 = vpop.permute.xlu0 %2947
  %2949 = vrot.lane.b32.xlu0 %v2623, 15
  %v2950 = vpop.permute.xlu0 %2949
  %v2951 = vsel %vm280, %v2948, %v2950
  %v2952 = vsel %vm280, %v2946, %v2948
  %v2953 = vsel %vm280, %v2944, %v2946
  %v2954 = vsel %vm280, %v2950, %v2944
  %v2955 = vmul.f32 %v2954, %v292
  %v2956 = vmul.f32 %v2953, %v293
  %v2957 = vmul.f32 %v2952, %v294
  %v2958 = vmul.f32 %v2951, %v295
  %v2959 = vpack.c.bf16 %v2956, %v2955
  %v2960 = vpack.c.bf16 %v2958, %v2957
  %v2961 = vrot.slane %v2337, 2
  %s2962 = vtos %v2961
  %v2963 = vstv %s2962
  %v2965 = vmul.f32 %v2672, %v2963
  %v2966 = vmul.f32 %v2673, %v2963
  %v2967 = vpack.c.bf16 %v2966, %v2965
  %2969 = vrot.lane.b32.xlu0 %v2967, 112
  %v2970 = vpop.permute.xlu0 %2969
  %v2972 = vunpack.c.l.b16 %v2959
  %v2973 = vunpack.c.h.b16 %v2959
  %v2974 = vpack.c.b16 %v2972, %v2972
  %v2975 = vpack.c.b16 %v2973, %v2973
  %v2977 = vsel %vm2169, %v2970, 0
  %v2980 = vsel %vm2140, %v2974, 0
  %v2983 = vsel %vm2140, %v2975, 0
  %2985 = vmatpush.bf16.msra.mxu0 0
  %2986 = vmatpush.bf16.msra.mxu0 0
  %2987 = vmatpush.bf16.msra.mxu0 0
  %2988 = vmatpush.bf16.msra.mxu0 0
  %2989 = vmatpush.bf16.msra.mxu0 0
  %2990 = vmatpush.bf16.msra.mxu0 0
  %2991 = vmatpush.bf16.msra.mxu0 0
  %2992 = vmatpush.bf16.msra.mxu0 %v2980
  %2993 = vmatmul.bf16.gmra.mxu0 %v2977
  %v2994 = vpop.f32.mrf.mxu0
  %v2995 = vadd.f32 0.0, %v2994
  %v2996 = vpop.f32.mrf.mxu0
  %v2997 = vadd.f32 0.0, %v2996
  %2998 = vdwg.mxu0
  %2999 = vmatpush.bf16.msra.mxu0 0
  %3000 = vmatpush.bf16.msra.mxu0 0
  %3001 = vmatpush.bf16.msra.mxu0 0
  %3002 = vmatpush.bf16.msra.mxu0 0
  %3003 = vmatpush.bf16.msra.mxu0 0
  %3004 = vmatpush.bf16.msra.mxu0 0
  %3005 = vmatpush.bf16.msra.mxu0 0
  %3006 = vmatpush.bf16.msra.mxu0 %v2983
  %3007 = vmatmul.bf16.gmra.mxu0 %v2977
  %v3008 = vpop.f32.mrf.mxu0
  %v3009 = vadd.f32 0.0, %v3008
  %v3010 = vpop.f32.mrf.mxu0
  %v3011 = vadd.f32 0.0, %v3010
  %3012 = vdwg.mxu0
  %v3013 = vadd.f32 %v2831, %v2995
  %v3014 = vadd.f32 %v2845, %v3009
  %v3015 = vadd.f32 %v2833, %v2997
  %v3016 = vadd.f32 %v2847, %v3011
  %v3017 = vrot.slane %v2547, 2
  %s3018 = vtos %v3017
  %v3019 = vstv %s3018
  %v3021 = vmul.f32 %v2703, %v3019
  %v3022 = vmul.f32 %v2704, %v3019
  %v3023 = vpack.c.bf16 %v3022, %v3021
  %3025 = vrot.lane.b32.xlu0 %v3023, 112
  %v3026 = vpop.permute.xlu0 %3025
  %v3028 = vunpack.c.l.b16 %v2960
  %v3029 = vunpack.c.h.b16 %v2960
  %v3030 = vpack.c.b16 %v3028, %v3028
  %v3031 = vpack.c.b16 %v3029, %v3029
  %v3033 = vsel %vm2169, %v3026, 0
  %v3036 = vsel %vm2140, %v3030, 0
  %v3039 = vsel %vm2140, %v3031, 0
  %3041 = vmatpush.bf16.msra.mxu0 0
  %3042 = vmatpush.bf16.msra.mxu0 0
  %3043 = vmatpush.bf16.msra.mxu0 0
  %3044 = vmatpush.bf16.msra.mxu0 0
  %3045 = vmatpush.bf16.msra.mxu0 0
  %3046 = vmatpush.bf16.msra.mxu0 0
  %3047 = vmatpush.bf16.msra.mxu0 0
  %3048 = vmatpush.bf16.msra.mxu0 %v3036
  %3049 = vmatmul.bf16.gmra.mxu0 %v3033
  %v3050 = vpop.f32.mrf.mxu0
  %v3051 = vadd.f32 0.0, %v3050
  %v3052 = vpop.f32.mrf.mxu0
  %v3053 = vadd.f32 0.0, %v3052
  %3054 = vdwg.mxu0
  %3055 = vmatpush.bf16.msra.mxu0 0
  %3056 = vmatpush.bf16.msra.mxu0 0
  %3057 = vmatpush.bf16.msra.mxu0 0
  %3058 = vmatpush.bf16.msra.mxu0 0
  %3059 = vmatpush.bf16.msra.mxu0 0
  %3060 = vmatpush.bf16.msra.mxu0 0
  %3061 = vmatpush.bf16.msra.mxu0 0
  %3062 = vmatpush.bf16.msra.mxu0 %v3039
  %3063 = vmatmul.bf16.gmra.mxu0 %v3033
  %v3064 = vpop.f32.mrf.mxu0
  %v3065 = vadd.f32 0.0, %v3064
  %v3066 = vpop.f32.mrf.mxu0
  %v3067 = vadd.f32 0.0, %v3066
  %3068 = vdwg.mxu0
  %v3069 = vadd.f32 %v2925, %v3051
  %v3070 = vadd.f32 %v2939, %v3065
  %v3071 = vadd.f32 %v2927, %v3053
  %v3072 = vadd.f32 %v2941, %v3067
  %3073 = vrot.lane.b32.xlu0 %v2620, 1
  %v3074 = vpop.permute.xlu0 %3073
  %3075 = vrot.lane.b32.xlu0 %v2621, 1
  %v3076 = vpop.permute.xlu0 %3075
  %3077 = vrot.lane.b32.xlu0 %v2622, 1
  %v3078 = vpop.permute.xlu0 %3077
  %3079 = vrot.lane.b32.xlu0 %v2623, 1
  %v3080 = vpop.permute.xlu0 %3079
  %v3081 = vsel %vm389, %v3078, %v3080
  %v3082 = vsel %vm389, %v3076, %v3078
  %v3083 = vsel %vm389, %v3074, %v3076
  %v3084 = vsel %vm389, %v3080, %v3074
  %v3085 = vmul.f32 %v3084, %v401
  %v3086 = vmul.f32 %v3083, %v402
  %v3087 = vmul.f32 %v3082, %v403
  %v3088 = vmul.f32 %v3081, %v404
  %v3089 = vpack.c.bf16 %v3086, %v3085
  %v3090 = vpack.c.bf16 %v3088, %v3087
  %v3091 = vrot.slane %v2337, 3
  %s3092 = vtos %v3091
  %v3093 = vstv %s3092
  %v3095 = vmul.f32 %v2672, %v3093
  %v3096 = vmul.f32 %v2673, %v3093
  %v3097 = vpack.c.bf16 %v3096, %v3095
  %3099 = vrot.lane.b32.xlu0 %v3097, 104
  %v3100 = vpop.permute.xlu0 %3099
  %v3102 = vunpack.c.l.b16 %v3089
  %v3103 = vunpack.c.h.b16 %v3089
  %v3104 = vpack.c.b16 %v3102, %v3102
  %v3105 = vpack.c.b16 %v3103, %v3103
  %v3107 = vsel %vm2169, %v3100, 0
  %v3110 = vsel %vm2140, %v3104, 0
  %v3113 = vsel %vm2140, %v3105, 0
  %3115 = vmatpush.bf16.msra.mxu0 0
  %3116 = vmatpush.bf16.msra.mxu0 0
  %3117 = vmatpush.bf16.msra.mxu0 0
  %3118 = vmatpush.bf16.msra.mxu0 0
  %3119 = vmatpush.bf16.msra.mxu0 0
  %3120 = vmatpush.bf16.msra.mxu0 0
  %3121 = vmatpush.bf16.msra.mxu0 0
  %3122 = vmatpush.bf16.msra.mxu0 %v3110
  %3123 = vmatmul.bf16.gmra.mxu0 %v3107
  %v3124 = vpop.f32.mrf.mxu0
  %v3125 = vadd.f32 0.0, %v3124
  %v3126 = vpop.f32.mrf.mxu0
  %v3127 = vadd.f32 0.0, %v3126
  %3128 = vdwg.mxu0
  %3129 = vmatpush.bf16.msra.mxu0 0
  %3130 = vmatpush.bf16.msra.mxu0 0
  %3131 = vmatpush.bf16.msra.mxu0 0
  %3132 = vmatpush.bf16.msra.mxu0 0
  %3133 = vmatpush.bf16.msra.mxu0 0
  %3134 = vmatpush.bf16.msra.mxu0 0
  %3135 = vmatpush.bf16.msra.mxu0 0
  %3136 = vmatpush.bf16.msra.mxu0 %v3113
  %3137 = vmatmul.bf16.gmra.mxu0 %v3107
  %v3138 = vpop.f32.mrf.mxu0
  %v3139 = vadd.f32 0.0, %v3138
  %v3140 = vpop.f32.mrf.mxu0
  %v3141 = vadd.f32 0.0, %v3140
  %3142 = vdwg.mxu0
  %v3143 = vadd.f32 %v3013, %v3125
  %v3144 = vadd.f32 %v3014, %v3139
  %v3145 = vadd.f32 %v3015, %v3127
  %v3146 = vadd.f32 %v3016, %v3141
  %v3147 = vrot.slane %v2547, 3
  %s3148 = vtos %v3147
  %v3149 = vstv %s3148
  %v3151 = vmul.f32 %v2703, %v3149
  %v3152 = vmul.f32 %v2704, %v3149
  %v3153 = vpack.c.bf16 %v3152, %v3151
  %3155 = vrot.lane.b32.xlu0 %v3153, 104
  %v3156 = vpop.permute.xlu0 %3155
  %v3158 = vunpack.c.l.b16 %v3090
  %v3159 = vunpack.c.h.b16 %v3090
  %v3160 = vpack.c.b16 %v3158, %v3158
  %v3161 = vpack.c.b16 %v3159, %v3159
  %v3163 = vsel %vm2169, %v3156, 0
  %v3166 = vsel %vm2140, %v3160, 0
  %v3169 = vsel %vm2140, %v3161, 0
  %3171 = vmatpush.bf16.msra.mxu0 0
  %3172 = vmatpush.bf16.msra.mxu0 0
  %3173 = vmatpush.bf16.msra.mxu0 0
  %3174 = vmatpush.bf16.msra.mxu0 0
  %3175 = vmatpush.bf16.msra.mxu0 0
  %3176 = vmatpush.bf16.msra.mxu0 0
  %3177 = vmatpush.bf16.msra.mxu0 0
  %3178 = vmatpush.bf16.msra.mxu0 %v3166
  %3179 = vmatmul.bf16.gmra.mxu0 %v3163
  %v3180 = vpop.f32.mrf.mxu0
  %v3181 = vadd.f32 0.0, %v3180
  %v3182 = vpop.f32.mrf.mxu0
  %v3183 = vadd.f32 0.0, %v3182
  %3184 = vdwg.mxu0
  %3185 = vmatpush.bf16.msra.mxu0 0
  %3186 = vmatpush.bf16.msra.mxu0 0
  %3187 = vmatpush.bf16.msra.mxu0 0
  %3188 = vmatpush.bf16.msra.mxu0 0
  %3189 = vmatpush.bf16.msra.mxu0 0
  %3190 = vmatpush.bf16.msra.mxu0 0
  %3191 = vmatpush.bf16.msra.mxu0 0
  %3192 = vmatpush.bf16.msra.mxu0 %v3169
  %3193 = vmatmul.bf16.gmra.mxu0 %v3163
  %v3194 = vpop.f32.mrf.mxu0
  %v3195 = vadd.f32 0.0, %v3194
  %v3196 = vpop.f32.mrf.mxu0
  %v3197 = vadd.f32 0.0, %v3196
  %3198 = vdwg.mxu0
  %v3199 = vadd.f32 %v3069, %v3181
  %v3200 = vadd.f32 %v3070, %v3195
  %v3201 = vadd.f32 %v3071, %v3183
  %v3202 = vadd.f32 %v3072, %v3197
  %v3203 = vpack.c.bf16 %v2621, %v2620
  %v3204 = vpack.c.bf16 %v2623, %v2622
  %v3205 = vrot.slane %v2337, 4
  %s3206 = vtos %v3205
  %v3207 = vstv %s3206
  %v3209 = vmul.f32 %v2672, %v3207
  %v3210 = vmul.f32 %v2673, %v3207
  %v3211 = vpack.c.bf16 %v3210, %v3209
  %3213 = vrot.lane.b32.xlu0 %v3211, 96
  %v3214 = vpop.permute.xlu0 %3213
  %v3216 = vunpack.c.l.b16 %v3203
  %v3217 = vunpack.c.h.b16 %v3203
  %v3218 = vpack.c.b16 %v3216, %v3216
  %v3219 = vpack.c.b16 %v3217, %v3217
  %v3221 = vsel %vm2169, %v3214, 0
  %v3224 = vsel %vm2140, %v3218, 0
  %v3227 = vsel %vm2140, %v3219, 0
  %3229 = vmatpush.bf16.msra.mxu0 0
  %3230 = vmatpush.bf16.msra.mxu0 0
  %3231 = vmatpush.bf16.msra.mxu0 0
  %3232 = vmatpush.bf16.msra.mxu0 0
  %3233 = vmatpush.bf16.msra.mxu0 0
  %3234 = vmatpush.bf16.msra.mxu0 0
  %3235 = vmatpush.bf16.msra.mxu0 0
  %3236 = vmatpush.bf16.msra.mxu0 %v3224
  %3237 = vmatmul.bf16.gmra.mxu0 %v3221
  %v3238 = vpop.f32.mrf.mxu0
  %v3239 = vadd.f32 0.0, %v3238
  %v3240 = vpop.f32.mrf.mxu0
  %v3241 = vadd.f32 0.0, %v3240
  %3242 = vdwg.mxu0
  %3243 = vmatpush.bf16.msra.mxu0 0
  %3244 = vmatpush.bf16.msra.mxu0 0
  %3245 = vmatpush.bf16.msra.mxu0 0
  %3246 = vmatpush.bf16.msra.mxu0 0
  %3247 = vmatpush.bf16.msra.mxu0 0
  %3248 = vmatpush.bf16.msra.mxu0 0
  %3249 = vmatpush.bf16.msra.mxu0 0
  %3250 = vmatpush.bf16.msra.mxu0 %v3227
  %3251 = vmatmul.bf16.gmra.mxu0 %v3221
  %v3252 = vpop.f32.mrf.mxu0
  %v3253 = vadd.f32 0.0, %v3252
  %v3254 = vpop.f32.mrf.mxu0
  %v3255 = vadd.f32 0.0, %v3254
  %3256 = vdwg.mxu0
  %v3257 = vadd.f32 %v3143, %v3239
  %v3258 = vadd.f32 %v3144, %v3253
  %v3259 = vadd.f32 %v3145, %v3241
  %v3260 = vadd.f32 %v3146, %v3255
  %v3261 = vrot.slane %v2547, 4
  %s3262 = vtos %v3261
  %v3263 = vstv %s3262
  %v3265 = vmul.f32 %v2703, %v3263
  %v3266 = vmul.f32 %v2704, %v3263
  %v3267 = vpack.c.bf16 %v3266, %v3265
  %3269 = vrot.lane.b32.xlu0 %v3267, 96
  %v3270 = vpop.permute.xlu0 %3269
  %v3272 = vunpack.c.l.b16 %v3204
  %v3273 = vunpack.c.h.b16 %v3204
  %v3274 = vpack.c.b16 %v3272, %v3272
  %v3275 = vpack.c.b16 %v3273, %v3273
  %v3277 = vsel %vm2169, %v3270, 0
  %v3280 = vsel %vm2140, %v3274, 0
  %v3283 = vsel %vm2140, %v3275, 0
  %3285 = vmatpush.bf16.msra.mxu0 0
  %3286 = vmatpush.bf16.msra.mxu0 0
  %3287 = vmatpush.bf16.msra.mxu0 0
  %3288 = vmatpush.bf16.msra.mxu0 0
  %3289 = vmatpush.bf16.msra.mxu0 0
  %3290 = vmatpush.bf16.msra.mxu0 0
  %3291 = vmatpush.bf16.msra.mxu0 0
  %3292 = vmatpush.bf16.msra.mxu0 %v3280
  %3293 = vmatmul.bf16.gmra.mxu0 %v3277
  %v3294 = vpop.f32.mrf.mxu0
  %v3295 = vadd.f32 0.0, %v3294
  %v3296 = vpop.f32.mrf.mxu0
  %v3297 = vadd.f32 0.0, %v3296
  %3298 = vdwg.mxu0
  %3299 = vmatpush.bf16.msra.mxu0 0
  %3300 = vmatpush.bf16.msra.mxu0 0
  %3301 = vmatpush.bf16.msra.mxu0 0
  %3302 = vmatpush.bf16.msra.mxu0 0
  %3303 = vmatpush.bf16.msra.mxu0 0
  %3304 = vmatpush.bf16.msra.mxu0 0
  %3305 = vmatpush.bf16.msra.mxu0 0
  %3306 = vmatpush.bf16.msra.mxu0 %v3283
  %3307 = vmatmul.bf16.gmra.mxu0 %v3277
  %v3308 = vpop.f32.mrf.mxu0
  %v3309 = vadd.f32 0.0, %v3308
  %v3310 = vpop.f32.mrf.mxu0
  %v3311 = vadd.f32 0.0, %v3310
  %3312 = vdwg.mxu0
  %v3313 = vadd.f32 %v3199, %v3295
  %v3314 = vadd.f32 %v3200, %v3309
  %v3315 = vadd.f32 %v3201, %v3297
  %v3316 = vadd.f32 %v3202, %v3311
  %3317 = vrot.lane.b32.xlu0 %v2620, 127
  %v3318 = vpop.permute.xlu0 %3317
  %3319 = vrot.lane.b32.xlu0 %v2621, 127
  %v3320 = vpop.permute.xlu0 %3319
  %3321 = vrot.lane.b32.xlu0 %v2622, 127
  %v3322 = vpop.permute.xlu0 %3321
  %3323 = vrot.lane.b32.xlu0 %v2623, 127
  %v3324 = vpop.permute.xlu0 %3323
  %v3325 = vsel %vm563, %v3322, %v3324
  %v3326 = vsel %vm563, %v3320, %v3322
  %v3327 = vsel %vm563, %v3318, %v3320
  %v3328 = vsel %vm563, %v3324, %v3318
  %v3329 = vmul.f32 %v3327, %v575
  %v3330 = vmul.f32 %v3326, %v576
  %v3331 = vmul.f32 %v3325, %v577
  %v3332 = vmul.f32 %v3328, %v578
  %v3333 = vpack.c.bf16 %v3330, %v3329
  %v3334 = vpack.c.bf16 %v3332, %v3331
  %v3335 = vrot.slane %v2337, 5
  %s3336 = vtos %v3335
  %v3337 = vstv %s3336
  %v3339 = vmul.f32 %v2672, %v3337
  %v3340 = vmul.f32 %v2673, %v3337
  %v3341 = vpack.c.bf16 %v3340, %v3339
  %3343 = vrot.lane.b32.xlu0 %v3341, 88
  %v3344 = vpop.permute.xlu0 %3343
  %v3346 = vunpack.c.l.b16 %v3333
  %v3347 = vunpack.c.h.b16 %v3333
  %v3348 = vpack.c.b16 %v3346, %v3346
  %v3349 = vpack.c.b16 %v3347, %v3347
  %v3351 = vsel %vm2169, %v3344, 0
  %v3354 = vsel %vm2140, %v3348, 0
  %v3357 = vsel %vm2140, %v3349, 0
  %3359 = vmatpush.bf16.msra.mxu0 0
  %3360 = vmatpush.bf16.msra.mxu0 0
  %3361 = vmatpush.bf16.msra.mxu0 0
  %3362 = vmatpush.bf16.msra.mxu0 0
  %3363 = vmatpush.bf16.msra.mxu0 0
  %3364 = vmatpush.bf16.msra.mxu0 0
  %3365 = vmatpush.bf16.msra.mxu0 0
  %3366 = vmatpush.bf16.msra.mxu0 %v3354
  %3367 = vmatmul.bf16.gmra.mxu0 %v3351
  %v3368 = vpop.f32.mrf.mxu0
  %v3369 = vadd.f32 0.0, %v3368
  %v3370 = vpop.f32.mrf.mxu0
  %v3371 = vadd.f32 0.0, %v3370
  %3372 = vdwg.mxu0
  %3373 = vmatpush.bf16.msra.mxu0 0
  %3374 = vmatpush.bf16.msra.mxu0 0
  %3375 = vmatpush.bf16.msra.mxu0 0
  %3376 = vmatpush.bf16.msra.mxu0 0
  %3377 = vmatpush.bf16.msra.mxu0 0
  %3378 = vmatpush.bf16.msra.mxu0 0
  %3379 = vmatpush.bf16.msra.mxu0 0
  %3380 = vmatpush.bf16.msra.mxu0 %v3357
  %3381 = vmatmul.bf16.gmra.mxu0 %v3351
  %v3382 = vpop.f32.mrf.mxu0
  %v3383 = vadd.f32 0.0, %v3382
  %v3384 = vpop.f32.mrf.mxu0
  %v3385 = vadd.f32 0.0, %v3384
  %3386 = vdwg.mxu0
  %v3387 = vadd.f32 %v3257, %v3369
  %v3388 = vadd.f32 %v3258, %v3383
  %v3389 = vadd.f32 %v3259, %v3371
  %v3390 = vadd.f32 %v3260, %v3385
  %v3391 = vrot.slane %v2547, 5
  %s3392 = vtos %v3391
  %v3393 = vstv %s3392
  %v3395 = vmul.f32 %v2703, %v3393
  %v3396 = vmul.f32 %v2704, %v3393
  %v3397 = vpack.c.bf16 %v3396, %v3395
  %3399 = vrot.lane.b32.xlu0 %v3397, 88
  %v3400 = vpop.permute.xlu0 %3399
  %v3402 = vunpack.c.l.b16 %v3334
  %v3403 = vunpack.c.h.b16 %v3334
  %v3404 = vpack.c.b16 %v3402, %v3402
  %v3405 = vpack.c.b16 %v3403, %v3403
  %v3407 = vsel %vm2169, %v3400, 0
  %v3410 = vsel %vm2140, %v3404, 0
  %v3413 = vsel %vm2140, %v3405, 0
  %3415 = vmatpush.bf16.msra.mxu0 0
  %3416 = vmatpush.bf16.msra.mxu0 0
  %3417 = vmatpush.bf16.msra.mxu0 0
  %3418 = vmatpush.bf16.msra.mxu0 0
  %3419 = vmatpush.bf16.msra.mxu0 0
  %3420 = vmatpush.bf16.msra.mxu0 0
  %3421 = vmatpush.bf16.msra.mxu0 0
  %3422 = vmatpush.bf16.msra.mxu0 %v3410
  %3423 = vmatmul.bf16.gmra.mxu0 %v3407
  %v3424 = vpop.f32.mrf.mxu0
  %v3425 = vadd.f32 0.0, %v3424
  %v3426 = vpop.f32.mrf.mxu0
  %v3427 = vadd.f32 0.0, %v3426
  %3428 = vdwg.mxu0
  %3429 = vmatpush.bf16.msra.mxu0 0
  %3430 = vmatpush.bf16.msra.mxu0 0
  %3431 = vmatpush.bf16.msra.mxu0 0
  %3432 = vmatpush.bf16.msra.mxu0 0
  %3433 = vmatpush.bf16.msra.mxu0 0
  %3434 = vmatpush.bf16.msra.mxu0 0
  %3435 = vmatpush.bf16.msra.mxu0 0
  %3436 = vmatpush.bf16.msra.mxu0 %v3413
  %3437 = vmatmul.bf16.gmra.mxu0 %v3407
  %v3438 = vpop.f32.mrf.mxu0
  %v3439 = vadd.f32 0.0, %v3438
  %v3440 = vpop.f32.mrf.mxu0
  %v3441 = vadd.f32 0.0, %v3440
  %3442 = vdwg.mxu0
  %v3443 = vadd.f32 %v3313, %v3425
  %v3444 = vadd.f32 %v3314, %v3439
  %v3445 = vadd.f32 %v3315, %v3427
  %v3446 = vadd.f32 %v3316, %v3441
  %3447 = vrot.lane.b32.xlu0 %v2620, 113
  %v3448 = vpop.permute.xlu0 %3447
  %3449 = vrot.lane.b32.xlu0 %v2621, 113
  %v3450 = vpop.permute.xlu0 %3449
  %3451 = vrot.lane.b32.xlu0 %v2622, 113
  %v3452 = vpop.permute.xlu0 %3451
  %3453 = vrot.lane.b32.xlu0 %v2623, 113
  %v3454 = vpop.permute.xlu0 %3453
  %v3455 = vsel %vm672, %v3452, %v3454
  %v3456 = vsel %vm672, %v3450, %v3452
  %v3457 = vsel %vm672, %v3448, %v3450
  %v3458 = vsel %vm672, %v3454, %v3448
  %v3459 = vmul.f32 %v3457, %v684
  %v3460 = vmul.f32 %v3456, %v685
  %v3461 = vmul.f32 %v3455, %v686
  %v3462 = vmul.f32 %v3458, %v687
  %v3463 = vpack.c.bf16 %v3460, %v3459
  %v3464 = vpack.c.bf16 %v3462, %v3461
  %v3465 = vrot.slane %v2337, 6
  %s3466 = vtos %v3465
  %v3467 = vstv %s3466
  %v3469 = vmul.f32 %v2672, %v3467
  %v3470 = vmul.f32 %v2673, %v3467
  %v3471 = vpack.c.bf16 %v3470, %v3469
  %3473 = vrot.lane.b32.xlu0 %v3471, 80
  %v3474 = vpop.permute.xlu0 %3473
  %v3476 = vunpack.c.l.b16 %v3463
  %v3477 = vunpack.c.h.b16 %v3463
  %v3478 = vpack.c.b16 %v3476, %v3476
  %v3479 = vpack.c.b16 %v3477, %v3477
  %v3481 = vsel %vm2169, %v3474, 0
  %v3484 = vsel %vm2140, %v3478, 0
  %v3487 = vsel %vm2140, %v3479, 0
  %3489 = vmatpush.bf16.msra.mxu0 0
  %3490 = vmatpush.bf16.msra.mxu0 0
  %3491 = vmatpush.bf16.msra.mxu0 0
  %3492 = vmatpush.bf16.msra.mxu0 0
  %3493 = vmatpush.bf16.msra.mxu0 0
  %3494 = vmatpush.bf16.msra.mxu0 0
  %3495 = vmatpush.bf16.msra.mxu0 0
  %3496 = vmatpush.bf16.msra.mxu0 %v3484
  %3497 = vmatmul.bf16.gmra.mxu0 %v3481
  %v3498 = vpop.f32.mrf.mxu0
  %v3499 = vadd.f32 0.0, %v3498
  %v3500 = vpop.f32.mrf.mxu0
  %v3501 = vadd.f32 0.0, %v3500
  %3502 = vdwg.mxu0
  %3503 = vmatpush.bf16.msra.mxu0 0
  %3504 = vmatpush.bf16.msra.mxu0 0
  %3505 = vmatpush.bf16.msra.mxu0 0
  %3506 = vmatpush.bf16.msra.mxu0 0
  %3507 = vmatpush.bf16.msra.mxu0 0
  %3508 = vmatpush.bf16.msra.mxu0 0
  %3509 = vmatpush.bf16.msra.mxu0 0
  %3510 = vmatpush.bf16.msra.mxu0 %v3487
  %3511 = vmatmul.bf16.gmra.mxu0 %v3481
  %v3512 = vpop.f32.mrf.mxu0
  %v3513 = vadd.f32 0.0, %v3512
  %v3514 = vpop.f32.mrf.mxu0
  %v3515 = vadd.f32 0.0, %v3514
  %3516 = vdwg.mxu0
  %v3517 = vadd.f32 %v3387, %v3499
  %v3518 = vadd.f32 %v3388, %v3513
  %v3519 = vadd.f32 %v3389, %v3501
  %v3520 = vadd.f32 %v3390, %v3515
  %v3521 = vrot.slane %v2547, 6
  %s3522 = vtos %v3521
  %v3523 = vstv %s3522
  %v3525 = vmul.f32 %v2703, %v3523
  %v3526 = vmul.f32 %v2704, %v3523
  %v3527 = vpack.c.bf16 %v3526, %v3525
  %3529 = vrot.lane.b32.xlu0 %v3527, 80
  %v3530 = vpop.permute.xlu0 %3529
  %v3532 = vunpack.c.l.b16 %v3464
  %v3533 = vunpack.c.h.b16 %v3464
  %v3534 = vpack.c.b16 %v3532, %v3532
  %v3535 = vpack.c.b16 %v3533, %v3533
  %v3537 = vsel %vm2169, %v3530, 0
  %v3540 = vsel %vm2140, %v3534, 0
  %v3543 = vsel %vm2140, %v3535, 0
  %3545 = vmatpush.bf16.msra.mxu0 0
  %3546 = vmatpush.bf16.msra.mxu0 0
  %3547 = vmatpush.bf16.msra.mxu0 0
  %3548 = vmatpush.bf16.msra.mxu0 0
  %3549 = vmatpush.bf16.msra.mxu0 0
  %3550 = vmatpush.bf16.msra.mxu0 0
  %3551 = vmatpush.bf16.msra.mxu0 0
  %3552 = vmatpush.bf16.msra.mxu0 %v3540
  %3553 = vmatmul.bf16.gmra.mxu0 %v3537
  %v3554 = vpop.f32.mrf.mxu0
  %v3555 = vadd.f32 0.0, %v3554
  %v3556 = vpop.f32.mrf.mxu0
  %v3557 = vadd.f32 0.0, %v3556
  %3558 = vdwg.mxu0
  %3559 = vmatpush.bf16.msra.mxu0 0
  %3560 = vmatpush.bf16.msra.mxu0 0
  %3561 = vmatpush.bf16.msra.mxu0 0
  %3562 = vmatpush.bf16.msra.mxu0 0
  %3563 = vmatpush.bf16.msra.mxu0 0
  %3564 = vmatpush.bf16.msra.mxu0 0
  %3565 = vmatpush.bf16.msra.mxu0 0
  %3566 = vmatpush.bf16.msra.mxu0 %v3543
  %3567 = vmatmul.bf16.gmra.mxu0 %v3537
  %v3568 = vpop.f32.mrf.mxu0
  %v3569 = vadd.f32 0.0, %v3568
  %v3570 = vpop.f32.mrf.mxu0
  %v3571 = vadd.f32 0.0, %v3570
  %3572 = vdwg.mxu0
  %v3573 = vadd.f32 %v3443, %v3555
  %v3574 = vadd.f32 %v3444, %v3569
  %v3575 = vadd.f32 %v3445, %v3557
  %v3576 = vadd.f32 %v3446, %v3571
  %3577 = vrot.lane.b32.xlu0 %v2620, 112
  %v3578 = vpop.permute.xlu0 %3577
  %3579 = vrot.lane.b32.xlu0 %v2621, 112
  %v3580 = vpop.permute.xlu0 %3579
  %3581 = vrot.lane.b32.xlu0 %v2622, 112
  %v3582 = vpop.permute.xlu0 %3581
  %3583 = vrot.lane.b32.xlu0 %v2623, 112
  %v3584 = vpop.permute.xlu0 %3583
  %v3585 = vsel %vm781, %v3582, %v3584
  %v3586 = vsel %vm781, %v3580, %v3582
  %v3587 = vsel %vm781, %v3578, %v3580
  %v3588 = vsel %vm781, %v3584, %v3578
  %v3589 = vmul.f32 %v3587, %v793
  %v3590 = vmul.f32 %v3586, %v794
  %v3591 = vmul.f32 %v3585, %v795
  %v3592 = vmul.f32 %v3588, %v796
  %v3593 = vpack.c.bf16 %v3590, %v3589
  %v3594 = vpack.c.bf16 %v3592, %v3591
  %v3595 = vrot.slane %v2337, 7
  %s3596 = vtos %v3595
  %v3597 = vstv %s3596
  %v3599 = vmul.f32 %v2672, %v3597
  %v3600 = vmul.f32 %v2673, %v3597
  %v3601 = vpack.c.bf16 %v3600, %v3599
  %3603 = vrot.lane.b32.xlu0 %v3601, 72
  %v3604 = vpop.permute.xlu0 %3603
  %v3606 = vunpack.c.l.b16 %v3593
  %v3607 = vunpack.c.h.b16 %v3593
  %v3608 = vpack.c.b16 %v3606, %v3606
  %v3609 = vpack.c.b16 %v3607, %v3607
  %v3611 = vsel %vm2169, %v3604, 0
  %v3614 = vsel %vm2140, %v3608, 0
  %v3617 = vsel %vm2140, %v3609, 0
  %3619 = vmatpush.bf16.msra.mxu0 0
  %3620 = vmatpush.bf16.msra.mxu0 0
  %3621 = vmatpush.bf16.msra.mxu0 0
  %3622 = vmatpush.bf16.msra.mxu0 0
  %3623 = vmatpush.bf16.msra.mxu0 0
  %3624 = vmatpush.bf16.msra.mxu0 0
  %3625 = vmatpush.bf16.msra.mxu0 0
  %3626 = vmatpush.bf16.msra.mxu0 %v3614
  %3627 = vmatmul.bf16.gmra.mxu0 %v3611
  %v3628 = vpop.f32.mrf.mxu0
  %v3629 = vadd.f32 0.0, %v3628
  %v3630 = vpop.f32.mrf.mxu0
  %v3631 = vadd.f32 0.0, %v3630
  %3632 = vdwg.mxu0
  %3633 = vmatpush.bf16.msra.mxu0 0
  %3634 = vmatpush.bf16.msra.mxu0 0
  %3635 = vmatpush.bf16.msra.mxu0 0
  %3636 = vmatpush.bf16.msra.mxu0 0
  %3637 = vmatpush.bf16.msra.mxu0 0
  %3638 = vmatpush.bf16.msra.mxu0 0
  %3639 = vmatpush.bf16.msra.mxu0 0
  %3640 = vmatpush.bf16.msra.mxu0 %v3617
  %3641 = vmatmul.bf16.gmra.mxu0 %v3611
  %v3642 = vpop.f32.mrf.mxu0
  %v3643 = vadd.f32 0.0, %v3642
  %v3644 = vpop.f32.mrf.mxu0
  %v3645 = vadd.f32 0.0, %v3644
  %3646 = vdwg.mxu0
  %v3647 = vadd.f32 %v3517, %v3629
  %v3648 = vadd.f32 %v3518, %v3643
  %v3649 = vadd.f32 %v3519, %v3631
  %v3650 = vadd.f32 %v3520, %v3645
  %v3651 = vrot.slane %v2547, 7
  %s3652 = vtos %v3651
  %v3653 = vstv %s3652
  %v3655 = vmul.f32 %v2703, %v3653
  %v3656 = vmul.f32 %v2704, %v3653
  %v3657 = vpack.c.bf16 %v3656, %v3655
  %3659 = vrot.lane.b32.xlu0 %v3657, 72
  %v3660 = vpop.permute.xlu0 %3659
  %v3662 = vunpack.c.l.b16 %v3594
  %v3663 = vunpack.c.h.b16 %v3594
  %v3664 = vpack.c.b16 %v3662, %v3662
  %v3665 = vpack.c.b16 %v3663, %v3663
  %v3667 = vsel %vm2169, %v3660, 0
  %v3670 = vsel %vm2140, %v3664, 0
  %v3673 = vsel %vm2140, %v3665, 0
  %3675 = vmatpush.bf16.msra.mxu0 0
  %3676 = vmatpush.bf16.msra.mxu0 0
  %3677 = vmatpush.bf16.msra.mxu0 0
  %3678 = vmatpush.bf16.msra.mxu0 0
  %3679 = vmatpush.bf16.msra.mxu0 0
  %3680 = vmatpush.bf16.msra.mxu0 0
  %3681 = vmatpush.bf16.msra.mxu0 0
  %3682 = vmatpush.bf16.msra.mxu0 %v3670
  %3683 = vmatmul.bf16.gmra.mxu0 %v3667
  %v3684 = vpop.f32.mrf.mxu0
  %v3685 = vadd.f32 0.0, %v3684
  %v3686 = vpop.f32.mrf.mxu0
  %v3687 = vadd.f32 0.0, %v3686
  %3688 = vdwg.mxu0
  %3689 = vmatpush.bf16.msra.mxu0 0
  %3690 = vmatpush.bf16.msra.mxu0 0
  %3691 = vmatpush.bf16.msra.mxu0 0
  %3692 = vmatpush.bf16.msra.mxu0 0
  %3693 = vmatpush.bf16.msra.mxu0 0
  %3694 = vmatpush.bf16.msra.mxu0 0
  %3695 = vmatpush.bf16.msra.mxu0 0
  %3696 = vmatpush.bf16.msra.mxu0 %v3673
  %3697 = vmatmul.bf16.gmra.mxu0 %v3667
  %v3698 = vpop.f32.mrf.mxu0
  %v3699 = vadd.f32 0.0, %v3698
  %v3700 = vpop.f32.mrf.mxu0
  %v3701 = vadd.f32 0.0, %v3700
  %3702 = vdwg.mxu0
  %v3703 = vadd.f32 %v3573, %v3685
  %v3704 = vadd.f32 %v3574, %v3699
  %v3705 = vadd.f32 %v3575, %v3687
  %v3706 = vadd.f32 %v3576, %v3701
  %3707 = vrot.lane.b32.xlu0 %v2620, 111
  %v3708 = vpop.permute.xlu0 %3707
  %3709 = vrot.lane.b32.xlu0 %v2621, 111
  %v3710 = vpop.permute.xlu0 %3709
  %3711 = vrot.lane.b32.xlu0 %v2622, 111
  %v3712 = vpop.permute.xlu0 %3711
  %3713 = vrot.lane.b32.xlu0 %v2623, 111
  %v3714 = vpop.permute.xlu0 %3713
  %v3715 = vsel %vm890, %v3712, %v3714
  %v3716 = vsel %vm890, %v3710, %v3712
  %v3717 = vsel %vm890, %v3708, %v3710
  %v3718 = vsel %vm890, %v3714, %v3708
  %v3719 = vmul.f32 %v3717, %v902
  %v3720 = vmul.f32 %v3716, %v903
  %v3721 = vmul.f32 %v3715, %v904
  %v3722 = vmul.f32 %v3718, %v905
  %v3723 = vpack.c.bf16 %v3720, %v3719
  %v3724 = vpack.c.bf16 %v3722, %v3721
  %s3726 = vtos %v2352
  %v3727 = vstv %s3726
  %v3729 = vmul.f32 %v2672, %v3727
  %v3730 = vmul.f32 %v2673, %v3727
  %v3731 = vpack.c.bf16 %v3730, %v3729
  %3733 = vrot.lane.b32.xlu0 %v3731, 64
  %v3734 = vpop.permute.xlu0 %3733
  %v3736 = vunpack.c.l.b16 %v3723
  %v3737 = vunpack.c.h.b16 %v3723
  %v3738 = vpack.c.b16 %v3736, %v3736
  %v3739 = vpack.c.b16 %v3737, %v3737
  %v3741 = vsel %vm2169, %v3734, 0
  %v3744 = vsel %vm2140, %v3738, 0
  %v3747 = vsel %vm2140, %v3739, 0
  %3749 = vmatpush.bf16.msra.mxu0 0
  %3750 = vmatpush.bf16.msra.mxu0 0
  %3751 = vmatpush.bf16.msra.mxu0 0
  %3752 = vmatpush.bf16.msra.mxu0 0
  %3753 = vmatpush.bf16.msra.mxu0 0
  %3754 = vmatpush.bf16.msra.mxu0 0
  %3755 = vmatpush.bf16.msra.mxu0 0
  %3756 = vmatpush.bf16.msra.mxu0 %v3744
  %3757 = vmatmul.bf16.gmra.mxu0 %v3741
  %v3758 = vpop.f32.mrf.mxu0
  %v3759 = vadd.f32 0.0, %v3758
  %v3760 = vpop.f32.mrf.mxu0
  %v3761 = vadd.f32 0.0, %v3760
  %3762 = vdwg.mxu0
  %3763 = vmatpush.bf16.msra.mxu0 0
  %3764 = vmatpush.bf16.msra.mxu0 0
  %3765 = vmatpush.bf16.msra.mxu0 0
  %3766 = vmatpush.bf16.msra.mxu0 0
  %3767 = vmatpush.bf16.msra.mxu0 0
  %3768 = vmatpush.bf16.msra.mxu0 0
  %3769 = vmatpush.bf16.msra.mxu0 0
  %3770 = vmatpush.bf16.msra.mxu0 %v3747
  %3771 = vmatmul.bf16.gmra.mxu0 %v3741
  %v3772 = vpop.f32.mrf.mxu0
  %v3773 = vadd.f32 0.0, %v3772
  %v3774 = vpop.f32.mrf.mxu0
  %v3775 = vadd.f32 0.0, %v3774
  %3776 = vdwg.mxu0
  %v3777 = vadd.f32 %v3647, %v3759
  %v3778 = vadd.f32 %v3648, %v3773
  %v3779 = vadd.f32 %v3649, %v3761
  %v3780 = vadd.f32 %v3650, %v3775
  %s3782 = vtos %v2562
  %v3783 = vstv %s3782
  %v3785 = vmul.f32 %v2703, %v3783
  %v3786 = vmul.f32 %v2704, %v3783
  %v3787 = vpack.c.bf16 %v3786, %v3785
  %3789 = vrot.lane.b32.xlu0 %v3787, 64
  %v3790 = vpop.permute.xlu0 %3789
  %v3792 = vunpack.c.l.b16 %v3724
  %v3793 = vunpack.c.h.b16 %v3724
  %v3794 = vpack.c.b16 %v3792, %v3792
  %v3795 = vpack.c.b16 %v3793, %v3793
  %v3797 = vsel %vm2169, %v3790, 0
  %v3800 = vsel %vm2140, %v3794, 0
  %v3803 = vsel %vm2140, %v3795, 0
  %3805 = vmatpush.bf16.msra.mxu0 0
  %3806 = vmatpush.bf16.msra.mxu0 0
  %3807 = vmatpush.bf16.msra.mxu0 0
  %3808 = vmatpush.bf16.msra.mxu0 0
  %3809 = vmatpush.bf16.msra.mxu0 0
  %3810 = vmatpush.bf16.msra.mxu0 0
  %3811 = vmatpush.bf16.msra.mxu0 0
  %3812 = vmatpush.bf16.msra.mxu0 %v3800
  %3813 = vmatmul.bf16.gmra.mxu0 %v3797
  %v3814 = vpop.f32.mrf.mxu0
  %v3815 = vadd.f32 0.0, %v3814
  %v3816 = vpop.f32.mrf.mxu0
  %v3817 = vadd.f32 0.0, %v3816
  %3818 = vdwg.mxu0
  %3819 = vmatpush.bf16.msra.mxu0 0
  %3820 = vmatpush.bf16.msra.mxu0 0
  %3821 = vmatpush.bf16.msra.mxu0 0
  %3822 = vmatpush.bf16.msra.mxu0 0
  %3823 = vmatpush.bf16.msra.mxu0 0
  %3824 = vmatpush.bf16.msra.mxu0 0
  %3825 = vmatpush.bf16.msra.mxu0 0
  %3826 = vmatpush.bf16.msra.mxu0 %v3803
  %3827 = vmatmul.bf16.gmra.mxu0 %v3797
  %v3828 = vpop.f32.mrf.mxu0
  %v3829 = vadd.f32 0.0, %v3828
  %v3830 = vpop.f32.mrf.mxu0
  %v3831 = vadd.f32 0.0, %v3830
  %3832 = vdwg.mxu0
  %v3833 = vadd.f32 %v3703, %v3815
  %v3834 = vadd.f32 %v3704, %v3829
  %v3835 = vadd.f32 %v3705, %v3817
  %v3836 = vadd.f32 %v3706, %v3831
  %3838 = vset.pattern.permute.xlu0 0
  %3839 = vperm.xlu0 %3838, %v2299
  %v3840 = vpop.permute.xlu0 %3839
  %3843 = vset.pattern.permute.xlu0 0
  %3844 = vperm.xlu0 %3843, %v2314
  %v3845 = vpop.permute.xlu0 %3844
  %v3847 = vmul.f32 %v3777, %v3840
  %v3848 = vmul.f32 %v3778, %v3840
  %v3849 = vmul.f32 %v3779, %v3845
  %v3850 = vmul.f32 %v3780, %v3845
  %v3851 = vadd.f32 %v3847, %v45
  %v3852 = vadd.f32 %v3848, %v46
  %v3853 = vadd.f32 %v3849, %v49
  %v3854 = vadd.f32 %v3850, %v50
  %3855 = vst [vmem:[%s13] sm:$0xff] %v3851
  %3856 = vst [vmem:[%s13 + $0x8] sm:$0xff] %v3852
  %3857 = vst [vmem:[%s13 + $0x20] sm:$0xff] %v3853
  %3858 = vst [vmem:[%s13 + $0x28] sm:$0xff] %v3854
  %3860 = vset.pattern.permute.xlu0 0
  %3861 = vperm.xlu0 %3860, %v2509
  %v3862 = vpop.permute.xlu0 %3861
  %3865 = vset.pattern.permute.xlu0 0
  %3866 = vperm.xlu0 %3865, %v2524
  %v3867 = vpop.permute.xlu0 %3866
  %v3869 = vmul.f32 %v3833, %v3862
  %v3870 = vmul.f32 %v3834, %v3862
  %v3871 = vmul.f32 %v3835, %v3867
  %v3872 = vmul.f32 %v3836, %v3867
  %v3873 = vadd.f32 %v3869, %v47
  %v3874 = vadd.f32 %v3870, %v48
  %v3875 = vadd.f32 %v3871, %v51
  %v3876 = vadd.f32 %v3872, %v52
  %3877 = vst [vmem:[%s13 + $0x10] sm:$0xff] %v3873
  %3878 = vst [vmem:[%s13 + $0x18] sm:$0xff] %v3874
  %3879 = vst [vmem:[%s13 + $0x30] sm:$0xff] %v3875
  %3880 = vst [vmem:[%s13 + $0x38] sm:$0xff] %v3876
  // Predicated region
  $region54: #{_lambda_.1} parent=0 // pred_check
    _
  $region55: #{_lambda_.1} parent=0 // pred_check_branch
    %3882 = sbr.rel (0) target = $region57
  $region56: #{_lambda_.1} parent=0 // pred_region
    _
  $region57: #{_lambda_.1} parent=0 // pred_fallthru
    _
  // Predicated region
  $region58: #{_lambda_.1} parent=0 // pred_check
    _
  $region59: #{_lambda_.1} parent=0 // pred_check_branch
    %3884 = sbr.rel (0) target = $region61
  $region60: #{_lambda_.1} parent=0 // pred_region
    _
  $region61: #{_lambda_.1} parent=0 // pred_fallthru
    _

</llo_original>
